<compile_context>
chip_gen: v5e
topology: v5e:2x2
jax: 0.10.0
libtpu: 0.0.40
codegen_flags: <defaults>
</compile_context>

<pallas_src>
import functools

import jax
import jax.numpy as jnp
from jax import lax
from jax.experimental import pallas as pl
from jax.experimental.pallas import tpu as pltpu

EPS = 1e-5


# --------------------------------------------------------------------------------------
# In-kernel helpers
# --------------------------------------------------------------------------------------
def _partial_stats(y, *, need_mask=False, r_total=0):
    """Per-channel (sum, sum-of-squares) over rows of y: (R, C) -> (1, 2, C).
    If need_mask, rows past r_total (padded rows of a partial tile) are excluded."""
    if need_mask:
        rid = (pl.program_id(0) * y.shape[0]
               + lax.broadcasted_iota(jnp.int32, (y.shape[0], 1), 0))
        y = jnp.where(rid < r_total, y, 0.0)
    s = jnp.sum(y, axis=0, keepdims=True)
    ss = jnp.sum(y * y, axis=0, keepdims=True)
    return jnp.concatenate([s, ss], axis=0)[None]


# --------------------------------------------------------------------------------------
# Stage A: conv1x1_1 (matmul) + partial BN1 stats.          grid over row tiles, parallel
# --------------------------------------------------------------------------------------
def _conv1x1_stats_kernel(x_ref, w_ref, y_ref, st_ref, *, mm_dtype, need_mask, r_total):
    y = jnp.dot(x_ref[...].astype(mm_dtype), w_ref[...],
                preferred_element_type=jnp.float32)
    y_ref[...] = y.astype(y_ref.dtype)
    st_ref[...] = _partial_stats(y, need_mask=need_mask, r_total=r_total)


# --------------------------------------------------------------------------------------
# Stage B: BN1 affine + ReLU + conv3x3 (zero-halo) + partial BN2 stats.
#          grid over images (halo handled per image), parallel
# --------------------------------------------------------------------------------------
def _bn_relu_conv3x3_kernel(s1_ref, h1_ref, y1_ref, w2_ref, y2_ref, st2_ref, pad_ref,
                            *, h, w, fused):
    cmid = y1_ref.shape[-1]
    pdt = pad_ref.dtype

    # BN1 is a pre-computed per-channel affine (scale, shift) — pure VPU work here.
    y1n = jnp.maximum(y1_ref[0] * s1_ref[...].reshape(1, 1, cmid)
                      + h1_ref[...].reshape(1, 1, cmid), 0.0)      # (H, W, Cmid) f32

    # Zero only the halo ring; the interior is fully overwritten every step (scratch is
    # per-core under "parallel", so no first-step-only init is possible/needed).
    pad_ref[0:1, :, :] = jnp.zeros((1, w + 2, cmid), pdt)
    pad_ref[h + 1:h + 2, :, :] = jnp.zeros((1, w + 2, cmid), pdt)
    pad_ref[:, 0:1, :] = jnp.zeros((h + 2, 1, cmid), pdt)
    pad_ref[:, w + 1:w + 2, :] = jnp.zeros((h + 2, 1, cmid), pdt)
    pad_ref[1:h + 1, 1:w + 1, :] = y1n.astype(pdt)

    if fused:
        # Cmid multiple of 128: lane-aligned concat, one big K = 9*Cmid matmul.
        taps = [pad_ref[ky:ky + h, kx:kx + w, :].reshape(h * w, cmid)
                for ky in range(3) for kx in range(3)]
        patches = jnp.concatenate(taps, axis=1)                    # (H*W, 9*Cmid)
        y2 = jnp.dot(patches, w2_ref[...], preferred_element_type=jnp.float32)
    else:
        # Narrow Cmid: 9 accumulated matmuls — no lane-misaligned concat, no 9x patches.
        y2 = None
        t = 0
        for ky in range(3):
            for kx in range(3):
                tap = pad_ref[ky:ky + h, kx:kx + w, :].reshape(h * w, cmid)
                d = jnp.dot(tap, w2_ref[t], preferred_element_type=jnp.float32)
                y2 = d if y2 is None else y2 + d
                t += 1

    y2_ref[...] = y2.reshape(1, h, w, cmid).astype(y2_ref.dtype)
    st2_ref[...] = _partial_stats(y2)


# --------------------------------------------------------------------------------------
# Stage C: BN2 affine + ReLU + conv1x1_2 (matmul) + partial BN3 stats.   row tiles
# --------------------------------------------------------------------------------------
def _bn_relu_conv1x1_kernel(s2_ref, h2_ref, y2_ref, w3_ref, y3_ref, st3_ref,
                            *, mm_dtype, need_mask, r_total):
    y2n = jnp.maximum(y2_ref[...] * s2_ref[...] + h2_ref[...], 0.0)
    y3 = jnp.dot(y2n.astype(mm_dtype), w3_ref[...], preferred_element_type=jnp.float32)
    y3_ref[...] = y3.astype(y3_ref.dtype)
    st3_ref[...] = _partial_stats(y3, need_mask=need_mask, r_total=r_total)


# --------------------------------------------------------------------------------------
# Stage D: BN3 affine + residual add + ReLU.                row tiles, parallel, aliased
# --------------------------------------------------------------------------------------
def _bn_residual_relu_kernel(s3_ref, h3_ref, y3_ref, x_ref, out_ref):
    out_ref[...] = jnp.maximum(
        y3_ref[...] * s3_ref[...] + h3_ref[...] + x_ref[...], 0.0).astype(out_ref.dtype)


# --------------------------------------------------------------------------------------
# Wrapper-side helpers
# --------------------------------------------------------------------------------------
def _full_spec(a):
    nd = a.ndim
    return pl.BlockSpec(a.shape, lambda i, _nd=nd: (0,) * _nd)


def _bn_affine_from_stats(st, gamma, beta, count):
    """Tiny reduce of per-tile (sum, sum_sq) partials -> per-channel BN (scale, shift)
    so that training-mode BN(x) == x * scale + shift (biased variance, eps=1e-5)."""
    tot = jnp.sum(st.astype(jnp.float32), axis=0)        # (2, C)
    mean = tot[0] / float(count)
    var = jnp.maximum(tot[1] / float(count) - mean * mean, 0.0)
    scale = gamma.astype(jnp.float32) * lax.rsqrt(var + EPS)
    shift = beta.astype(jnp.float32) - mean * scale
    return scale.reshape(1, -1), shift.reshape(1, -1)


def _tpu_vmem_limit_bytes():
    cap = None
    try:
        cap = getattr(pltpu.get_tpu_info(), "vmem_capacity_bytes", None)
    except Exception:
        cap = None
    if cap is not None and cap >= 100 * (1 << 20):
        return 64 * (1 << 20)      # v5e / v6e: 128 MiB physical VMEM
    return 40 * (1 << 20)          # v7x-class (64 MiB physical) or unknown: conservative


def _pick_block_rows(r_total, cin, cmid, cout, vmem_limit, act_bytes):
    # Rough per-row cost of double-buffered in/out row blocks across stages A/C/D.
    row_bytes = 2 * (4 * (cin + cout) + act_bytes * (2 * cmid + 2 * cout))
    cap = int((vmem_limit // 3) // max(row_bytes, 1))
    cap = max(64, min(2048, cap - cap % 8))
    if r_total <= cap:
        return r_total                      # single full-extent tile (always legal)
    for tr in range(cap, 63, -8):
        if r_total % tr == 0:
            return tr                       # exact-divisor tile (no masking needed)
    return cap                              # non-divisor tile; stats are row-masked


# --------------------------------------------------------------------------------------
# Forward (NHWC native; NCHW entry point below for PyTorch-interface compatibility)
# --------------------------------------------------------------------------------------
def basic_block_forward_nhwc(x_nhwc, params, *, block_rows=None,
                             compute_dtype=jnp.bfloat16):
    n, h, w, cin = x_nhwc.shape
    cmid = params["w1_t"].shape[0]
    cout = params["w3_t"].shape[0]
    assert cin == cout, "downsample=None requires in_channels == outchannels * expansion"
    r_total = n * h * w
    f32 = jnp.float32
    act_dtype = compute_dtype                      # inter-stage activation storage dtype
    act_bytes = jnp.dtype(act_dtype).itemsize

    vmem_limit = _tpu_vmem_limit_bytes()
    cp = pltpu.CompilerParams(dimension_semantics=("parallel",),
                              vmem_limit_bytes=vmem_limit)

    tr = block_rows if block_rows is not None else _pick_block_rows(
        r_total, cin, cmid, cout, vmem_limit, act_bytes)
    need_mask = (r_total % tr) != 0
    t_rows = pl.cdiv(r_total, tr)

    # ---- layout glue: weights pre-cast ONCE to the MXU input dtype ------------------
    x2d = x_nhwc.reshape(r_total, cin)
    w1 = jnp.transpose(params["w1_t"][:, :, 0, 0], (1, 0)).astype(compute_dtype)   # (Cin, Cmid)
    w2_khwio = jnp.transpose(params["w2_t"], (2, 3, 1, 0))                          # (3,3,Cmid,Cmid)
    fused3x3 = (cmid % 128 == 0)
    w2 = (w2_khwio.reshape(9 * cmid, cmid) if fused3x3
          else w2_khwio.reshape(9, cmid, cmid)).astype(compute_dtype)
    w3 = jnp.transpose(params["w3_t"][:, :, 0, 0], (1, 0)).astype(compute_dtype)   # (Cmid, Cout)

    # ---- Stage A: conv1x1_1 + partial BN1 stats -------------------------------------
    y1, st1 = pl.pallas_call(
        functools.partial(_conv1x1_stats_kernel, mm_dtype=compute_dtype,
                          need_mask=need_mask, r_total=r_total),
        out_shape=(jax.ShapeDtypeStruct((r_total, cmid), act_dtype),
                   jax.ShapeDtypeStruct((t_rows, 2, cmid), f32)),
        grid_spec=pltpu.PrefetchScalarGridSpec(
            num_scalar_prefetch=0, grid=(t_rows,),
            in_specs=[pl.BlockSpec((tr, cin), lambda i: (i, 0)),
                      _full_spec(w1)],
            out_specs=[pl.BlockSpec((tr, cmid), lambda i: (i, 0)),
                       pl.BlockSpec((1, 2, cmid), lambda i: (i, 0, 0))],
        ),
        compiler_params=cp,
    )(x2d, w1)
    s1, h1 = _bn_affine_from_stats(st1, params["g1"], params["b1"], r_total)

    # ---- Stage B: BN1 + ReLU + conv3x3 + partial BN2 stats ---------------------------
    y1_4d = y1.reshape(n, h, w, cmid)
    y2_4d, st2 = pl.pallas_call(
        functools.partial(_bn_relu_conv3x3_kernel, h=h, w=w, fused=fused3x3),
        out_shape=(jax.ShapeDtypeStruct((n, h, w, cmid), act_dtype),
                   jax.ShapeDtypeStruct((n, 2, cmid), f32)),
        grid_spec=pltpu.PrefetchScalarGridSpec(
            num_scalar_prefetch=0, grid=(n,),
            in_specs=[_full_spec(s1), _full_spec(h1),
                      pl.BlockSpec((1, h, w, cmid), lambda i: (i, 0, 0, 0)),
                      _full_spec(w2)],
            out_specs=[pl.BlockSpec((1, h, w, cmid), lambda i: (i, 0, 0, 0)),
                       pl.BlockSpec((1, 2, cmid), lambda i: (i, 0, 0))],
            scratch_shapes=[pltpu.VMEM((h + 2, w + 2, cmid), compute_dtype)],
        ),
        compiler_params=cp,
    )(s1, h1, y1_4d, w2)
    s2, h2 = _bn_affine_from_stats(st2, params["g2"], params["b2"], r_total)

    # ---- Stage C: BN2 + ReLU + conv1x1_2 + partial BN3 stats -------------------------
    y2_2d = y2_4d.reshape(r_total, cmid)
    y3, st3 = pl.pallas_call(
        functools.partial(_bn_relu_conv1x1_kernel, mm_dtype=compute_dtype,
                          need_mask=need_mask, r_total=r_total),
        out_shape=(jax.ShapeDtypeStruct((r_total, cout), act_dtype),
                   jax.ShapeDtypeStruct((t_rows, 2, cout), f32)),
        grid_spec=pltpu.PrefetchScalarGridSpec(
            num_scalar_prefetch=0, grid=(t_rows,),
            in_specs=[_full_spec(s2), _full_spec(h2),
                      pl.BlockSpec((tr, cmid), lambda i: (i, 0)),
                      _full_spec(w3)],
            out_specs=[pl.BlockSpec((tr, cout), lambda i: (i, 0)),
                       pl.BlockSpec((1, 2, cout), lambda i: (i, 0, 0))],
        ),
        compiler_params=cp,
    )(s2, h2, y2_2d, w3)
    s3, h3 = _bn_affine_from_stats(st3, params["g3"], params["b3"], r_total)

    # ---- Stage D: BN3 + residual + ReLU (output aliased onto the residual slab) ------
    out2d = pl.pallas_call(
        _bn_residual_relu_kernel,
        out_shape=jax.ShapeDtypeStruct((r_total, cout), x_nhwc.dtype),
        grid_spec=pltpu.PrefetchScalarGridSpec(
            num_scalar_prefetch=0, grid=(t_rows,),
            in_specs=[_full_spec(s3), _full_spec(h3),
                      pl.BlockSpec((tr, cout), lambda i: (i, 0)),
                      pl.BlockSpec((tr, cout), lambda i: (i, 0))],
            out_specs=pl.BlockSpec((tr, cout), lambda i: (i, 0)),
        ),
        compiler_params=cp,
        input_output_aliases={3: 0},   # residual x slab -> output slab (same shape/dtype)
    )(s3, h3, y3, x2d)

    return out2d.reshape(n, h, w, cout)


def basic_block_forward(x_nchw, params, *, block_rows=None, compute_dtype=jnp.bfloat16):
    """PyTorch-layout (NCHW) entry point.  NOTE: the two transposes below are full HBM
    relayout passes — in a real network keep NHWC end-to-end and call
    basic_block_forward_nhwc directly."""
    x_nhwc = jnp.transpose(x_nchw, (0, 2, 3, 1))
    out = basic_block_forward_nhwc(x_nhwc, params, block_rows=block_rows,
                                   compute_dtype=compute_dtype)
    return jnp.transpose(out, (0, 3, 1, 2))


# -------------------------- pure-JAX reference (for checking) --------------------------
def _bn_train_ref(x, gamma, beta):
    mean = jnp.mean(x, axis=(0, 2, 3), keepdims=True)
    var = jnp.mean((x - mean) ** 2, axis=(0, 2, 3), keepdims=True)
    return ((x - mean) * lax.rsqrt(var + EPS) * gamma.reshape(1, -1, 1, 1)
            + beta.reshape(1, -1, 1, 1))


def reference_forward(x, p):
    dn = ("NCHW", "OIHW", "NCHW")
    hp = lax.Precision.HIGHEST
    out = lax.conv_general_dilated(x, p["w1_t"], (1, 1), "VALID",
                                   dimension_numbers=dn, precision=hp)
    out = jax.nn.relu(_bn_train_ref(out, p["g1"], p["b1"]))
    out = lax.conv_general_dilated(out, p["w2_t"], (1, 1), ((1, 1), (1, 1)),
                                   dimension_numbers=dn, precision=hp)
    out = jax.nn.relu(_bn_train_ref(out, p["g2"], p["b2"]))
    out = lax.conv_general_dilated(out, p["w3_t"], (1, 1), "VALID",
                                   dimension_numbers=dn, precision=hp)
    out = _bn_train_ref(out, p["g3"], p["b3"])
    return jax.nn.relu(out + x)


if __name__ == "__main__":
    # Small shapes consistent with the module: in_channels = outchannels * expansion.
    N, H, W = 2, 16, 16
    outchannels = 16
    expansion = 4
    in_channels = outchannels * expansion  # 64

    key = jax.random.PRNGKey(0)
    keys = jax.random.split(key, 10)

    params = {
        # PyTorch conv weight layout: (out, in, kh, kw), bias=False everywhere.
        "w1_t": 0.1 * jax.random.normal(keys[0], (outchannels, in_channels, 1, 1), jnp.float32),
        "w2_t": 0.1 * jax.random.normal(keys[1], (outchannels, outchannels, 3, 3), jnp.float32),
        "w3_t": 0.1 * jax.random.normal(keys[2], (outchannels * expansion, outchannels, 1, 1), jnp.float32),
        "g1": 1.0 + 0.1 * jax.random.normal(keys[3], (outchannels,), jnp.float32),
        "b1": 0.1 * jax.random.normal(keys[4], (outchannels,), jnp.float32),
        "g2": 1.0 + 0.1 * jax.random.normal(keys[5], (outchannels,), jnp.float32),
        "b2": 0.1 * jax.random.normal(keys[6], (outchannels,), jnp.float32),
        "g3": 1.0 + 0.1 * jax.random.normal(keys[7], (outchannels * expansion,), jnp.float32),
        "b3": 0.1 * jax.random.normal(keys[8], (outchannels * expansion,), jnp.float32),
    }

    x = jax.random.normal(keys[9], (N, in_channels, H, W), jnp.float32)

    ref = jax.block_until_ready(reference_forward(x, params))

    # 1) Default performance path: bf16 MXU inputs + bf16 inter-stage activations.
    #    block_rows=128 -> 4 row tiles, exercising the cross-tile partial-stats BN path.
    fwd_bf16 = jax.jit(functools.partial(basic_block_forward, block_rows=128))
    out_bf16 = jax.block_until_ready(fwd_bf16(x, params))
    assert out_bf16.shape == (N, in_channels, H, W), out_bf16.shape
    rel = float(jnp.linalg.norm((out_bf16 - ref).astype(jnp.float32))
                / jnp.linalg.norm(ref.astype(jnp.float32)))
    assert rel < 5e-2, f"bf16 path relative error too large: {rel}"

    # 2) Exactness path: f32 everywhere; block_rows=192 does NOT divide 512, exercising
    #    the cdiv grid + padded-row masking of the BN partial stats.
    fwd_f32 = jax.jit(functools.partial(basic_block_forward, block_rows=192,
                                        compute_dtype=jnp.float32))
    out_f32 = jax.block_until_ready(fwd_f32(x, params))
    err = float(jnp.max(jnp.abs(out_f32 - ref)))
    assert jnp.allclose(out_f32, ref, rtol=5e-3, atol=5e-3), err

    print("KERNEL_OK")
</pallas_src>

<mosaic_0001>
module attributes {stable_mosaic.version = 11 : i64} {
  func.func @_conv1x1_stats_kernel(%arg0: i32, %arg1: memref<128x64xf32, #tpu.memory_space<vmem>>, %arg2: memref<64x16xbf16, #tpu.memory_space<vmem>>, %arg3: memref<128x16xbf16, #tpu.memory_space<vmem>>, %arg4: memref<1x2x16xf32, #tpu.memory_space<vmem>>) attributes {dimension_semantics = [#tpu.dimension_semantics<parallel>], iteration_bounds = array<i64: 4>, scalar_prefetch = 0 : i64, scratch_operands = 0 : i64, tpu.core_type = #tpu.core_type<tc>, window_params = [{transform_indices = @transform_0, window_bounds = array<i64: 128, 64>}, {pipeline_mode = #tpu.pipeline_mode<synchronous>, transform_indices = @transform_1, window_bounds = array<i64: 64, 16>}, {transform_indices = @transform_2, window_bounds = array<i64: 128, 16>}, {transform_indices = @transform_3, window_bounds = array<i64: 1, 2, 16>}]} {
    %c0 = arith.constant 0 : index
    %c0_0 = arith.constant 0 : index
    %0 = vector.load %arg1[%c0, %c0_0] : memref<128x64xf32, #tpu.memory_space<vmem>>, vector<128x64xf32>
    %1 = arith.truncf %0 : vector<128x64xf32> to vector<128x64xbf16>
    %c0_1 = arith.constant 0 : index
    %c0_2 = arith.constant 0 : index
    %2 = vector.load %arg2[%c0_1, %c0_2] : memref<64x16xbf16, #tpu.memory_space<vmem>>, vector<64x16xbf16>
    %cst = arith.constant dense<0.000000e+00> : vector<128x16xf32>
    %3 = tpu.matmul %1, %2, %cst {dimension_numbers = #tpu.dot_dimension_numbers<[1], [0], [0], [1], [0, 0, 1, 1], [], []>} : vector<128x64xbf16>, vector<64x16xbf16>, vector<128x16xf32> -> vector<128x16xf32>
    %4 = arith.truncf %3 : vector<128x16xf32> to vector<128x16xbf16>
    %c0_3 = arith.constant 0 : index
    %c0_4 = arith.constant 0 : index
    %5 = vector.load %arg3[%c0_3, %c0_4] : memref<128x16xbf16, #tpu.memory_space<vmem>>, vector<128x16xbf16>
    tpu.vector_store %arg3[%c0_3, %c0_4], %4 {strides = array<i32>} : memref<128x16xbf16, #tpu.memory_space<vmem>>, vector<128x16xbf16>,
    %cst_5 = arith.constant dense<0.000000e+00> : vector<16xf32>
    %6 = vector.multi_reduction <add>, %3, %cst_5 [0] : vector<128x16xf32> to vector<16xf32>
    %7 = vector.shape_cast %6 : vector<16xf32> to vector<1x16xf32>
    %8 = arith.mulf %3, %3 : vector<128x16xf32>
    %cst_6 = arith.constant dense<0.000000e+00> : vector<16xf32>
    %9 = vector.multi_reduction <add>, %8, %cst_6 [0] : vector<128x16xf32> to vector<16xf32>
    %10 = vector.shape_cast %9 : vector<16xf32> to vector<1x16xf32>
    %11 = tpu.concatenate %7, %10 in 0 : vector<1x16xf32>, vector<1x16xf32> -> vector<2x16xf32>
    %12 = vector.shape_cast %11 : vector<2x16xf32> to vector<1x2x16xf32>
    %c0_7 = arith.constant 0 : index
    %c0_8 = arith.constant 0 : index
    %c0_9 = arith.constant 0 : index
    %13 = vector.load %arg4[%c0_7, %c0_8, %c0_9] : memref<1x2x16xf32, #tpu.memory_space<vmem>>, vector<1x2x16xf32>
    tpu.vector_store %arg4[%c0_7, %c0_8, %c0_9], %12 {strides = array<i32>} : memref<1x2x16xf32, #tpu.memory_space<vmem>>, vector<1x2x16xf32>,
    return
  }
  func.func @transform_0(%arg0: i32) -> (i32, i32) {
    %c0_i32 = arith.constant 0 : i32
    %c0_i32_0 = arith.constant 0 : i32
    return %arg0, %c0_i32 : i32, i32
  }
  func.func @transform_1(%arg0: i32) -> (i32, i32) {
    %c0_i32 = arith.constant 0 : i32
    %c0_i32_0 = arith.constant 0 : i32
    %c0_i32_1 = arith.constant 0 : i32
    return %c0_i32, %c0_i32_0 : i32, i32
  }
  func.func @transform_2(%arg0: i32) -> (i32, i32) {
    %c0_i32 = arith.constant 0 : i32
    %c0_i32_0 = arith.constant 0 : i32
    return %arg0, %c0_i32 : i32, i32
  }
  func.func @transform_3(%arg0: i32) -> (i32, i32, i32) {
    %c0_i32 = arith.constant 0 : i32
    %c0_i32_0 = arith.constant 0 : i32
    %c0_i32_1 = arith.constant 0 : i32
    return %arg0, %c0_i32, %c0_i32_0 : i32, i32, i32
  }
}

module attributes {stable_mosaic.version = 11 : i64} {
  func.func @_bn_relu_conv3x3_kernel(%arg0: i32, %arg1: memref<1x16xf32, #tpu.memory_space<vmem>>, %arg2: memref<1x16xf32, #tpu.memory_space<vmem>>, %arg3: memref<1x16x16x16xbf16, #tpu.memory_space<vmem>>, %arg4: memref<9x16x16xbf16, #tpu.memory_space<vmem>>, %arg5: memref<1x16x16x16xbf16, #tpu.memory_space<vmem>>, %arg6: memref<1x2x16xf32, #tpu.memory_space<vmem>>, %arg7: memref<18x18x16xbf16, #tpu.memory_space<vmem>>) attributes {dimension_semantics = [#tpu.dimension_semantics<parallel>], iteration_bounds = array<i64: 2>, scalar_prefetch = 0 : i64, scratch_operands = 1 : i64, tpu.core_type = #tpu.core_type<tc>, window_params = [{pipeline_mode = #tpu.pipeline_mode<synchronous>, transform_indices = @transform_0, window_bounds = array<i64: 1, 16>}, {pipeline_mode = #tpu.pipeline_mode<synchronous>, transform_indices = @transform_1, window_bounds = array<i64: 1, 16>}, {transform_indices = @transform_2, window_bounds = array<i64: 1, 16, 16, 16>}, {pipeline_mode = #tpu.pipeline_mode<synchronous>, transform_indices = @transform_3, window_bounds = array<i64: 9, 16, 16>}, {transform_indices = @transform_4, window_bounds = array<i64: 1, 16, 16, 16>}, {transform_indices = @transform_5, window_bounds = array<i64: 1, 2, 16>}]} {
    %c0 = arith.constant 0 : index
    %c0_0 = arith.constant 0 : index
    %c0_1 = arith.constant 0 : index
    %c0_2 = arith.constant 0 : index
    %0 = vector.load %arg3[%c0, %c0_0, %c0_1, %c0_2] : memref<1x16x16x16xbf16, #tpu.memory_space<vmem>>, vector<1x16x16x16xbf16>
    %1 = vector.shape_cast %0 : vector<1x16x16x16xbf16> to vector<16x16x16xbf16>
    %c0_3 = arith.constant 0 : index
    %c0_4 = arith.constant 0 : index
    %2 = vector.load %arg1[%c0_3, %c0_4] : memref<1x16xf32, #tpu.memory_space<vmem>>, vector<1x16xf32>
    %3 = vector.shape_cast %2 : vector<1x16xf32> to vector<1x1x16xf32>
    %4 = arith.extf %1 : vector<16x16x16xbf16> to vector<16x16x16xf32>
    %5 = vector.broadcast %3 : vector<1x1x16xf32> to vector<16x16x16xf32>
    %6 = arith.mulf %4, %5 : vector<16x16x16xf32>
    %c0_5 = arith.constant 0 : index
    %c0_6 = arith.constant 0 : index
    %7 = vector.load %arg2[%c0_5, %c0_6] : memref<1x16xf32, #tpu.memory_space<vmem>>, vector<1x16xf32>
    %8 = vector.shape_cast %7 : vector<1x16xf32> to vector<1x1x16xf32>
    %9 = vector.broadcast %8 : vector<1x1x16xf32> to vector<16x16x16xf32>
    %10 = arith.addf %6, %9 : vector<16x16x16xf32>
    %cst = arith.constant 0.000000e+00 : f32
    %11 = vector.broadcast %cst : f32 to vector<16x16x16xf32>
    %12 = arith.maximumf %10, %11 : vector<16x16x16xf32>
    %cst_7 = arith.constant 0.000000e+00 : bf16
    %13 = vector.broadcast %cst_7 : bf16 to vector<1x18x16xbf16>
    %c0_8 = arith.constant 0 : index
    %c0_9 = arith.constant 0 : index
    %c0_10 = arith.constant 0 : index
    %14 = vector.load %arg7[%c0_8, %c0_9, %c0_10] : memref<18x18x16xbf16, #tpu.memory_space<vmem>>, vector<1x18x16xbf16>
    tpu.vector_store %arg7[%c0_8, %c0_9, %c0_10], %13 {strides = array<i32>} : memref<18x18x16xbf16, #tpu.memory_space<vmem>>, vector<1x18x16xbf16>,
    %cst_11 = arith.constant 0.000000e+00 : bf16
    %15 = vector.broadcast %cst_11 : bf16 to vector<1x18x16xbf16>
    %c17 = arith.constant 17 : index
    %c0_12 = arith.constant 0 : index
    %c0_13 = arith.constant 0 : index
    %16 = vector.load %arg7[%c17, %c0_12, %c0_13] : memref<18x18x16xbf16, #tpu.memory_space<vmem>>, vector<1x18x16xbf16>
    tpu.vector_store %arg7[%c17, %c0_12, %c0_13], %15 {strides = array<i32>} : memref<18x18x16xbf16, #tpu.memory_space<vmem>>, vector<1x18x16xbf16>,
    %cst_14 = arith.constant 0.000000e+00 : bf16
    %17 = vector.broadcast %cst_14 : bf16 to vector<18x1x16xbf16>
    %c0_15 = arith.constant 0 : index
    %c0_16 = arith.constant 0 : index
    %c0_17 = arith.constant 0 : index
    %18 = vector.load %arg7[%c0_15, %c0_16, %c0_17] : memref<18x18x16xbf16, #tpu.memory_space<vmem>>, vector<18x1x16xbf16>
    tpu.vector_store %arg7[%c0_15, %c0_16, %c0_17], %17 {strides = array<i32>} : memref<18x18x16xbf16, #tpu.memory_space<vmem>>, vector<18x1x16xbf16>,
    %cst_18 = arith.constant 0.000000e+00 : bf16
    %19 = vector.broadcast %cst_18 : bf16 to vector<18x1x16xbf16>
    %c0_19 = arith.constant 0 : index
    %c17_20 = arith.constant 17 : index
    %c0_21 = arith.constant 0 : index
    %20 = vector.load %arg7[%c0_19, %c17_20, %c0_21] : memref<18x18x16xbf16, #tpu.memory_space<vmem>>, vector<18x1x16xbf16>
    tpu.vector_store %arg7[%c0_19, %c17_20, %c0_21], %19 {strides = array<i32>} : memref<18x18x16xbf16, #tpu.memory_space<vmem>>, vector<18x1x16xbf16>,
    %21 = arith.truncf %12 : vector<16x16x16xf32> to vector<16x16x16xbf16>
    %c1 = arith.constant 1 : index
    %c1_22 = arith.constant 1 : index
    %c0_23 = arith.constant 0 : index
    %22 = vector.load %arg7[%c1, %c1_22, %c0_23] : memref<18x18x16xbf16, #tpu.memory_space<vmem>>, vector<16x16x16xbf16>
    tpu.vector_store %arg7[%c1, %c1_22, %c0_23], %21 {strides = array<i32>} : memref<18x18x16xbf16, #tpu.memory_space<vmem>>, vector<16x16x16xbf16>,
    %c0_24 = arith.constant 0 : index
    %c0_25 = arith.constant 0 : index
    %c0_26 = arith.constant 0 : index
    %23 = vector.load %arg7[%c0_24, %c0_25, %c0_26] : memref<18x18x16xbf16, #tpu.memory_space<vmem>>, vector<16x16x16xbf16>
    %24 = vector.shape_cast %23 : vector<16x16x16xbf16> to vector<256x16xbf16>
    %c0_27 = arith.constant 0 : index
    %c0_28 = arith.constant 0 : index
    %c0_29 = arith.constant 0 : index
    %25 = vector.load %arg4[%c0_27, %c0_28, %c0_29] : memref<9x16x16xbf16, #tpu.memory_space<vmem>>, vector<1x16x16xbf16>
    %26 = vector.shape_cast %25 : vector<1x16x16xbf16> to vector<16x16xbf16>
    %cst_30 = arith.constant dense<0.000000e+00> : vector<256x16xf32>
    %27 = tpu.matmul %24, %26, %cst_30 {dimension_numbers = #tpu.dot_dimension_numbers<[1], [0], [0], [1], [0, 0, 1, 1], [], []>} : vector<256x16xbf16>, vector<16x16xbf16>, vector<256x16xf32> -> vector<256x16xf32>
    %c0_31 = arith.constant 0 : index
    %c1_32 = arith.constant 1 : index
    %c0_33 = arith.constant 0 : index
    %28 = vector.load %arg7[%c0_31, %c1_32, %c0_33] : memref<18x18x16xbf16, #tpu.memory_space<vmem>>, vector<16x16x16xbf16>
    %29 = vector.shape_cast %28 : vector<16x16x16xbf16> to vector<256x16xbf16>
    %c1_34 = arith.constant 1 : index
    %c0_35 = arith.constant 0 : index
    %c0_36 = arith.constant 0 : index
    %30 = vector.load %arg4[%c1_34, %c0_35, %c0_36] : memref<9x16x16xbf16, #tpu.memory_space<vmem>>, vector<1x16x16xbf16>
    %31 = vector.shape_cast %30 : vector<1x16x16xbf16> to vector<16x16xbf16>
    %cst_37 = arith.constant dense<0.000000e+00> : vector<256x16xf32>
    %32 = tpu.matmul %29, %31, %cst_37 {dimension_numbers = #tpu.dot_dimension_numbers<[1], [0], [0], [1], [0, 0, 1, 1], [], []>} : vector<256x16xbf16>, vector<16x16xbf16>, vector<256x16xf32> -> vector<256x16xf32>
    %33 = arith.addf %27, %32 : vector<256x16xf32>
    %c0_38 = arith.constant 0 : index
    %c2 = arith.constant 2 : index
    %c0_39 = arith.constant 0 : index
    %34 = vector.load %arg7[%c0_38, %c2, %c0_39] : memref<18x18x16xbf16, #tpu.memory_space<vmem>>, vector<16x16x16xbf16>
    %35 = vector.shape_cast %34 : vector<16x16x16xbf16> to vector<256x16xbf16>
    %c2_40 = arith.constant 2 : index
    %c0_41 = arith.constant 0 : index
    %c0_42 = arith.constant 0 : index
    %36 = vector.load %arg4[%c2_40, %c0_41, %c0_42] : memref<9x16x16xbf16, #tpu.memory_space<vmem>>, vector<1x16x16xbf16>
    %37 = vector.shape_cast %36 : vector<1x16x16xbf16> to vector<16x16xbf16>
    %cst_43 = arith.constant dense<0.000000e+00> : vector<256x16xf32>
    %38 = tpu.matmul %35, %37, %cst_43 {dimension_numbers = #tpu.dot_dimension_numbers<[1], [0], [0], [1], [0, 0, 1, 1], [], []>} : vector<256x16xbf16>, vector<16x16xbf16>, vector<256x16xf32> -> vector<256x16xf32>
    %39 = arith.addf %33, %38 : vector<256x16xf32>
    %c1_44 = arith.constant 1 : index
    %c0_45 = arith.constant 0 : index
    %c0_46 = arith.constant 0 : index
    %40 = vector.load %arg7[%c1_44, %c0_45, %c0_46] : memref<18x18x16xbf16, #tpu.memory_space<vmem>>, vector<16x16x16xbf16>
    %41 = vector.shape_cast %40 : vector<16x16x16xbf16> to vector<256x16xbf16>
    %c3 = arith.constant 3 : index
    %c0_47 = arith.constant 0 : index
    %c0_48 = arith.constant 0 : index
    %42 = vector.load %arg4[%c3, %c0_47, %c0_48] : memref<9x16x16xbf16, #tpu.memory_space<vmem>>, vector<1x16x16xbf16>
    %43 = vector.shape_cast %42 : vector<1x16x16xbf16> to vector<16x16xbf16>
    %cst_49 = arith.constant dense<0.000000e+00> : vector<256x16xf32>
    %44 = tpu.matmul %41, %43, %cst_49 {dimension_numbers = #tpu.dot_dimension_numbers<[1], [0], [0], [1], [0, 0, 1, 1], [], []>} : vector<256x16xbf16>, vector<16x16xbf16>, vector<256x16xf32> -> vector<256x16xf32>
    %45 = arith.addf %39, %44 : vector<256x16xf32>
    %c1_50 = arith.constant 1 : index
    %c1_51 = arith.constant 1 : index
    %c0_52 = arith.constant 0 : index
    %46 = vector.load %arg7[%c1_50, %c1_51, %c0_52] : memref<18x18x16xbf16, #tpu.memory_space<vmem>>, vector<16x16x16xbf16>
    %47 = vector.shape_cast %46 : vector<16x16x16xbf16> to vector<256x16xbf16>
    %c4 = arith.constant 4 : index
    %c0_53 = arith.constant 0 : index
    %c0_54 = arith.constant 0 : index
    %48 = vector.load %arg4[%c4, %c0_53, %c0_54] : memref<9x16x16xbf16, #tpu.memory_space<vmem>>, vector<1x16x16xbf16>
    %49 = vector.shape_cast %48 : vector<1x16x16xbf16> to vector<16x16xbf16>
    %cst_55 = arith.constant dense<0.000000e+00> : vector<256x16xf32>
    %50 = tpu.matmul %47, %49, %cst_55 {dimension_numbers = #tpu.dot_dimension_numbers<[1], [0], [0], [1], [0, 0, 1, 1], [], []>} : vector<256x16xbf16>, vector<16x16xbf16>, vector<256x16xf32> -> vector<256x16xf32>
    %51 = arith.addf %45, %50 : vector<256x16xf32>
    %c1_56 = arith.constant 1 : index
    %c2_57 = arith.constant 2 : index
    %c0_58 = arith.constant 0 : index
    %52 = vector.load %arg7[%c1_56, %c2_57, %c0_58] : memref<18x18x16xbf16, #tpu.memory_space<vmem>>, vector<16x16x16xbf16>
    %53 = vector.shape_cast %52 : vector<16x16x16xbf16> to vector<256x16xbf16>
    %c5 = arith.constant 5 : index
    %c0_59 = arith.constant 0 : index
    %c0_60 = arith.constant 0 : index
    %54 = vector.load %arg4[%c5, %c0_59, %c0_60] : memref<9x16x16xbf16, #tpu.memory_space<vmem>>, vector<1x16x16xbf16>
    %55 = vector.shape_cast %54 : vector<1x16x16xbf16> to vector<16x16xbf16>
    %cst_61 = arith.constant dense<0.000000e+00> : vector<256x16xf32>
    %56 = tpu.matmul %53, %55, %cst_61 {dimension_numbers = #tpu.dot_dimension_numbers<[1], [0], [0], [1], [0, 0, 1, 1], [], []>} : vector<256x16xbf16>, vector<16x16xbf16>, vector<256x16xf32> -> vector<256x16xf32>
    %57 = arith.addf %51, %56 : vector<256x16xf32>
    %c2_62 = arith.constant 2 : index
    %c0_63 = arith.constant 0 : index
    %c0_64 = arith.constant 0 : index
    %58 = vector.load %arg7[%c2_62, %c0_63, %c0_64] : memref<18x18x16xbf16, #tpu.memory_space<vmem>>, vector<16x16x16xbf16>
    %59 = vector.shape_cast %58 : vector<16x16x16xbf16> to vector<256x16xbf16>
    %c6 = arith.constant 6 : index
    %c0_65 = arith.constant 0 : index
    %c0_66 = arith.constant 0 : index
    %60 = vector.load %arg4[%c6, %c0_65, %c0_66] : memref<9x16x16xbf16, #tpu.memory_space<vmem>>, vector<1x16x16xbf16>
    %61 = vector.shape_cast %60 : vector<1x16x16xbf16> to vector<16x16xbf16>
    %cst_67 = arith.constant dense<0.000000e+00> : vector<256x16xf32>
    %62 = tpu.matmul %59, %61, %cst_67 {dimension_numbers = #tpu.dot_dimension_numbers<[1], [0], [0], [1], [0, 0, 1, 1], [], []>} : vector<256x16xbf16>, vector<16x16xbf16>, vector<256x16xf32> -> vector<256x16xf32>
    %63 = arith.addf %57, %62 : vector<256x16xf32>
    %c2_68 = arith.constant 2 : index
    %c1_69 = arith.constant 1 : index
    %c0_70 = arith.constant 0 : index
    %64 = vector.load %arg7[%c2_68, %c1_69, %c0_70] : memref<18x18x16xbf16, #tpu.memory_space<vmem>>, vector<16x16x16xbf16>
    %65 = vector.shape_cast %64 : vector<16x16x16xbf16> to vector<256x16xbf16>
    %c7 = arith.constant 7 : index
    %c0_71 = arith.constant 0 : index
    %c0_72 = arith.constant 0 : index
    %66 = vector.load %arg4[%c7, %c0_71, %c0_72] : memref<9x16x16xbf16, #tpu.memory_space<vmem>>, vector<1x16x16xbf16>
    %67 = vector.shape_cast %66 : vector<1x16x16xbf16> to vector<16x16xbf16>
    %cst_73 = arith.constant dense<0.000000e+00> : vector<256x16xf32>
    %68 = tpu.matmul %65, %67, %cst_73 {dimension_numbers = #tpu.dot_dimension_numbers<[1], [0], [0], [1], [0, 0, 1, 1], [], []>} : vector<256x16xbf16>, vector<16x16xbf16>, vector<256x16xf32> -> vector<256x16xf32>
    %69 = arith.addf %63, %68 : vector<256x16xf32>
    %c2_74 = arith.constant 2 : index
    %c2_75 = arith.constant 2 : index
    %c0_76 = arith.constant 0 : index
    %70 = vector.load %arg7[%c2_74, %c2_75, %c0_76] : memref<18x18x16xbf16, #tpu.memory_space<vmem>>, vector<16x16x16xbf16>
    %71 = vector.shape_cast %70 : vector<16x16x16xbf16> to vector<256x16xbf16>
    %c8 = arith.constant 8 : index
    %c0_77 = arith.constant 0 : index
    %c0_78 = arith.constant 0 : index
    %72 = vector.load %arg4[%c8, %c0_77, %c0_78] : memref<9x16x16xbf16, #tpu.memory_space<vmem>>, vector<1x16x16xbf16>
    %73 = vector.shape_cast %72 : vector<1x16x16xbf16> to vector<16x16xbf16>
    %cst_79 = arith.constant dense<0.000000e+00> : vector<256x16xf32>
    %74 = tpu.matmul %71, %73, %cst_79 {dimension_numbers = #tpu.dot_dimension_numbers<[1], [0], [0], [1], [0, 0, 1, 1], [], []>} : vector<256x16xbf16>, vector<16x16xbf16>, vector<256x16xf32> -> vector<256x16xf32>
    %75 = arith.addf %69, %74 : vector<256x16xf32>
    %76 = vector.shape_cast %75 : vector<256x16xf32> to vector<1x16x16x16xf32>
    %77 = arith.truncf %76 : vector<1x16x16x16xf32> to vector<1x16x16x16xbf16>
    %c0_80 = arith.constant 0 : index
    %c0_81 = arith.constant 0 : index
    %c0_82 = arith.constant 0 : index
    %c0_83 = arith.constant 0 : index
    %78 = vector.load %arg5[%c0_80, %c0_81, %c0_82, %c0_83] : memref<1x16x16x16xbf16, #tpu.memory_space<vmem>>, vector<1x16x16x16xbf16>
    tpu.vector_store %arg5[%c0_80, %c0_81, %c0_82, %c0_83], %77 {strides = array<i32>} : memref<1x16x16x16xbf16, #tpu.memory_space<vmem>>, vector<1x16x16x16xbf16>,
    %cst_84 = arith.constant dense<0.000000e+00> : vector<16xf32>
    %79 = vector.multi_reduction <add>, %75, %cst_84 [0] : vector<256x16xf32> to vector<16xf32>
    %80 = vector.shape_cast %79 : vector<16xf32> to vector<1x16xf32>
    %81 = arith.mulf %75, %75 : vector<256x16xf32>
    %cst_85 = arith.constant dense<0.000000e+00> : vector<16xf32>
    %82 = vector.multi_reduction <add>, %81, %cst_85 [0] : vector<256x16xf32> to vector<16xf32>
    %83 = vector.shape_cast %82 : vector<16xf32> to vector<1x16xf32>
    %84 = tpu.concatenate %80, %83 in 0 : vector<1x16xf32>, vector<1x16xf32> -> vector<2x16xf32>
    %85 = vector.shape_cast %84 : vector<2x16xf32> to vector<1x2x16xf32>
    %c0_86 = arith.constant 0 : index
    %c0_87 = arith.constant 0 : index
    %c0_88 = arith.constant 0 : index
    %86 = vector.load %arg6[%c0_86, %c0_87, %c0_88] : memref<1x2x16xf32, #tpu.memory_space<vmem>>, vector<1x2x16xf32>
    tpu.vector_store %arg6[%c0_86, %c0_87, %c0_88], %85 {strides = array<i32>} : memref<1x2x16xf32, #tpu.memory_space<vmem>>, vector<1x2x16xf32>,
    return
  }
  func.func @transform_0(%arg0: i32) -> (i32, i32) {
    %c0_i32 = arith.constant 0 : i32
    %c0_i32_0 = arith.constant 0 : i32
    %c0_i32_1 = arith.constant 0 : i32
    return %c0_i32, %c0_i32_0 : i32, i32
  }
  func.func @transform_1(%arg0: i32) -> (i32, i32) {
    %c0_i32 = arith.constant 0 : i32
    %c0_i32_0 = arith.constant 0 : i32
    %c0_i32_1 = arith.constant 0 : i32
    return %c0_i32, %c0_i32_0 : i32, i32
  }
  func.func @transform_2(%arg0: i32) -> (i32, i32, i32, i32) {
    %c0_i32 = arith.constant 0 : i32
    %c0_i32_0 = arith.constant 0 : i32
    %c0_i32_1 = arith.constant 0 : i32
    %c0_i32_2 = arith.constant 0 : i32
    return %arg0, %c0_i32, %c0_i32_0, %c0_i32_1 : i32, i32, i32, i32
  }
  func.func @transform_3(%arg0: i32) -> (i32, i32, i32) {
    %c0_i32 = arith.constant 0 : i32
    %c0_i32_0 = arith.constant 0 : i32
    %c0_i32_1 = arith.constant 0 : i32
    %c0_i32_2 = arith.constant 0 : i32
    return %c0_i32, %c0_i32_0, %c0_i32_1 : i32, i32, i32
  }
  func.func @transform_4(%arg0: i32) -> (i32, i32, i32, i32) {
    %c0_i32 = arith.constant 0 : i32
    %c0_i32_0 = arith.constant 0 : i32
    %c0_i32_1 = arith.constant 0 : i32
    %c0_i32_2 = arith.constant 0 : i32
    return %arg0, %c0_i32, %c0_i32_0, %c0_i32_1 : i32, i32, i32, i32
  }
  func.func @transform_5(%arg0: i32) -> (i32, i32, i32) {
    %c0_i32 = arith.constant 0 : i32
    %c0_i32_0 = arith.constant 0 : i32
    %c0_i32_1 = arith.constant 0 : i32
    return %arg0, %c0_i32, %c0_i32_0 : i32, i32, i32
  }
}

module attributes {stable_mosaic.version = 11 : i64} {
  func.func @_bn_relu_conv1x1_kernel(%arg0: i32, %arg1: memref<1x16xf32, #tpu.memory_space<vmem>>, %arg2: memref<1x16xf32, #tpu.memory_space<vmem>>, %arg3: memref<128x16xbf16, #tpu.memory_space<vmem>>, %arg4: memref<16x64xbf16, #tpu.memory_space<vmem>>, %arg5: memref<128x64xbf16, #tpu.memory_space<vmem>>, %arg6: memref<1x2x64xf32, #tpu.memory_space<vmem>>) attributes {dimension_semantics = [#tpu.dimension_semantics<parallel>], iteration_bounds = array<i64: 4>, scalar_prefetch = 0 : i64, scratch_operands = 0 : i64, tpu.core_type = #tpu.core_type<tc>, window_params = [{pipeline_mode = #tpu.pipeline_mode<synchronous>, transform_indices = @transform_0, window_bounds = array<i64: 1, 16>}, {pipeline_mode = #tpu.pipeline_mode<synchronous>, transform_indices = @transform_1, window_bounds = array<i64: 1, 16>}, {transform_indices = @transform_2, window_bounds = array<i64: 128, 16>}, {pipeline_mode = #tpu.pipeline_mode<synchronous>, transform_indices = @transform_3, window_bounds = array<i64: 16, 64>}, {transform_indices = @transform_4, window_bounds = array<i64: 128, 64>}, {transform_indices = @transform_5, window_bounds = array<i64: 1, 2, 64>}]} {
    %c0 = arith.constant 0 : index
    %c0_0 = arith.constant 0 : index
    %0 = vector.load %arg3[%c0, %c0_0] : memref<128x16xbf16, #tpu.memory_space<vmem>>, vector<128x16xbf16>
    %c0_1 = arith.constant 0 : index
    %c0_2 = arith.constant 0 : index
    %1 = vector.load %arg1[%c0_1, %c0_2] : memref<1x16xf32, #tpu.memory_space<vmem>>, vector<1x16xf32>
    %2 = arith.extf %0 : vector<128x16xbf16> to vector<128x16xf32>
    %3 = vector.broadcast %1 : vector<1x16xf32> to vector<128x16xf32>
    %4 = arith.mulf %2, %3 : vector<128x16xf32>
    %c0_3 = arith.constant 0 : index
    %c0_4 = arith.constant 0 : index
    %5 = vector.load %arg2[%c0_3, %c0_4] : memref<1x16xf32, #tpu.memory_space<vmem>>, vector<1x16xf32>
    %6 = vector.broadcast %5 : vector<1x16xf32> to vector<128x16xf32>
    %7 = arith.addf %4, %6 : vector<128x16xf32>
    %cst = arith.constant 0.000000e+00 : f32
    %8 = vector.broadcast %cst : f32 to vector<128x16xf32>
    %9 = arith.maximumf %7, %8 : vector<128x16xf32>
    %10 = arith.truncf %9 : vector<128x16xf32> to vector<128x16xbf16>
    %c0_5 = arith.constant 0 : index
    %c0_6 = arith.constant 0 : index
    %11 = vector.load %arg4[%c0_5, %c0_6] : memref<16x64xbf16, #tpu.memory_space<vmem>>, vector<16x64xbf16>
    %cst_7 = arith.constant dense<0.000000e+00> : vector<128x64xf32>
    %12 = tpu.matmul %10, %11, %cst_7 {dimension_numbers = #tpu.dot_dimension_numbers<[1], [0], [0], [1], [0, 0, 1, 1], [], []>} : vector<128x16xbf16>, vector<16x64xbf16>, vector<128x64xf32> -> vector<128x64xf32>
    %13 = arith.truncf %12 : vector<128x64xf32> to vector<128x64xbf16>
    %c0_8 = arith.constant 0 : index
    %c0_9 = arith.constant 0 : index
    %14 = vector.load %arg5[%c0_8, %c0_9] : memref<128x64xbf16, #tpu.memory_space<vmem>>, vector<128x64xbf16>
    tpu.vector_store %arg5[%c0_8, %c0_9], %13 {strides = array<i32>} : memref<128x64xbf16, #tpu.memory_space<vmem>>, vector<128x64xbf16>,
    %cst_10 = arith.constant dense<0.000000e+00> : vector<64xf32>
    %15 = vector.multi_reduction <add>, %12, %cst_10 [0] : vector<128x64xf32> to vector<64xf32>
    %16 = vector.shape_cast %15 : vector<64xf32> to vector<1x64xf32>
    %17 = arith.mulf %12, %12 : vector<128x64xf32>
    %cst_11 = arith.constant dense<0.000000e+00> : vector<64xf32>
    %18 = vector.multi_reduction <add>, %17, %cst_11 [0] : vector<128x64xf32> to vector<64xf32>
    %19 = vector.shape_cast %18 : vector<64xf32> to vector<1x64xf32>
    %20 = tpu.concatenate %16, %19 in 0 : vector<1x64xf32>, vector<1x64xf32> -> vector<2x64xf32>
    %21 = vector.shape_cast %20 : vector<2x64xf32> to vector<1x2x64xf32>
    %c0_12 = arith.constant 0 : index
    %c0_13 = arith.constant 0 : index
    %c0_14 = arith.constant 0 : index
    %22 = vector.load %arg6[%c0_12, %c0_13, %c0_14] : memref<1x2x64xf32, #tpu.memory_space<vmem>>, vector<1x2x64xf32>
    tpu.vector_store %arg6[%c0_12, %c0_13, %c0_14], %21 {strides = array<i32>} : memref<1x2x64xf32, #tpu.memory_space<vmem>>, vector<1x2x64xf32>,
    return
  }
  func.func @transform_0(%arg0: i32) -> (i32, i32) {
    %c0_i32 = arith.constant 0 : i32
    %c0_i32_0 = arith.constant 0 : i32
    %c0_i32_1 = arith.constant 0 : i32
    return %c0_i32, %c0_i32_0 : i32, i32
  }
  func.func @transform_1(%arg0: i32) -> (i32, i32) {
    %c0_i32 = arith.constant 0 : i32
    %c0_i32_0 = arith.constant 0 : i32
    %c0_i32_1 = arith.constant 0 : i32
    return %c0_i32, %c0_i32_0 : i32, i32
  }
  func.func @transform_2(%arg0: i32) -> (i32, i32) {
    %c0_i32 = arith.constant 0 : i32
    %c0_i32_0 = arith.constant 0 : i32
    return %arg0, %c0_i32 : i32, i32
  }
  func.func @transform_3(%arg0: i32) -> (i32, i32) {
    %c0_i32 = arith.constant 0 : i32
    %c0_i32_0 = arith.constant 0 : i32
    %c0_i32_1 = arith.constant 0 : i32
    return %c0_i32, %c0_i32_0 : i32, i32
  }
  func.func @transform_4(%arg0: i32) -> (i32, i32) {
    %c0_i32 = arith.constant 0 : i32
    %c0_i32_0 = arith.constant 0 : i32
    return %arg0, %c0_i32 : i32, i32
  }
  func.func @transform_5(%arg0: i32) -> (i32, i32, i32) {
    %c0_i32 = arith.constant 0 : i32
    %c0_i32_0 = arith.constant 0 : i32
    %c0_i32_1 = arith.constant 0 : i32
    return %arg0, %c0_i32, %c0_i32_0 : i32, i32, i32
  }
}

module attributes {stable_mosaic.version = 11 : i64} {
  func.func @_bn_residual_relu_kernel(%arg0: i32, %arg1: memref<1x64xf32, #tpu.memory_space<vmem>>, %arg2: memref<1x64xf32, #tpu.memory_space<vmem>>, %arg3: memref<128x64xbf16, #tpu.memory_space<vmem>>, %arg4: memref<128x64xf32, #tpu.memory_space<vmem>>, %arg5: memref<128x64xf32, #tpu.memory_space<vmem>>) attributes {dimension_semantics = [#tpu.dimension_semantics<parallel>], iteration_bounds = array<i64: 4>, scalar_prefetch = 0 : i64, scratch_operands = 0 : i64, tpu.core_type = #tpu.core_type<tc>, window_params = [{pipeline_mode = #tpu.pipeline_mode<synchronous>, transform_indices = @transform_0, window_bounds = array<i64: 1, 64>}, {pipeline_mode = #tpu.pipeline_mode<synchronous>, transform_indices = @transform_1, window_bounds = array<i64: 1, 64>}, {transform_indices = @transform_2, window_bounds = array<i64: 128, 64>}, {transform_indices = @transform_3, window_bounds = array<i64: 128, 64>}, {transform_indices = @transform_4, window_bounds = array<i64: 128, 64>}]} {
    %c0 = arith.constant 0 : index
    %c0_0 = arith.constant 0 : index
    %0 = vector.load %arg3[%c0, %c0_0] : memref<128x64xbf16, #tpu.memory_space<vmem>>, vector<128x64xbf16>
    %c0_1 = arith.constant 0 : index
    %c0_2 = arith.constant 0 : index
    %1 = vector.load %arg1[%c0_1, %c0_2] : memref<1x64xf32, #tpu.memory_space<vmem>>, vector<1x64xf32>
    %2 = arith.extf %0 : vector<128x64xbf16> to vector<128x64xf32>
    %3 = vector.broadcast %1 : vector<1x64xf32> to vector<128x64xf32>
    %4 = arith.mulf %2, %3 : vector<128x64xf32>
    %c0_3 = arith.constant 0 : index
    %c0_4 = arith.constant 0 : index
    %5 = vector.load %arg2[%c0_3, %c0_4] : memref<1x64xf32, #tpu.memory_space<vmem>>, vector<1x64xf32>
    %6 = vector.broadcast %5 : vector<1x64xf32> to vector<128x64xf32>
    %7 = arith.addf %4, %6 : vector<128x64xf32>
    %c0_5 = arith.constant 0 : index
    %c0_6 = arith.constant 0 : index
    %8 = vector.load %arg4[%c0_5, %c0_6] : memref<128x64xf32, #tpu.memory_space<vmem>>, vector<128x64xf32>
    %9 = arith.addf %7, %8 : vector<128x64xf32>
    %cst = arith.constant 0.000000e+00 : f32
    %10 = vector.broadcast %cst : f32 to vector<128x64xf32>
    %11 = arith.maximumf %9, %10 : vector<128x64xf32>
    %c0_7 = arith.constant 0 : index
    %c0_8 = arith.constant 0 : index
    %12 = vector.load %arg5[%c0_7, %c0_8] : memref<128x64xf32, #tpu.memory_space<vmem>>, vector<128x64xf32>
    tpu.vector_store %arg5[%c0_7, %c0_8], %11 {strides = array<i32>} : memref<128x64xf32, #tpu.memory_space<vmem>>, vector<128x64xf32>,
    return
  }
  func.func @transform_0(%arg0: i32) -> (i32, i32) {
    %c0_i32 = arith.constant 0 : i32
    %c0_i32_0 = arith.constant 0 : i32
    %c0_i32_1 = arith.constant 0 : i32
    return %c0_i32, %c0_i32_0 : i32, i32
  }
  func.func @transform_1(%arg0: i32) -> (i32, i32) {
    %c0_i32 = arith.constant 0 : i32
    %c0_i32_0 = arith.constant 0 : i32
    %c0_i32_1 = arith.constant 0 : i32
    return %c0_i32, %c0_i32_0 : i32, i32
  }
  func.func @transform_2(%arg0: i32) -> (i32, i32) {
    %c0_i32 = arith.constant 0 : i32
    %c0_i32_0 = arith.constant 0 : i32
    return %arg0, %c0_i32 : i32, i32
  }
  func.func @transform_3(%arg0: i32) -> (i32, i32) {
    %c0_i32 = arith.constant 0 : i32
    %c0_i32_0 = arith.constant 0 : i32
    return %arg0, %c0_i32 : i32, i32
  }
  func.func @transform_4(%arg0: i32) -> (i32, i32) {
    %c0_i32 = arith.constant 0 : i32
    %c0_i32_0 = arith.constant 0 : i32
    return %arg0, %c0_i32 : i32, i32
  }
}

</mosaic_0001>

<llo_original>
// kernel: basic_block_forward.7
$region0: #{basic_block_forward.7}
  #allocation0 [shape = 'u32[]', space=smem, size = 0x4, offset = 0x4, fixed_abs, tag = 'smem constant byte address 0x4 - core index']
  #allocation1 [shape = 'u32[72,128]{1,0:T(1,128)}', space=vmem, size = 0x9000, scoped, tag = 'internal scratch']
  %s0 = inlined_call_operand.vmem [shape: f32[1,64], index: 0, kind: input, shape index: {}]
  %s1 = inlined_call_operand.vmem [shape: f32[1,64], index: 1, kind: input, shape index: {}]
  %s2 = inlined_call_operand.vmem [shape: bf16[512,64], index: 2, kind: input, shape index: {}]
  %s3 = inlined_call_operand.vmem [shape: f32[512,64], index: 3, kind: input, shape index: {}, may-alias: {3,4}]
  %s4 = inlined_call_operand.vmem [shape: f32[512,64], index: 4, kind: output, shape index: {}, may-alias: {3,4}]
  %s5 = sld [smem:[#allocation0]]
  $region49: #{basic_block_forward.7} parent=0
    _
  %s7 = ssub.s32 1, %s5
  %s8 = scalar_select 0, %s7, %s5
  loop: start=0, step=1, limit=6
  $region2: #{basic_block_forward.7} parent=0 // loop_pre_header
    _
  $region3: #{basic_block_forward.7} parent=0 // loop_header
    %s10 = sphi 0, %s14
    %p11 = scmp.ge.s32.totalorder %s10, 6
    %s18 = sphi 0, %s18
    %s20 = sphi 0, %s18
    %s21 = sphi 0, %s20
    %s35 = sphi 0, %s21
    %s39 = sphi 0, %s39
    %s41 = sphi 0, %s39
    %s42 = sphi 0, %s41
    %s56 = sphi 0, %s42
    %s62 = sphi 0, %s64
    %s65 = sphi 0, %s62
    %s66 = sphi 0, %s65
    %s82 = sphi 0, %s66
    %s88 = sphi 0, %s90
    %s91 = sphi 0, %s88
    %s92 = sphi 0, %s91
    %s108 = sphi 0, %s92
    %s114 = sphi 0, %s116
    %s117 = sphi 0, %s114
    %s118 = sphi 0, %s117
    %s134 = sphi 0, %s118
  $region4: #{basic_block_forward.7} parent=0 // loop_header_branch
    %13 = sbr.rel (%p11) target = $region8
  $region5: #{basic_block_forward.7} parent=0 // loop_body
    %s15 = ssub.s32 %s10, 1
    %s16 = ssub.s32 %s10, 2
    %s17 = sadd.s32 %s10, 1
    %s19 = sadd.s32 %s18, 1
    %p22 = scmp.eq.s32.totalorder %s10, 3
    %p23 = scmp.ne.s32.totalorder %s18, %s20
    %p24 = scmp.eq.s32.totalorder %s10, 0
    %p25 = por %p23, %p24
    %p26 = scmp.ne.s32.totalorder %s18, %s20
    %p27 = scmp.eq.s32.totalorder %s15, 3
    %p28 = por %p26, %p27
    %p29 = scmp.ne.s32.totalorder %s20, %s21
    %p30 = scmp.eq.s32.totalorder %s15, 0
    %p31 = por %p29, %p30
    %p32 = scmp.ne.s32.totalorder %s20, %s21
    %p33 = scmp.eq.s32.totalorder %s16, 3
    %p34 = por %p32, %p33
    %p36 = scmp.ne.s32.totalorder %s21, %s35
    %p37 = scmp.eq.s32.totalorder %s16, 0
    %p38 = por %p36, %p37
    %s40 = sadd.s32 %s39, 1
    %p43 = scmp.eq.s32.totalorder %s10, 3
    %p44 = scmp.ne.s32.totalorder %s39, %s41
    %p45 = scmp.eq.s32.totalorder %s10, 0
    %p46 = por %p44, %p45
    %p47 = scmp.ne.s32.totalorder %s39, %s41
    %p48 = scmp.eq.s32.totalorder %s15, 3
    %p49 = por %p47, %p48
    %p50 = scmp.ne.s32.totalorder %s41, %s42
    %p51 = scmp.eq.s32.totalorder %s15, 0
    %p52 = por %p50, %p51
    %p53 = scmp.ne.s32.totalorder %s41, %s42
    %p54 = scmp.eq.s32.totalorder %s16, 3
    %p55 = por %p53, %p54
    %p57 = scmp.ne.s32.totalorder %s42, %s56
    %p58 = scmp.eq.s32.totalorder %s16, 0
    %p59 = por %p57, %p58
    %s60 = ssub.s32 %s10, %s17
    %p61 = scmp.eq.s32.totalorder %s60, 0
    %s63 = sadd.s32 %s62, 1
    %s64 = scalar_select %p61, %s62, %s63
    %p67 = pneg %p61
    %p68 = scmp.eq.s32.totalorder %s10, 3
    %p69 = por %p67, %p68
    %p70 = scmp.ne.s32.totalorder %s62, %s65
    %p71 = scmp.eq.s32.totalorder %s10, 0
    %p72 = por %p70, %p71
    %p73 = scmp.ne.s32.totalorder %s62, %s65
    %p74 = scmp.eq.s32.totalorder %s15, 3
    %p75 = por %p73, %p74
    %p76 = scmp.ne.s32.totalorder %s65, %s66
    %p77 = scmp.eq.s32.totalorder %s15, 0
    %p78 = por %p76, %p77
    %p79 = scmp.ne.s32.totalorder %s65, %s66
    %p80 = scmp.eq.s32.totalorder %s16, 3
    %p81 = por %p79, %p80
    %p83 = scmp.ne.s32.totalorder %s66, %s82
    %p84 = scmp.eq.s32.totalorder %s16, 0
    %p85 = por %p83, %p84
    %s86 = ssub.s32 %s10, %s17
    %p87 = scmp.eq.s32.totalorder %s86, 0
    %s89 = sadd.s32 %s88, 1
    %s90 = scalar_select %p87, %s88, %s89
    %p93 = pneg %p87
    %p94 = scmp.eq.s32.totalorder %s10, 3
    %p95 = por %p93, %p94
    %p96 = scmp.ne.s32.totalorder %s88, %s91
    %p97 = scmp.eq.s32.totalorder %s10, 0
    %p98 = por %p96, %p97
    %p99 = scmp.ne.s32.totalorder %s88, %s91
    %p100 = scmp.eq.s32.totalorder %s15, 3
    %p101 = por %p99, %p100
    %p102 = scmp.ne.s32.totalorder %s91, %s92
    %p103 = scmp.eq.s32.totalorder %s15, 0
    %p104 = por %p102, %p103
    %p105 = scmp.ne.s32.totalorder %s91, %s92
    %p106 = scmp.eq.s32.totalorder %s16, 3
    %p107 = por %p105, %p106
    %p109 = scmp.ne.s32.totalorder %s92, %s108
    %p110 = scmp.eq.s32.totalorder %s16, 0
    %p111 = por %p109, %p110
    %s112 = ssub.s32 %s10, %s17
    %p113 = scmp.eq.s32.totalorder %s112, 0
    %s115 = sadd.s32 %s114, 1
    %s116 = scalar_select %p113, %s114, %s115
    %p119 = pneg %p113
    %p120 = scmp.eq.s32.totalorder %s10, 3
    %p121 = por %p119, %p120
    %p122 = scmp.ne.s32.totalorder %s114, %s117
    %p123 = scmp.eq.s32.totalorder %s10, 0
    %p124 = por %p122, %p123
    %p125 = scmp.ne.s32.totalorder %s114, %s117
    %p126 = scmp.eq.s32.totalorder %s15, 3
    %p127 = por %p125, %p126
    %p128 = scmp.ne.s32.totalorder %s117, %s118
    %p129 = scmp.eq.s32.totalorder %s15, 0
    %p130 = por %p128, %p129
    %p131 = scmp.ne.s32.totalorder %s117, %s118
    %p132 = scmp.eq.s32.totalorder %s16, 3
    %p133 = por %p131, %p132
    %p135 = scmp.ne.s32.totalorder %s118, %s134
    %p136 = scmp.eq.s32.totalorder %s16, 0
    %p137 = por %p135, %p136
    %p138 = scmp.le.s32.totalorder 1, %s10
    %p139 = scmp.lt.s32.totalorder %s10, 5
    %p140 = pnand %p138, %p139
    %p141 = pneg %p140
    // Predicated region
    $region9: #{basic_block_forward.7} parent=5 // pred_check
      _
    $region10: #{basic_block_forward.7} parent=5 // pred_check_branch
      %143 = sbr.rel (%p140) target = $region12
    $region11: #{basic_block_forward.7} parent=5 // pred_region
      %s144 = ssub.s32 %s10, 1
      // Predicated region
      $region13: #{basic_block_forward.7} parent=11 // pred_check
        %p145 = pneg %p31
      $region14: #{basic_block_forward.7} parent=11 // pred_check_branch
        %147 = sbr.rel (%p145) target = $region16
      $region15: #{basic_block_forward.7} parent=11 // pred_region
        _
      $region16: #{basic_block_forward.7} parent=11 // pred_fallthru
        _
      // Predicated region
      $region17: #{basic_block_forward.7} parent=11 // pred_check
        %p148 = pneg %p52
      $region18: #{basic_block_forward.7} parent=11 // pred_check_branch
        %150 = sbr.rel (%p148) target = $region20
      $region19: #{basic_block_forward.7} parent=11 // pred_region
        _
      $region20: #{basic_block_forward.7} parent=11 // pred_fallthru
        _
    $region12: #{basic_block_forward.7} parent=5 // pred_fallthru
      _
    %p151 = scmp.lt.s32.totalorder %s10, 4
    // Predicated region
    $region21: #{basic_block_forward.7} parent=5 // pred_check
      %p152 = pneg %p151
    $region22: #{basic_block_forward.7} parent=5 // pred_check_branch
      %154 = sbr.rel (%p152) target = $region24
    $region23: #{basic_block_forward.7} parent=5 // pred_region
      // Predicated region
      $region25: #{basic_block_forward.7} parent=23 // pred_check
        %p155 = pneg %p72
      $region26: #{basic_block_forward.7} parent=23 // pred_check_branch
        %157 = sbr.rel (%p155) target = $region28
      $region27: #{basic_block_forward.7} parent=23 // pred_region
        %s158 = smul.u32 16, %s10
        %p159 = scmp.lt.s32.totalorder %s158, 63
        %s160 = scalar_select %p159, %s158, 63
        %s161 = smul.addr %s160, 4
        %s162 = scalar_lea.vmem %s2, %s161
        %s163 = smul.u32 16, %s10
      $region28: #{basic_block_forward.7} parent=23 // pred_fallthru
        _
      // Predicated region
      $region29: #{basic_block_forward.7} parent=23 // pred_check
        %p164 = pneg %p98
      $region30: #{basic_block_forward.7} parent=23 // pred_check_branch
        %166 = sbr.rel (%p164) target = $region32
      $region31: #{basic_block_forward.7} parent=23 // pred_region
        %s167 = smul.u32 16, %s10
        %p168 = scmp.lt.s32.totalorder %s167, 63
        %s169 = scalar_select %p168, %s167, 63
        %s170 = smul.addr %s169, 8
        %s171 = scalar_lea.vmem %s3, %s170
        %s172 = smul.u32 16, %s10
      $region32: #{basic_block_forward.7} parent=23 // pred_fallthru
        _
    $region24: #{basic_block_forward.7} parent=5 // pred_fallthru
      _
    %p173 = scmp.le.s32.totalorder 1, %s10
    %p174 = scmp.lt.s32.totalorder %s10, 5
    %p175 = pnand %p173, %p174
    %p176 = pneg %p175
    // Predicated region
    $region33: #{basic_block_forward.7} parent=5 // pred_check
      _
    $region34: #{basic_block_forward.7} parent=5 // pred_check_branch
      %178 = sbr.rel (%p175) target = $region36
    $region35: #{basic_block_forward.7} parent=5 // pred_region
      %s179 = ssub.s32 %s10, 1
      %p180 = pneg %p31
      %p181 = pneg %p28
      %p182 = pneg %p52
      %p183 = pneg %p49
      %s184 = smul.u32 16, %s15
      %p185 = scmp.lt.s32.totalorder %s184, 63
      %s186 = scalar_select %p185, %s184, 63
      %s187 = smul.addr %s186, 4
      %s188 = scalar_lea.vmem %s2, %s187
      %p189 = pneg %p78
      %p190 = pneg %p75
      %s191 = smul.u32 16, %s15
      %p192 = scmp.lt.s32.totalorder %s191, 63
      %s193 = scalar_select %p192, %s191, 63
      %s194 = smul.addr %s193, 8
      %s195 = scalar_lea.vmem %s3, %s194
      %p196 = pneg %p104
      %p197 = pneg %p101
      %p198 = pneg %p130
      %p199 = pneg %p127
      %s200 = smul.u32 16, %s15
      %p201 = scmp.lt.s32.totalorder %s200, 63
      %s202 = scalar_select %p201, %s200, 63
      %s203 = smul.addr %s202, 8
      %s204 = scalar_lea.vmem %s4, %s203
      %s205 = smul.u32 16, %s15
      %p206 = scmp.lt.s32.totalorder %s205, 63
      %s207 = scalar_select %p206, %s205, 63
      %s208 = smul.addr %s207, 4
      %s209 = scalar_lea.vmem %s2, %s208
      %s210 = smul.u32 16, %s15
      %s211 = smul.u32 16, %s15
      %p212 = scmp.lt.s32.totalorder %s211, 63
      %s213 = scalar_select %p212, %s211, 63
      %s214 = smul.addr %s213, 8
      %s215 = scalar_lea.vmem %s3, %s214
      %s216 = smul.u32 16, %s15
      %s217 = smul.u32 16, %s15
      %p218 = scmp.lt.s32.totalorder %s217, 63
      %s219 = scalar_select %p218, %s217, 63
      %s220 = smul.addr %s219, 8
      %s221 = scalar_lea.vmem %s4, %s220
      %s222 = smul.u32 16, %s15
      %v223 = vld [vmem:[%s209] sm:$0xf]
      %v224 = vld [vmem:[%s209 + $0x4] sm:$0xf]
      %v225 = vld [vmem:[%s209 + $0x8] sm:$0xf]
      %v226 = vld [vmem:[%s209 + $0xc] sm:$0xf]
      %v227 = vld [vmem:[%s209 + $0x10] sm:$0xf]
      %v228 = vld [vmem:[%s209 + $0x14] sm:$0xf]
      %v229 = vld [vmem:[%s209 + $0x18] sm:$0xf]
      %v230 = vld [vmem:[%s209 + $0x1c] sm:$0xf]
      %v231 = vld [vmem:[%s209 + $0x20] sm:$0xf]
      %v232 = vld [vmem:[%s209 + $0x24] sm:$0xf]
      %v233 = vld [vmem:[%s209 + $0x28] sm:$0xf]
      %v234 = vld [vmem:[%s209 + $0x2c] sm:$0xf]
      %v235 = vld [vmem:[%s209 + $0x30] sm:$0xf]
      %v236 = vld [vmem:[%s209 + $0x34] sm:$0xf]
      %v237 = vld [vmem:[%s209 + $0x38] sm:$0xf]
      %v238 = vld [vmem:[%s209 + $0x3c] sm:$0xf]
      %v239 = vld [vmem:[%s0] sm:$0x1]
      %v240 = vunpack.c.l.bf16 %v223
      %v241 = vunpack.c.l.bf16 %v224
      %v242 = vunpack.c.l.bf16 %v225
      %v243 = vunpack.c.l.bf16 %v226
      %v244 = vunpack.c.l.bf16 %v227
      %v245 = vunpack.c.l.bf16 %v228
      %v246 = vunpack.c.l.bf16 %v229
      %v247 = vunpack.c.l.bf16 %v230
      %v248 = vunpack.c.l.bf16 %v231
      %v249 = vunpack.c.l.bf16 %v232
      %v250 = vunpack.c.l.bf16 %v233
      %v251 = vunpack.c.l.bf16 %v234
      %v252 = vunpack.c.l.bf16 %v235
      %v253 = vunpack.c.l.bf16 %v236
      %v254 = vunpack.c.l.bf16 %v237
      %v255 = vunpack.c.l.bf16 %v238
      %v257 = vperm.slane %v239, 0
      %v259 = vmul.f32 %v240, %v257
      %v260 = vmul.f32 %v241, %v257
      %v261 = vmul.f32 %v242, %v257
      %v262 = vmul.f32 %v243, %v257
      %v263 = vmul.f32 %v244, %v257
      %v264 = vmul.f32 %v245, %v257
      %v265 = vmul.f32 %v246, %v257
      %v266 = vmul.f32 %v247, %v257
      %v267 = vmul.f32 %v248, %v257
      %v268 = vmul.f32 %v249, %v257
      %v269 = vmul.f32 %v250, %v257
      %v270 = vmul.f32 %v251, %v257
      %v271 = vmul.f32 %v252, %v257
      %v272 = vmul.f32 %v253, %v257
      %v273 = vmul.f32 %v254, %v257
      %v274 = vmul.f32 %v255, %v257
      %v275 = vld [vmem:[%s1] sm:$0x1]
      %v277 = vperm.slane %v275, 0
      %v279 = vadd.f32 %v259, %v277
      %v280 = vadd.f32 %v260, %v277
      %v281 = vadd.f32 %v261, %v277
      %v282 = vadd.f32 %v262, %v277
      %v283 = vadd.f32 %v263, %v277
      %v284 = vadd.f32 %v264, %v277
      %v285 = vadd.f32 %v265, %v277
      %v286 = vadd.f32 %v266, %v277
      %v287 = vadd.f32 %v267, %v277
      %v288 = vadd.f32 %v268, %v277
      %v289 = vadd.f32 %v269, %v277
      %v290 = vadd.f32 %v270, %v277
      %v291 = vadd.f32 %v271, %v277
      %v292 = vadd.f32 %v272, %v277
      %v293 = vadd.f32 %v273, %v277
      %v294 = vadd.f32 %v274, %v277
      %v295 = vld [vmem:[%s215] sm:$0xff]
      %v296 = vld [vmem:[%s215 + $0x8] sm:$0xff]
      %v297 = vld [vmem:[%s215 + $0x10] sm:$0xff]
      %v298 = vld [vmem:[%s215 + $0x18] sm:$0xff]
      %v299 = vld [vmem:[%s215 + $0x20] sm:$0xff]
      %v300 = vld [vmem:[%s215 + $0x28] sm:$0xff]
      %v301 = vld [vmem:[%s215 + $0x30] sm:$0xff]
      %v302 = vld [vmem:[%s215 + $0x38] sm:$0xff]
      %v303 = vld [vmem:[%s215 + $0x40] sm:$0xff]
      %v304 = vld [vmem:[%s215 + $0x48] sm:$0xff]
      %v305 = vld [vmem:[%s215 + $0x50] sm:$0xff]
      %v306 = vld [vmem:[%s215 + $0x58] sm:$0xff]
      %v307 = vld [vmem:[%s215 + $0x60] sm:$0xff]
      %v308 = vld [vmem:[%s215 + $0x68] sm:$0xff]
      %v309 = vld [vmem:[%s215 + $0x70] sm:$0xff]
      %v310 = vld [vmem:[%s215 + $0x78] sm:$0xff]
      %v311 = vadd.f32 %v279, %v295
      %v312 = vadd.f32 %v280, %v296
      %v313 = vadd.f32 %v281, %v297
      %v314 = vadd.f32 %v282, %v298
      %v315 = vadd.f32 %v283, %v299
      %v316 = vadd.f32 %v284, %v300
      %v317 = vadd.f32 %v285, %v301
      %v318 = vadd.f32 %v286, %v302
      %v319 = vadd.f32 %v287, %v303
      %v320 = vadd.f32 %v288, %v304
      %v321 = vadd.f32 %v289, %v305
      %v322 = vadd.f32 %v290, %v306
      %v323 = vadd.f32 %v291, %v307
      %v324 = vadd.f32 %v292, %v308
      %v325 = vadd.f32 %v293, %v309
      %v326 = vadd.f32 %v294, %v310
      %v327 = vmax.f32 %v311, 0.0
      %v328 = vmax.f32 %v312, 0.0
      %v329 = vmax.f32 %v313, 0.0
      %v330 = vmax.f32 %v314, 0.0
      %v331 = vmax.f32 %v315, 0.0
      %v332 = vmax.f32 %v316, 0.0
      %v333 = vmax.f32 %v317, 0.0
      %v334 = vmax.f32 %v318, 0.0
      %v335 = vmax.f32 %v319, 0.0
      %v336 = vmax.f32 %v320, 0.0
      %v337 = vmax.f32 %v321, 0.0
      %v338 = vmax.f32 %v322, 0.0
      %v339 = vmax.f32 %v323, 0.0
      %v340 = vmax.f32 %v324, 0.0
      %v341 = vmax.f32 %v325, 0.0
      %v342 = vmax.f32 %v326, 0.0
      %vm343 = vcmask 523264
      %344 = vst.msk [vmem:[%s221] sm:$0xff] %vm343, %v327
      %345 = vst.msk [vmem:[%s221 + $0x8] sm:$0xff] %vm343, %v328
      %346 = vst.msk [vmem:[%s221 + $0x10] sm:$0xff] %vm343, %v329
      %347 = vst.msk [vmem:[%s221 + $0x18] sm:$0xff] %vm343, %v330
      %348 = vst.msk [vmem:[%s221 + $0x20] sm:$0xff] %vm343, %v331
      %349 = vst.msk [vmem:[%s221 + $0x28] sm:$0xff] %vm343, %v332
      %350 = vst.msk [vmem:[%s221 + $0x30] sm:$0xff] %vm343, %v333
      %351 = vst.msk [vmem:[%s221 + $0x38] sm:$0xff] %vm343, %v334
      %352 = vst.msk [vmem:[%s221 + $0x40] sm:$0xff] %vm343, %v335
      %353 = vst.msk [vmem:[%s221 + $0x48] sm:$0xff] %vm343, %v336
      %354 = vst.msk [vmem:[%s221 + $0x50] sm:$0xff] %vm343, %v337
      %355 = vst.msk [vmem:[%s221 + $0x58] sm:$0xff] %vm343, %v338
      %356 = vst.msk [vmem:[%s221 + $0x60] sm:$0xff] %vm343, %v339
      %357 = vst.msk [vmem:[%s221 + $0x68] sm:$0xff] %vm343, %v340
      %358 = vst.msk [vmem:[%s221 + $0x70] sm:$0xff] %vm343, %v341
      %359 = vst.msk [vmem:[%s221 + $0x78] sm:$0xff] %vm343, %v342
      %s360 = smul.u32 16, %s15
      %p361 = scmp.lt.s32.totalorder %s360, 63
      %s362 = scalar_select %p361, %s360, 63
      %s363 = smul.addr %s362, 8
      %s364 = scalar_lea.vmem %s4, %s363
      // Predicated region
      $region37: #{basic_block_forward.7} parent=35 // pred_check
        %p365 = pneg %p127
      $region38: #{basic_block_forward.7} parent=35 // pred_check_branch
        %367 = sbr.rel (%p365) target = $region40
      $region39: #{basic_block_forward.7} parent=35 // pred_region
        %s368 = smul.u32 16, %s15
      $region40: #{basic_block_forward.7} parent=35 // pred_fallthru
        _
    $region36: #{basic_block_forward.7} parent=5 // pred_fallthru
      _
    %p369 = scmp.le.s32.totalorder 2, %s10
    // Predicated region
    $region41: #{basic_block_forward.7} parent=5 // pred_check
      %p370 = pneg %p369
    $region42: #{basic_block_forward.7} parent=5 // pred_check_branch
      %372 = sbr.rel (%p370) target = $region44
    $region43: #{basic_block_forward.7} parent=5 // pred_region
      %s373 = ssub.s32 %s10, 2
      // Predicated region
      $region45: #{basic_block_forward.7} parent=43 // pred_check
        %p374 = pneg %p133
      $region46: #{basic_block_forward.7} parent=43 // pred_check_branch
        %376 = sbr.rel (%p374) target = $region48
      $region47: #{basic_block_forward.7} parent=43 // pred_region
        %s377 = smul.u32 16, %s16
        %p378 = scmp.lt.s32.totalorder %s377, 63
        %s379 = scalar_select %p378, %s377, 63
        %s380 = smul.addr %s379, 8
        %s381 = scalar_lea.vmem %s4, %s380
      $region48: #{basic_block_forward.7} parent=43 // pred_fallthru
        _
    $region44: #{basic_block_forward.7} parent=5 // pred_fallthru
      _
  $region6: #{basic_block_forward.7} parent=0 // loop_footer
    %s14 = sadd.s32 1, %s10
  $region7: #{basic_block_forward.7} parent=0 // loop_footer_branch
    %9 = sbr.rel target = $region3
  $region8: #{basic_block_forward.7} parent=0 // loop_exit
    _

// kernel: basic_block_forward.4
$region0: #{basic_block_forward.4}
  #allocation0 [shape = 'u32[]', space=smem, size = 0x4, offset = 0x4, fixed_abs, tag = 'smem constant byte address 0x4 - core index']
  #allocation1 [shape = 'u32[72,128]{1,0:T(1,128)}', space=vmem, size = 0x9000, scoped, tag = 'internal scratch']
  %s0 = inlined_call_operand.vmem [shape: f32[512,64], index: 0, kind: input, shape index: {}]
  %s1 = inlined_call_operand.vmem [shape: bf16[64,16], index: 1, kind: input, shape index: {}]
  %s2 = inlined_call_operand.vmem [shape: bf16[512,16], index: 2, kind: output, shape index: {0}]
  %s3 = inlined_call_operand.vmem [shape: f32[4,2,16], index: 3, kind: output, shape index: {1}]
  %4 = xla_tuple %s2, %s3
  %s5 = sld [smem:[#allocation0]]
  $region49: #{basic_block_forward.4} parent=0
    _
  %s7 = ssub.s32 1, %s5
  %s8 = scalar_select 0, %s7, %s5
  loop: start=0, step=1, limit=6
  $region2: #{basic_block_forward.4} parent=0 // loop_pre_header
    _
  $region3: #{basic_block_forward.4} parent=0 // loop_header
    %s10 = sphi 0, %s14
    %p11 = scmp.ge.s32.totalorder %s10, 6
    %s20 = sphi 0, %s22
    %s23 = sphi 0, %s20
    %s24 = sphi 0, %s23
    %s40 = sphi 0, %s24
    %s44 = sphi 0, %s44
    %s46 = sphi 0, %s44
    %s47 = sphi 0, %s46
    %s61 = sphi 0, %s47
    %s67 = sphi 0, %s69
    %s70 = sphi 0, %s67
    %s71 = sphi 0, %s70
    %s87 = sphi 0, %s71
    %s93 = sphi 0, %s95
    %s96 = sphi 0, %s93
    %s97 = sphi 0, %s96
    %s113 = sphi 0, %s97
  $region4: #{basic_block_forward.4} parent=0 // loop_header_branch
    %13 = sbr.rel (%p11) target = $region8
  $region5: #{basic_block_forward.4} parent=0 // loop_body
    %s15 = ssub.s32 %s10, 1
    %s16 = ssub.s32 %s10, 2
    %s17 = sadd.s32 %s10, 1
    %s18 = ssub.s32 %s10, %s17
    %p19 = scmp.eq.s32.totalorder %s18, 0
    %s21 = sadd.s32 %s20, 1
    %s22 = scalar_select %p19, %s20, %s21
    %p25 = pneg %p19
    %p26 = scmp.eq.s32.totalorder %s10, 3
    %p27 = por %p25, %p26
    %p28 = scmp.ne.s32.totalorder %s20, %s23
    %p29 = scmp.eq.s32.totalorder %s10, 0
    %p30 = por %p28, %p29
    %p31 = scmp.ne.s32.totalorder %s20, %s23
    %p32 = scmp.eq.s32.totalorder %s15, 3
    %p33 = por %p31, %p32
    %p34 = scmp.ne.s32.totalorder %s23, %s24
    %p35 = scmp.eq.s32.totalorder %s15, 0
    %p36 = por %p34, %p35
    %p37 = scmp.ne.s32.totalorder %s23, %s24
    %p38 = scmp.eq.s32.totalorder %s16, 3
    %p39 = por %p37, %p38
    %p41 = scmp.ne.s32.totalorder %s24, %s40
    %p42 = scmp.eq.s32.totalorder %s16, 0
    %p43 = por %p41, %p42
    %s45 = sadd.s32 %s44, 1
    %p48 = scmp.eq.s32.totalorder %s10, 3
    %p49 = scmp.ne.s32.totalorder %s44, %s46
    %p50 = scmp.eq.s32.totalorder %s10, 0
    %p51 = por %p49, %p50
    %p52 = scmp.ne.s32.totalorder %s44, %s46
    %p53 = scmp.eq.s32.totalorder %s15, 3
    %p54 = por %p52, %p53
    %p55 = scmp.ne.s32.totalorder %s46, %s47
    %p56 = scmp.eq.s32.totalorder %s15, 0
    %p57 = por %p55, %p56
    %p58 = scmp.ne.s32.totalorder %s46, %s47
    %p59 = scmp.eq.s32.totalorder %s16, 3
    %p60 = por %p58, %p59
    %p62 = scmp.ne.s32.totalorder %s47, %s61
    %p63 = scmp.eq.s32.totalorder %s16, 0
    %p64 = por %p62, %p63
    %s65 = ssub.s32 %s10, %s17
    %p66 = scmp.eq.s32.totalorder %s65, 0
    %s68 = sadd.s32 %s67, 1
    %s69 = scalar_select %p66, %s67, %s68
    %p72 = pneg %p66
    %p73 = scmp.eq.s32.totalorder %s10, 3
    %p74 = por %p72, %p73
    %p75 = scmp.ne.s32.totalorder %s67, %s70
    %p76 = scmp.eq.s32.totalorder %s10, 0
    %p77 = por %p75, %p76
    %p78 = scmp.ne.s32.totalorder %s67, %s70
    %p79 = scmp.eq.s32.totalorder %s15, 3
    %p80 = por %p78, %p79
    %p81 = scmp.ne.s32.totalorder %s70, %s71
    %p82 = scmp.eq.s32.totalorder %s15, 0
    %p83 = por %p81, %p82
    %p84 = scmp.ne.s32.totalorder %s70, %s71
    %p85 = scmp.eq.s32.totalorder %s16, 3
    %p86 = por %p84, %p85
    %p88 = scmp.ne.s32.totalorder %s71, %s87
    %p89 = scmp.eq.s32.totalorder %s16, 0
    %p90 = por %p88, %p89
    %s91 = ssub.s32 %s10, %s17
    %p92 = scmp.eq.s32.totalorder %s91, 0
    %s94 = sadd.s32 %s93, 1
    %s95 = scalar_select %p92, %s93, %s94
    %p98 = pneg %p92
    %p99 = scmp.eq.s32.totalorder %s10, 3
    %p100 = por %p98, %p99
    %p101 = scmp.ne.s32.totalorder %s93, %s96
    %p102 = scmp.eq.s32.totalorder %s10, 0
    %p103 = por %p101, %p102
    %p104 = scmp.ne.s32.totalorder %s93, %s96
    %p105 = scmp.eq.s32.totalorder %s15, 3
    %p106 = por %p104, %p105
    %p107 = scmp.ne.s32.totalorder %s96, %s97
    %p108 = scmp.eq.s32.totalorder %s15, 0
    %p109 = por %p107, %p108
    %p110 = scmp.ne.s32.totalorder %s96, %s97
    %p111 = scmp.eq.s32.totalorder %s16, 3
    %p112 = por %p110, %p111
    %p114 = scmp.ne.s32.totalorder %s97, %s113
    %p115 = scmp.eq.s32.totalorder %s16, 0
    %p116 = por %p114, %p115
    %p117 = scmp.le.s32.totalorder 1, %s10
    %p118 = scmp.lt.s32.totalorder %s10, 5
    %p119 = pnand %p117, %p118
    %p120 = pneg %p119
    // Predicated region
    $region9: #{basic_block_forward.4} parent=5 // pred_check
      _
    $region10: #{basic_block_forward.4} parent=5 // pred_check_branch
      %122 = sbr.rel (%p119) target = $region12
    $region11: #{basic_block_forward.4} parent=5 // pred_region
      %s123 = ssub.s32 %s10, 1
      // Predicated region
      $region13: #{basic_block_forward.4} parent=11 // pred_check
        %p124 = pneg %p57
      $region14: #{basic_block_forward.4} parent=11 // pred_check_branch
        %126 = sbr.rel (%p124) target = $region16
      $region15: #{basic_block_forward.4} parent=11 // pred_region
        _
      $region16: #{basic_block_forward.4} parent=11 // pred_fallthru
        _
    $region12: #{basic_block_forward.4} parent=5 // pred_fallthru
      _
    %p127 = scmp.lt.s32.totalorder %s10, 4
    // Predicated region
    $region17: #{basic_block_forward.4} parent=5 // pred_check
      %p128 = pneg %p127
    $region18: #{basic_block_forward.4} parent=5 // pred_check_branch
      %130 = sbr.rel (%p128) target = $region20
    $region19: #{basic_block_forward.4} parent=5 // pred_region
      // Predicated region
      $region21: #{basic_block_forward.4} parent=19 // pred_check
        %p131 = pneg %p30
      $region22: #{basic_block_forward.4} parent=19 // pred_check_branch
        %133 = sbr.rel (%p131) target = $region24
      $region23: #{basic_block_forward.4} parent=19 // pred_region
        %s134 = smul.u32 16, %s10
        %p135 = scmp.lt.s32.totalorder %s134, 63
        %s136 = scalar_select %p135, %s134, 63
        %s137 = smul.addr %s136, 8
        %s138 = scalar_lea.vmem %s0, %s137
        %s139 = smul.u32 16, %s10
      $region24: #{basic_block_forward.4} parent=19 // pred_fallthru
        _
    $region20: #{basic_block_forward.4} parent=5 // pred_fallthru
      _
    %p140 = scmp.le.s32.totalorder 1, %s10
    %p141 = scmp.lt.s32.totalorder %s10, 5
    %p142 = pnand %p140, %p141
    %p143 = pneg %p142
    // Predicated region
    $region25: #{basic_block_forward.4} parent=5 // pred_check
      _
    $region26: #{basic_block_forward.4} parent=5 // pred_check_branch
      %145 = sbr.rel (%p142) target = $region28
    $region27: #{basic_block_forward.4} parent=5 // pred_region
      %s146 = ssub.s32 %s10, 1
      %s147 = smul.u32 16, %s15
      %p148 = scmp.lt.s32.totalorder %s147, 63
      %s149 = scalar_select %p148, %s147, 63
      %s150 = smul.addr %s149, 8
      %s151 = scalar_lea.vmem %s0, %s150
      %p152 = pneg %p36
      %p153 = pneg %p33
      %p154 = pneg %p57
      %p155 = pneg %p54
      %p156 = pneg %p83
      %p157 = pneg %p80
      %s158 = smul.u32 16, %s15
      %p159 = scmp.lt.s32.totalorder %s158, 63
      %s160 = scalar_select %p159, %s158, 63
      %s161 = smul.addr %s160, 4
      %s162 = scalar_lea.vmem %s2, %s161
      %p163 = pneg %p109
      %p164 = pneg %p106
      %p165 = scmp.lt.s32.totalorder %s15, 3
      %s166 = scalar_select %p165, %s15, 3
      %s167 = smul.addr %s166, 2
      %s168 = scalar_lea.vmem %s3, %s167
      %s169 = smul.u32 16, %s15
      %p170 = scmp.lt.s32.totalorder %s169, 63
      %s171 = scalar_select %p170, %s169, 63
      %s172 = smul.addr %s171, 8
      %s173 = scalar_lea.vmem %s0, %s172
      %s174 = smul.u32 16, %s15
      %s175 = smul.u32 16, %s15
      %p176 = scmp.lt.s32.totalorder %s175, 63
      %s177 = scalar_select %p176, %s175, 63
      %s178 = smul.addr %s177, 4
      %s179 = scalar_lea.vmem %s2, %s178
      %s180 = smul.u32 16, %s15
      %p181 = scmp.lt.s32.totalorder %s15, 3
      %s182 = scalar_select %p181, %s15, 3
      %s183 = smul.addr %s182, 2
      %s184 = scalar_lea.vmem %s3, %s183
      %v186 = vld [vmem:[%s173] sm:$0xff]
      %v187 = vld [vmem:[%s173 + $0x8] sm:$0xff]
      %v188 = vld [vmem:[%s173 + $0x10] sm:$0xff]
      %v189 = vld [vmem:[%s173 + $0x18] sm:$0xff]
      %v190 = vld [vmem:[%s173 + $0x20] sm:$0xff]
      %v191 = vld [vmem:[%s173 + $0x28] sm:$0xff]
      %v192 = vld [vmem:[%s173 + $0x30] sm:$0xff]
      %v193 = vld [vmem:[%s173 + $0x38] sm:$0xff]
      %v194 = vld [vmem:[%s173 + $0x40] sm:$0xff]
      %v195 = vld [vmem:[%s173 + $0x48] sm:$0xff]
      %v196 = vld [vmem:[%s173 + $0x50] sm:$0xff]
      %v197 = vld [vmem:[%s173 + $0x58] sm:$0xff]
      %v198 = vld [vmem:[%s173 + $0x60] sm:$0xff]
      %v199 = vld [vmem:[%s173 + $0x68] sm:$0xff]
      %v200 = vld [vmem:[%s173 + $0x70] sm:$0xff]
      %v201 = vld [vmem:[%s173 + $0x78] sm:$0xff]
      %v202 = vpack.c.bf16 %v187, %v186
      %v203 = vpack.c.bf16 %v189, %v188
      %v204 = vpack.c.bf16 %v191, %v190
      %v205 = vpack.c.bf16 %v193, %v192
      %v206 = vpack.c.bf16 %v195, %v194
      %v207 = vpack.c.bf16 %v197, %v196
      %v208 = vpack.c.bf16 %v199, %v198
      %v209 = vpack.c.bf16 %v201, %v200
      %v210 = vld [vmem:[%s1] sm:$0xf]
      %v211 = vld [vmem:[%s1 + $0x4] sm:$0xf]
      %v212 = vld [vmem:[%s1 + $0x8] sm:$0xf]
      %v213 = vld [vmem:[%s1 + $0xc] sm:$0xf]
      %v214 = vld [vmem:[%s1 + $0x10] sm:$0xf]
      %v215 = vld [vmem:[%s1 + $0x14] sm:$0xf]
      %v216 = vld [vmem:[%s1 + $0x18] sm:$0xf]
      %v217 = vld [vmem:[%s1 + $0x1c] sm:$0xf]
      %v226 = vunpack.c.l.b16 %v210
      %v227 = vunpack.c.l.b16 %v211
      %v228 = vunpack.c.l.b16 %v212
      %v229 = vunpack.c.l.b16 %v213
      %v230 = vunpack.c.l.b16 %v214
      %v231 = vunpack.c.l.b16 %v215
      %v232 = vunpack.c.l.b16 %v216
      %v233 = vunpack.c.l.b16 %v217
      %v234 = vpack.c.b16 %v227, %v226
      %v235 = vpack.c.b16 %v229, %v228
      %v236 = vpack.c.b16 %v231, %v230
      %v237 = vpack.c.b16 %v233, %v232
      %vm242 = vcmask 523264
      %v244 = vsel %vm242, %v202, 0
      %v247 = vsel %vm242, %v203, 0
      %v250 = vsel %vm242, %v204, 0
      %v253 = vsel %vm242, %v205, 0
      %v256 = vsel %vm242, %v206, 0
      %v259 = vsel %vm242, %v207, 0
      %v262 = vsel %vm242, %v208, 0
      %v265 = vsel %vm242, %v209, 0
      %267 = vmatpush.bf16.msra.mxu0 0
      %268 = vmatpush.bf16.msra.mxu0 0
      %269 = vmatpush.bf16.msra.mxu0 0
      %270 = vmatpush.bf16.msra.mxu0 0
      %271 = vmatpush.bf16.msra.mxu0 %v237
      %272 = vmatpush.bf16.msra.mxu0 %v236
      %273 = vmatpush.bf16.msra.mxu0 %v235
      %274 = vmatpush.bf16.msra.mxu0 %v234
      %275 = vmatmul.bf16.gmra.mxu0 %v244
      %v276 = vpop.f32.mrf.mxu0
      %v277 = vadd.f32 0.0, %v276
      %v278 = vpop.f32.mrf.mxu0
      %v279 = vadd.f32 0.0, %v278
      %280 = vmatmul.bf16.gmra.mxu0 %v247
      %v281 = vpop.f32.mrf.mxu0
      %v282 = vadd.f32 0.0, %v281
      %v283 = vpop.f32.mrf.mxu0
      %v284 = vadd.f32 0.0, %v283
      %285 = vmatmul.bf16.gmra.mxu0 %v250
      %v286 = vpop.f32.mrf.mxu0
      %v287 = vadd.f32 0.0, %v286
      %v288 = vpop.f32.mrf.mxu0
      %v289 = vadd.f32 0.0, %v288
      %290 = vmatmul.bf16.gmra.mxu0 %v253
      %v291 = vpop.f32.mrf.mxu0
      %v292 = vadd.f32 0.0, %v291
      %v293 = vpop.f32.mrf.mxu0
      %v294 = vadd.f32 0.0, %v293
      %295 = vmatmul.bf16.gmra.mxu0 %v256
      %v296 = vpop.f32.mrf.mxu0
      %v297 = vadd.f32 0.0, %v296
      %v298 = vpop.f32.mrf.mxu0
      %v299 = vadd.f32 0.0, %v298
      %300 = vmatmul.bf16.gmra.mxu0 %v259
      %v301 = vpop.f32.mrf.mxu0
      %v302 = vadd.f32 0.0, %v301
      %v303 = vpop.f32.mrf.mxu0
      %v304 = vadd.f32 0.0, %v303
      %305 = vmatmul.bf16.gmra.mxu0 %v262
      %v306 = vpop.f32.mrf.mxu0
      %v307 = vadd.f32 0.0, %v306
      %v308 = vpop.f32.mrf.mxu0
      %v309 = vadd.f32 0.0, %v308
      %310 = vmatmul.bf16.gmra.mxu0 %v265
      %v311 = vpop.f32.mrf.mxu0
      %v312 = vadd.f32 0.0, %v311
      %v313 = vpop.f32.mrf.mxu0
      %v314 = vadd.f32 0.0, %v313
      %315 = vdwg.mxu0
      %v316 = vpack.c.bf16 %v277, %v277
      %v317 = vpack.c.bf16 %v279, %v279
      %v318 = vpack.c.bf16 %v282, %v282
      %v319 = vpack.c.bf16 %v284, %v284
      %v320 = vpack.c.bf16 %v287, %v287
      %v321 = vpack.c.bf16 %v289, %v289
      %v322 = vpack.c.bf16 %v292, %v292
      %v323 = vpack.c.bf16 %v294, %v294
      %v324 = vpack.c.bf16 %v297, %v297
      %v325 = vpack.c.bf16 %v299, %v299
      %v326 = vpack.c.bf16 %v302, %v302
      %v327 = vpack.c.bf16 %v304, %v304
      %v328 = vpack.c.bf16 %v307, %v307
      %v329 = vpack.c.bf16 %v309, %v309
      %v330 = vpack.c.bf16 %v312, %v312
      %v331 = vpack.c.bf16 %v314, %v314
      %vm332 = vcmask 125952
      %333 = vst.msk [vmem:[%s179] sm:$0xf] %vm332, %v316
      %334 = vst.msk [vmem:[%s179 + $0x4] sm:$0xf] %vm332, %v317
      %335 = vst.msk [vmem:[%s179 + $0x8] sm:$0xf] %vm332, %v318
      %336 = vst.msk [vmem:[%s179 + $0xc] sm:$0xf] %vm332, %v319
      %337 = vst.msk [vmem:[%s179 + $0x10] sm:$0xf] %vm332, %v320
      %338 = vst.msk [vmem:[%s179 + $0x14] sm:$0xf] %vm332, %v321
      %339 = vst.msk [vmem:[%s179 + $0x18] sm:$0xf] %vm332, %v322
      %340 = vst.msk [vmem:[%s179 + $0x1c] sm:$0xf] %vm332, %v323
      %341 = vst.msk [vmem:[%s179 + $0x20] sm:$0xf] %vm332, %v324
      %342 = vst.msk [vmem:[%s179 + $0x24] sm:$0xf] %vm332, %v325
      %343 = vst.msk [vmem:[%s179 + $0x28] sm:$0xf] %vm332, %v326
      %344 = vst.msk [vmem:[%s179 + $0x2c] sm:$0xf] %vm332, %v327
      %345 = vst.msk [vmem:[%s179 + $0x30] sm:$0xf] %vm332, %v328
      %346 = vst.msk [vmem:[%s179 + $0x34] sm:$0xf] %vm332, %v329
      %347 = vst.msk [vmem:[%s179 + $0x38] sm:$0xf] %vm332, %v330
      %348 = vst.msk [vmem:[%s179 + $0x3c] sm:$0xf] %vm332, %v331
      %vm349 = vcmask 130048
      %v350 = vsel %vm349, %v277, 0.0
      %v351 = vsel %vm349, %v279, 0.0
      %v352 = vadd.f32 %v350, %v351
      %v353 = vsel %vm349, %v282, 0.0
      %v354 = vadd.f32 %v352, %v353
      %v355 = vsel %vm349, %v284, 0.0
      %v356 = vadd.f32 %v354, %v355
      %v357 = vsel %vm349, %v287, 0.0
      %v358 = vadd.f32 %v356, %v357
      %v359 = vsel %vm349, %v289, 0.0
      %v360 = vadd.f32 %v358, %v359
      %v361 = vsel %vm349, %v292, 0.0
      %v362 = vadd.f32 %v360, %v361
      %v363 = vsel %vm349, %v294, 0.0
      %v364 = vadd.f32 %v362, %v363
      %v365 = vsel %vm349, %v297, 0.0
      %v366 = vadd.f32 %v364, %v365
      %v367 = vsel %vm349, %v299, 0.0
      %v368 = vadd.f32 %v366, %v367
      %v369 = vsel %vm349, %v302, 0.0
      %v370 = vadd.f32 %v368, %v369
      %v371 = vsel %vm349, %v304, 0.0
      %v372 = vadd.f32 %v370, %v371
      %v373 = vsel %vm349, %v307, 0.0
      %v374 = vadd.f32 %v372, %v373
      %v375 = vsel %vm349, %v309, 0.0
      %v376 = vadd.f32 %v374, %v375
      %v377 = vsel %vm349, %v312, 0.0
      %v378 = vadd.f32 %v376, %v377
      %v379 = vsel %vm349, %v314, 0.0
      %v380 = vadd.f32 %v378, %v379
      %v381 = vrot.slane %v380, 4
      %v382 = vadd.f32 %v380, %v381
      %v383 = vrot.slane %v382, 2
      %v384 = vadd.f32 %v382, %v383
      %v385 = vrot.slane %v384, 1
      %v386 = vadd.f32 %v384, %v385
      %v387 = vmul.f32 %v277, %v277
      %v388 = vmul.f32 %v279, %v279
      %v389 = vmul.f32 %v282, %v282
      %v390 = vmul.f32 %v284, %v284
      %v391 = vmul.f32 %v287, %v287
      %v392 = vmul.f32 %v289, %v289
      %v393 = vmul.f32 %v292, %v292
      %v394 = vmul.f32 %v294, %v294
      %v395 = vmul.f32 %v297, %v297
      %v396 = vmul.f32 %v299, %v299
      %v397 = vmul.f32 %v302, %v302
      %v398 = vmul.f32 %v304, %v304
      %v399 = vmul.f32 %v307, %v307
      %v400 = vmul.f32 %v309, %v309
      %v401 = vmul.f32 %v312, %v312
      %v402 = vmul.f32 %v314, %v314
      %v403 = vsel %vm349, %v387, 0.0
      %v404 = vsel %vm349, %v388, 0.0
      %v405 = vadd.f32 %v403, %v404
      %v406 = vsel %vm349, %v389, 0.0
      %v407 = vadd.f32 %v405, %v406
      %v408 = vsel %vm349, %v390, 0.0
      %v409 = vadd.f32 %v407, %v408
      %v410 = vsel %vm349, %v391, 0.0
      %v411 = vadd.f32 %v409, %v410
      %v412 = vsel %vm349, %v392, 0.0
      %v413 = vadd.f32 %v411, %v412
      %v414 = vsel %vm349, %v393, 0.0
      %v415 = vadd.f32 %v413, %v414
      %v416 = vsel %vm349, %v394, 0.0
      %v417 = vadd.f32 %v415, %v416
      %v418 = vsel %vm349, %v395, 0.0
      %v419 = vadd.f32 %v417, %v418
      %v420 = vsel %vm349, %v396, 0.0
      %v421 = vadd.f32 %v419, %v420
      %v422 = vsel %vm349, %v397, 0.0
      %v423 = vadd.f32 %v421, %v422
      %v424 = vsel %vm349, %v398, 0.0
      %v425 = vadd.f32 %v423, %v424
      %v426 = vsel %vm349, %v399, 0.0
      %v427 = vadd.f32 %v425, %v426
      %v428 = vsel %vm349, %v400, 0.0
      %v429 = vadd.f32 %v427, %v428
      %v430 = vsel %vm349, %v401, 0.0
      %v431 = vadd.f32 %v429, %v430
      %v432 = vsel %vm349, %v402, 0.0
      %v433 = vadd.f32 %v431, %v432
      %v434 = vrot.slane %v433, 4
      %v435 = vadd.f32 %v433, %v434
      %v436 = vrot.slane %v435, 2
      %v437 = vadd.f32 %v435, %v436
      %v438 = vrot.slane %v437, 1
      %v439 = vadd.f32 %v437, %v438
      %vm440 = vcmask 1040384
      %v441 = vsel %vm440, %v386, %v439
      %vm442 = vcmask 123904
      %443 = vst.msk [vmem:[%s184] sm:$0x3] %vm442, %v441
      %s444 = smul.u32 16, %s15
      %p445 = scmp.lt.s32.totalorder %s444, 63
      %s446 = scalar_select %p445, %s444, 63
      %s447 = smul.addr %s446, 4
      %s448 = scalar_lea.vmem %s2, %s447
      %p449 = scmp.lt.s32.totalorder %s15, 3
      %s450 = scalar_select %p449, %s15, 3
      %s451 = smul.addr %s450, 2
      %s452 = scalar_lea.vmem %s3, %s451
      // Predicated region
      $region29: #{basic_block_forward.4} parent=27 // pred_check
        %p453 = pneg %p80
      $region30: #{basic_block_forward.4} parent=27 // pred_check_branch
        %455 = sbr.rel (%p453) target = $region32
      $region31: #{basic_block_forward.4} parent=27 // pred_region
        %s456 = smul.u32 16, %s15
      $region32: #{basic_block_forward.4} parent=27 // pred_fallthru
        _
      // Predicated region
      $region33: #{basic_block_forward.4} parent=27 // pred_check
        %p457 = pneg %p106
      $region34: #{basic_block_forward.4} parent=27 // pred_check_branch
        %459 = sbr.rel (%p457) target = $region36
      $region35: #{basic_block_forward.4} parent=27 // pred_region
        _
      $region36: #{basic_block_forward.4} parent=27 // pred_fallthru
        _
    $region28: #{basic_block_forward.4} parent=5 // pred_fallthru
      _
    %p460 = scmp.le.s32.totalorder 2, %s10
    // Predicated region
    $region37: #{basic_block_forward.4} parent=5 // pred_check
      %p461 = pneg %p460
    $region38: #{basic_block_forward.4} parent=5 // pred_check_branch
      %463 = sbr.rel (%p461) target = $region40
    $region39: #{basic_block_forward.4} parent=5 // pred_region
      %s464 = ssub.s32 %s10, 2
      // Predicated region
      $region41: #{basic_block_forward.4} parent=39 // pred_check
        %p465 = pneg %p86
      $region42: #{basic_block_forward.4} parent=39 // pred_check_branch
        %467 = sbr.rel (%p465) target = $region44
      $region43: #{basic_block_forward.4} parent=39 // pred_region
        %s468 = smul.u32 16, %s16
        %p469 = scmp.lt.s32.totalorder %s468, 63
        %s470 = scalar_select %p469, %s468, 63
        %s471 = smul.addr %s470, 4
        %s472 = scalar_lea.vmem %s2, %s471
      $region44: #{basic_block_forward.4} parent=39 // pred_fallthru
        _
      // Predicated region
      $region45: #{basic_block_forward.4} parent=39 // pred_check
        %p473 = pneg %p112
      $region46: #{basic_block_forward.4} parent=39 // pred_check_branch
        %475 = sbr.rel (%p473) target = $region48
      $region47: #{basic_block_forward.4} parent=39 // pred_region
        %p476 = scmp.lt.s32.totalorder %s16, 3
        %s477 = scalar_select %p476, %s16, 3
        %s478 = smul.addr %s477, 2
        %s479 = scalar_lea.vmem %s3, %s478
      $region48: #{basic_block_forward.4} parent=39 // pred_fallthru
        _
    $region40: #{basic_block_forward.4} parent=5 // pred_fallthru
      _
  $region6: #{basic_block_forward.4} parent=0 // loop_footer
    %s14 = sadd.s32 1, %s10
  $region7: #{basic_block_forward.4} parent=0 // loop_footer_branch
    %9 = sbr.rel target = $region3
  $region8: #{basic_block_forward.4} parent=0 // loop_exit
    _

// kernel: basic_block_forward.6
$region0: #{basic_block_forward.6}
  #allocation0 [shape = 'u32[]', space=smem, size = 0x4, offset = 0x4, fixed_abs, tag = 'smem constant byte address 0x4 - core index']
  #allocation1 [shape = 'u32[72,128]{1,0:T(1,128)}', space=vmem, size = 0x9000, scoped, tag = 'internal scratch']
  %s0 = inlined_call_operand.vmem [shape: f32[1,16], index: 0, kind: input, shape index: {}]
  %s1 = inlined_call_operand.vmem [shape: f32[1,16], index: 1, kind: input, shape index: {}]
  %s2 = inlined_call_operand.vmem [shape: bf16[512,16], index: 2, kind: input, shape index: {}]
  %s3 = inlined_call_operand.vmem [shape: bf16[16,64], index: 3, kind: input, shape index: {}]
  %s4 = inlined_call_operand.vmem [shape: bf16[512,64], index: 4, kind: output, shape index: {0}]
  %s5 = inlined_call_operand.vmem [shape: f32[4,2,64], index: 5, kind: output, shape index: {1}]
  %6 = xla_tuple %s4, %s5
  %s7 = sld [smem:[#allocation0]]
  $region57: #{basic_block_forward.6} parent=0
    _
  %s9 = ssub.s32 1, %s7
  %s10 = scalar_select 0, %s9, %s7
  loop: start=0, step=1, limit=6
  $region2: #{basic_block_forward.6} parent=0 // loop_pre_header
    _
  $region3: #{basic_block_forward.6} parent=0 // loop_header
    %s12 = sphi 0, %s16
    %p13 = scmp.ge.s32.totalorder %s12, 6
    %s20 = sphi 0, %s20
    %s22 = sphi 0, %s20
    %s23 = sphi 0, %s22
    %s37 = sphi 0, %s23
    %s41 = sphi 0, %s41
    %s43 = sphi 0, %s41
    %s44 = sphi 0, %s43
    %s58 = sphi 0, %s44
    %s64 = sphi 0, %s66
    %s67 = sphi 0, %s64
    %s68 = sphi 0, %s67
    %s84 = sphi 0, %s68
    %s88 = sphi 0, %s88
    %s90 = sphi 0, %s88
    %s91 = sphi 0, %s90
    %s105 = sphi 0, %s91
    %s111 = sphi 0, %s113
    %s114 = sphi 0, %s111
    %s115 = sphi 0, %s114
    %s131 = sphi 0, %s115
    %s137 = sphi 0, %s139
    %s140 = sphi 0, %s137
    %s141 = sphi 0, %s140
    %s157 = sphi 0, %s141
  $region4: #{basic_block_forward.6} parent=0 // loop_header_branch
    %15 = sbr.rel (%p13) target = $region8
  $region5: #{basic_block_forward.6} parent=0 // loop_body
    %s17 = ssub.s32 %s12, 1
    %s18 = ssub.s32 %s12, 2
    %s19 = sadd.s32 %s12, 1
    %s21 = sadd.s32 %s20, 1
    %p24 = scmp.eq.s32.totalorder %s12, 3
    %p25 = scmp.ne.s32.totalorder %s20, %s22
    %p26 = scmp.eq.s32.totalorder %s12, 0
    %p27 = por %p25, %p26
    %p28 = scmp.ne.s32.totalorder %s20, %s22
    %p29 = scmp.eq.s32.totalorder %s17, 3
    %p30 = por %p28, %p29
    %p31 = scmp.ne.s32.totalorder %s22, %s23
    %p32 = scmp.eq.s32.totalorder %s17, 0
    %p33 = por %p31, %p32
    %p34 = scmp.ne.s32.totalorder %s22, %s23
    %p35 = scmp.eq.s32.totalorder %s18, 3
    %p36 = por %p34, %p35
    %p38 = scmp.ne.s32.totalorder %s23, %s37
    %p39 = scmp.eq.s32.totalorder %s18, 0
    %p40 = por %p38, %p39
    %s42 = sadd.s32 %s41, 1
    %p45 = scmp.eq.s32.totalorder %s12, 3
    %p46 = scmp.ne.s32.totalorder %s41, %s43
    %p47 = scmp.eq.s32.totalorder %s12, 0
    %p48 = por %p46, %p47
    %p49 = scmp.ne.s32.totalorder %s41, %s43
    %p50 = scmp.eq.s32.totalorder %s17, 3
    %p51 = por %p49, %p50
    %p52 = scmp.ne.s32.totalorder %s43, %s44
    %p53 = scmp.eq.s32.totalorder %s17, 0
    %p54 = por %p52, %p53
    %p55 = scmp.ne.s32.totalorder %s43, %s44
    %p56 = scmp.eq.s32.totalorder %s18, 3
    %p57 = por %p55, %p56
    %p59 = scmp.ne.s32.totalorder %s44, %s58
    %p60 = scmp.eq.s32.totalorder %s18, 0
    %p61 = por %p59, %p60
    %s62 = ssub.s32 %s12, %s19
    %p63 = scmp.eq.s32.totalorder %s62, 0
    %s65 = sadd.s32 %s64, 1
    %s66 = scalar_select %p63, %s64, %s65
    %p69 = pneg %p63
    %p70 = scmp.eq.s32.totalorder %s12, 3
    %p71 = por %p69, %p70
    %p72 = scmp.ne.s32.totalorder %s64, %s67
    %p73 = scmp.eq.s32.totalorder %s12, 0
    %p74 = por %p72, %p73
    %p75 = scmp.ne.s32.totalorder %s64, %s67
    %p76 = scmp.eq.s32.totalorder %s17, 3
    %p77 = por %p75, %p76
    %p78 = scmp.ne.s32.totalorder %s67, %s68
    %p79 = scmp.eq.s32.totalorder %s17, 0
    %p80 = por %p78, %p79
    %p81 = scmp.ne.s32.totalorder %s67, %s68
    %p82 = scmp.eq.s32.totalorder %s18, 3
    %p83 = por %p81, %p82
    %p85 = scmp.ne.s32.totalorder %s68, %s84
    %p86 = scmp.eq.s32.totalorder %s18, 0
    %p87 = por %p85, %p86
    %s89 = sadd.s32 %s88, 1
    %p92 = scmp.eq.s32.totalorder %s12, 3
    %p93 = scmp.ne.s32.totalorder %s88, %s90
    %p94 = scmp.eq.s32.totalorder %s12, 0
    %p95 = por %p93, %p94
    %p96 = scmp.ne.s32.totalorder %s88, %s90
    %p97 = scmp.eq.s32.totalorder %s17, 3
    %p98 = por %p96, %p97
    %p99 = scmp.ne.s32.totalorder %s90, %s91
    %p100 = scmp.eq.s32.totalorder %s17, 0
    %p101 = por %p99, %p100
    %p102 = scmp.ne.s32.totalorder %s90, %s91
    %p103 = scmp.eq.s32.totalorder %s18, 3
    %p104 = por %p102, %p103
    %p106 = scmp.ne.s32.totalorder %s91, %s105
    %p107 = scmp.eq.s32.totalorder %s18, 0
    %p108 = por %p106, %p107
    %s109 = ssub.s32 %s12, %s19
    %p110 = scmp.eq.s32.totalorder %s109, 0
    %s112 = sadd.s32 %s111, 1
    %s113 = scalar_select %p110, %s111, %s112
    %p116 = pneg %p110
    %p117 = scmp.eq.s32.totalorder %s12, 3
    %p118 = por %p116, %p117
    %p119 = scmp.ne.s32.totalorder %s111, %s114
    %p120 = scmp.eq.s32.totalorder %s12, 0
    %p121 = por %p119, %p120
    %p122 = scmp.ne.s32.totalorder %s111, %s114
    %p123 = scmp.eq.s32.totalorder %s17, 3
    %p124 = por %p122, %p123
    %p125 = scmp.ne.s32.totalorder %s114, %s115
    %p126 = scmp.eq.s32.totalorder %s17, 0
    %p127 = por %p125, %p126
    %p128 = scmp.ne.s32.totalorder %s114, %s115
    %p129 = scmp.eq.s32.totalorder %s18, 3
    %p130 = por %p128, %p129
    %p132 = scmp.ne.s32.totalorder %s115, %s131
    %p133 = scmp.eq.s32.totalorder %s18, 0
    %p134 = por %p132, %p133
    %s135 = ssub.s32 %s12, %s19
    %p136 = scmp.eq.s32.totalorder %s135, 0
    %s138 = sadd.s32 %s137, 1
    %s139 = scalar_select %p136, %s137, %s138
    %p142 = pneg %p136
    %p143 = scmp.eq.s32.totalorder %s12, 3
    %p144 = por %p142, %p143
    %p145 = scmp.ne.s32.totalorder %s137, %s140
    %p146 = scmp.eq.s32.totalorder %s12, 0
    %p147 = por %p145, %p146
    %p148 = scmp.ne.s32.totalorder %s137, %s140
    %p149 = scmp.eq.s32.totalorder %s17, 3
    %p150 = por %p148, %p149
    %p151 = scmp.ne.s32.totalorder %s140, %s141
    %p152 = scmp.eq.s32.totalorder %s17, 0
    %p153 = por %p151, %p152
    %p154 = scmp.ne.s32.totalorder %s140, %s141
    %p155 = scmp.eq.s32.totalorder %s18, 3
    %p156 = por %p154, %p155
    %p158 = scmp.ne.s32.totalorder %s141, %s157
    %p159 = scmp.eq.s32.totalorder %s18, 0
    %p160 = por %p158, %p159
    %p161 = scmp.le.s32.totalorder 1, %s12
    %p162 = scmp.lt.s32.totalorder %s12, 5
    %p163 = pnand %p161, %p162
    %p164 = pneg %p163
    // Predicated region
    $region9: #{basic_block_forward.6} parent=5 // pred_check
      _
    $region10: #{basic_block_forward.6} parent=5 // pred_check_branch
      %166 = sbr.rel (%p163) target = $region12
    $region11: #{basic_block_forward.6} parent=5 // pred_region
      %s167 = ssub.s32 %s12, 1
      // Predicated region
      $region13: #{basic_block_forward.6} parent=11 // pred_check
        %p168 = pneg %p33
      $region14: #{basic_block_forward.6} parent=11 // pred_check_branch
        %170 = sbr.rel (%p168) target = $region16
      $region15: #{basic_block_forward.6} parent=11 // pred_region
        _
      $region16: #{basic_block_forward.6} parent=11 // pred_fallthru
        _
      // Predicated region
      $region17: #{basic_block_forward.6} parent=11 // pred_check
        %p171 = pneg %p54
      $region18: #{basic_block_forward.6} parent=11 // pred_check_branch
        %173 = sbr.rel (%p171) target = $region20
      $region19: #{basic_block_forward.6} parent=11 // pred_region
        _
      $region20: #{basic_block_forward.6} parent=11 // pred_fallthru
        _
      // Predicated region
      $region21: #{basic_block_forward.6} parent=11 // pred_check
        %p174 = pneg %p101
      $region22: #{basic_block_forward.6} parent=11 // pred_check_branch
        %176 = sbr.rel (%p174) target = $region24
      $region23: #{basic_block_forward.6} parent=11 // pred_region
        _
      $region24: #{basic_block_forward.6} parent=11 // pred_fallthru
        _
    $region12: #{basic_block_forward.6} parent=5 // pred_fallthru
      _
    %p177 = scmp.lt.s32.totalorder %s12, 4
    // Predicated region
    $region25: #{basic_block_forward.6} parent=5 // pred_check
      %p178 = pneg %p177
    $region26: #{basic_block_forward.6} parent=5 // pred_check_branch
      %180 = sbr.rel (%p178) target = $region28
    $region27: #{basic_block_forward.6} parent=5 // pred_region
      // Predicated region
      $region29: #{basic_block_forward.6} parent=27 // pred_check
        %p181 = pneg %p74
      $region30: #{basic_block_forward.6} parent=27 // pred_check_branch
        %183 = sbr.rel (%p181) target = $region32
      $region31: #{basic_block_forward.6} parent=27 // pred_region
        %s184 = smul.u32 16, %s12
        %p185 = scmp.lt.s32.totalorder %s184, 63
        %s186 = scalar_select %p185, %s184, 63
        %s187 = smul.addr %s186, 4
        %s188 = scalar_lea.vmem %s2, %s187
        %s189 = smul.u32 16, %s12
      $region32: #{basic_block_forward.6} parent=27 // pred_fallthru
        _
    $region28: #{basic_block_forward.6} parent=5 // pred_fallthru
      _
    %p190 = scmp.le.s32.totalorder 1, %s12
    %p191 = scmp.lt.s32.totalorder %s12, 5
    %p192 = pnand %p190, %p191
    %p193 = pneg %p192
    // Predicated region
    $region33: #{basic_block_forward.6} parent=5 // pred_check
      _
    $region34: #{basic_block_forward.6} parent=5 // pred_check_branch
      %195 = sbr.rel (%p192) target = $region36
    $region35: #{basic_block_forward.6} parent=5 // pred_region
      %s196 = ssub.s32 %s12, 1
      %p197 = pneg %p33
      %p198 = pneg %p30
      %p199 = pneg %p54
      %p200 = pneg %p51
      %s201 = smul.u32 16, %s17
      %p202 = scmp.lt.s32.totalorder %s201, 63
      %s203 = scalar_select %p202, %s201, 63
      %s204 = smul.addr %s203, 4
      %s205 = scalar_lea.vmem %s2, %s204
      %p206 = pneg %p80
      %p207 = pneg %p77
      %p208 = pneg %p101
      %p209 = pneg %p98
      %p210 = pneg %p127
      %p211 = pneg %p124
      %s212 = smul.u32 16, %s17
      %p213 = scmp.lt.s32.totalorder %s212, 63
      %s214 = scalar_select %p213, %s212, 63
      %s215 = smul.addr %s214, 4
      %s216 = scalar_lea.vmem %s4, %s215
      %p217 = pneg %p153
      %p218 = pneg %p150
      %p219 = scmp.lt.s32.totalorder %s17, 3
      %s220 = scalar_select %p219, %s17, 3
      %s221 = smul.addr %s220, 2
      %s222 = scalar_lea.vmem %s5, %s221
      %s223 = smul.u32 16, %s17
      %p224 = scmp.lt.s32.totalorder %s223, 63
      %s225 = scalar_select %p224, %s223, 63
      %s226 = smul.addr %s225, 4
      %s227 = scalar_lea.vmem %s2, %s226
      %s228 = smul.u32 16, %s17
      %s229 = smul.u32 16, %s17
      %p230 = scmp.lt.s32.totalorder %s229, 63
      %s231 = scalar_select %p230, %s229, 63
      %s232 = smul.addr %s231, 4
      %s233 = scalar_lea.vmem %s4, %s232
      %s234 = smul.u32 16, %s17
      %p235 = scmp.lt.s32.totalorder %s17, 3
      %s236 = scalar_select %p235, %s17, 3
      %s237 = smul.addr %s236, 2
      %s238 = scalar_lea.vmem %s5, %s237
      %v240 = vld [vmem:[%s227] sm:$0xf]
      %v241 = vld [vmem:[%s227 + $0x4] sm:$0xf]
      %v242 = vld [vmem:[%s227 + $0x8] sm:$0xf]
      %v243 = vld [vmem:[%s227 + $0xc] sm:$0xf]
      %v244 = vld [vmem:[%s227 + $0x10] sm:$0xf]
      %v245 = vld [vmem:[%s227 + $0x14] sm:$0xf]
      %v246 = vld [vmem:[%s227 + $0x18] sm:$0xf]
      %v247 = vld [vmem:[%s227 + $0x1c] sm:$0xf]
      %v248 = vld [vmem:[%s227 + $0x20] sm:$0xf]
      %v249 = vld [vmem:[%s227 + $0x24] sm:$0xf]
      %v250 = vld [vmem:[%s227 + $0x28] sm:$0xf]
      %v251 = vld [vmem:[%s227 + $0x2c] sm:$0xf]
      %v252 = vld [vmem:[%s227 + $0x30] sm:$0xf]
      %v253 = vld [vmem:[%s227 + $0x34] sm:$0xf]
      %v254 = vld [vmem:[%s227 + $0x38] sm:$0xf]
      %v255 = vld [vmem:[%s227 + $0x3c] sm:$0xf]
      %v256 = vld [vmem:[%s0] sm:$0x1]
      %v257 = vunpack.c.l.bf16 %v240
      %v258 = vunpack.c.l.bf16 %v241
      %v259 = vunpack.c.l.bf16 %v242
      %v260 = vunpack.c.l.bf16 %v243
      %v261 = vunpack.c.l.bf16 %v244
      %v262 = vunpack.c.l.bf16 %v245
      %v263 = vunpack.c.l.bf16 %v246
      %v264 = vunpack.c.l.bf16 %v247
      %v265 = vunpack.c.l.bf16 %v248
      %v266 = vunpack.c.l.bf16 %v249
      %v267 = vunpack.c.l.bf16 %v250
      %v268 = vunpack.c.l.bf16 %v251
      %v269 = vunpack.c.l.bf16 %v252
      %v270 = vunpack.c.l.bf16 %v253
      %v271 = vunpack.c.l.bf16 %v254
      %v272 = vunpack.c.l.bf16 %v255
      %v274 = vperm.slane %v256, 0
      %v276 = vmul.f32 %v257, %v274
      %v277 = vmul.f32 %v258, %v274
      %v278 = vmul.f32 %v259, %v274
      %v279 = vmul.f32 %v260, %v274
      %v280 = vmul.f32 %v261, %v274
      %v281 = vmul.f32 %v262, %v274
      %v282 = vmul.f32 %v263, %v274
      %v283 = vmul.f32 %v264, %v274
      %v284 = vmul.f32 %v265, %v274
      %v285 = vmul.f32 %v266, %v274
      %v286 = vmul.f32 %v267, %v274
      %v287 = vmul.f32 %v268, %v274
      %v288 = vmul.f32 %v269, %v274
      %v289 = vmul.f32 %v270, %v274
      %v290 = vmul.f32 %v271, %v274
      %v291 = vmul.f32 %v272, %v274
      %v292 = vld [vmem:[%s1] sm:$0x1]
      %v294 = vperm.slane %v292, 0
      %v296 = vadd.f32 %v276, %v294
      %v297 = vadd.f32 %v277, %v294
      %v298 = vadd.f32 %v278, %v294
      %v299 = vadd.f32 %v279, %v294
      %v300 = vadd.f32 %v280, %v294
      %v301 = vadd.f32 %v281, %v294
      %v302 = vadd.f32 %v282, %v294
      %v303 = vadd.f32 %v283, %v294
      %v304 = vadd.f32 %v284, %v294
      %v305 = vadd.f32 %v285, %v294
      %v306 = vadd.f32 %v286, %v294
      %v307 = vadd.f32 %v287, %v294
      %v308 = vadd.f32 %v288, %v294
      %v309 = vadd.f32 %v289, %v294
      %v310 = vadd.f32 %v290, %v294
      %v311 = vadd.f32 %v291, %v294
      %v312 = vmax.f32 %v296, 0.0
      %v313 = vmax.f32 %v297, 0.0
      %v314 = vmax.f32 %v298, 0.0
      %v315 = vmax.f32 %v299, 0.0
      %v316 = vmax.f32 %v300, 0.0
      %v317 = vmax.f32 %v301, 0.0
      %v318 = vmax.f32 %v302, 0.0
      %v319 = vmax.f32 %v303, 0.0
      %v320 = vmax.f32 %v304, 0.0
      %v321 = vmax.f32 %v305, 0.0
      %v322 = vmax.f32 %v306, 0.0
      %v323 = vmax.f32 %v307, 0.0
      %v324 = vmax.f32 %v308, 0.0
      %v325 = vmax.f32 %v309, 0.0
      %v326 = vmax.f32 %v310, 0.0
      %v327 = vmax.f32 %v311, 0.0
      %v328 = vpack.c.bf16 %v313, %v312
      %v329 = vpack.c.bf16 %v315, %v314
      %v330 = vpack.c.bf16 %v317, %v316
      %v331 = vpack.c.bf16 %v319, %v318
      %v332 = vpack.c.bf16 %v321, %v320
      %v333 = vpack.c.bf16 %v323, %v322
      %v334 = vpack.c.bf16 %v325, %v324
      %v335 = vpack.c.bf16 %v327, %v326
      %v336 = vld [vmem:[%s3] sm:$0xf]
      %v337 = vld [vmem:[%s3 + $0x4] sm:$0xf]
      %v340 = vunpack.c.l.b16 %v336
      %v341 = vunpack.c.l.b16 %v337
      %v342 = vpack.c.b16 %v341, %v340
      %vm344 = vcmask 130048
      %v346 = vsel %vm344, %v328, 0
      %v349 = vsel %vm344, %v329, 0
      %v352 = vsel %vm344, %v330, 0
      %v355 = vsel %vm344, %v331, 0
      %v358 = vsel %vm344, %v332, 0
      %v361 = vsel %vm344, %v333, 0
      %v364 = vsel %vm344, %v334, 0
      %v367 = vsel %vm344, %v335, 0
      %369 = vmatpush.bf16.msra.mxu0 0
      %370 = vmatpush.bf16.msra.mxu0 0
      %371 = vmatpush.bf16.msra.mxu0 0
      %372 = vmatpush.bf16.msra.mxu0 0
      %373 = vmatpush.bf16.msra.mxu0 0
      %374 = vmatpush.bf16.msra.mxu0 0
      %375 = vmatpush.bf16.msra.mxu0 0
      %376 = vmatpush.bf16.msra.mxu0 %v342
      %377 = vmatmul.bf16.gmra.mxu0 %v346
      %v378 = vpop.f32.mrf.mxu0
      %v379 = vadd.f32 0.0, %v378
      %v380 = vpop.f32.mrf.mxu0
      %v381 = vadd.f32 0.0, %v380
      %382 = vmatmul.bf16.gmra.mxu0 %v349
      %v383 = vpop.f32.mrf.mxu0
      %v384 = vadd.f32 0.0, %v383
      %v385 = vpop.f32.mrf.mxu0
      %v386 = vadd.f32 0.0, %v385
      %387 = vmatmul.bf16.gmra.mxu0 %v352
      %v388 = vpop.f32.mrf.mxu0
      %v389 = vadd.f32 0.0, %v388
      %v390 = vpop.f32.mrf.mxu0
      %v391 = vadd.f32 0.0, %v390
      %392 = vmatmul.bf16.gmra.mxu0 %v355
      %v393 = vpop.f32.mrf.mxu0
      %v394 = vadd.f32 0.0, %v393
      %v395 = vpop.f32.mrf.mxu0
      %v396 = vadd.f32 0.0, %v395
      %397 = vmatmul.bf16.gmra.mxu0 %v358
      %v398 = vpop.f32.mrf.mxu0
      %v399 = vadd.f32 0.0, %v398
      %v400 = vpop.f32.mrf.mxu0
      %v401 = vadd.f32 0.0, %v400
      %402 = vmatmul.bf16.gmra.mxu0 %v361
      %v403 = vpop.f32.mrf.mxu0
      %v404 = vadd.f32 0.0, %v403
      %v405 = vpop.f32.mrf.mxu0
      %v406 = vadd.f32 0.0, %v405
      %407 = vmatmul.bf16.gmra.mxu0 %v364
      %v408 = vpop.f32.mrf.mxu0
      %v409 = vadd.f32 0.0, %v408
      %v410 = vpop.f32.mrf.mxu0
      %v411 = vadd.f32 0.0, %v410
      %412 = vmatmul.bf16.gmra.mxu0 %v367
      %v413 = vpop.f32.mrf.mxu0
      %v414 = vadd.f32 0.0, %v413
      %v415 = vpop.f32.mrf.mxu0
      %v416 = vadd.f32 0.0, %v415
      %417 = vdwg.mxu0
      %v418 = vpack.c.bf16 %v379, %v379
      %v419 = vpack.c.bf16 %v381, %v381
      %v420 = vpack.c.bf16 %v384, %v384
      %v421 = vpack.c.bf16 %v386, %v386
      %v422 = vpack.c.bf16 %v389, %v389
      %v423 = vpack.c.bf16 %v391, %v391
      %v424 = vpack.c.bf16 %v394, %v394
      %v425 = vpack.c.bf16 %v396, %v396
      %v426 = vpack.c.bf16 %v399, %v399
      %v427 = vpack.c.bf16 %v401, %v401
      %v428 = vpack.c.bf16 %v404, %v404
      %v429 = vpack.c.bf16 %v406, %v406
      %v430 = vpack.c.bf16 %v409, %v409
      %v431 = vpack.c.bf16 %v411, %v411
      %v432 = vpack.c.bf16 %v414, %v414
      %v433 = vpack.c.bf16 %v416, %v416
      %vm434 = vcmask 519168
      %435 = vst.msk [vmem:[%s233] sm:$0xf] %vm434, %v418
      %436 = vst.msk [vmem:[%s233 + $0x4] sm:$0xf] %vm434, %v419
      %437 = vst.msk [vmem:[%s233 + $0x8] sm:$0xf] %vm434, %v420
      %438 = vst.msk [vmem:[%s233 + $0xc] sm:$0xf] %vm434, %v421
      %439 = vst.msk [vmem:[%s233 + $0x10] sm:$0xf] %vm434, %v422
      %440 = vst.msk [vmem:[%s233 + $0x14] sm:$0xf] %vm434, %v423
      %441 = vst.msk [vmem:[%s233 + $0x18] sm:$0xf] %vm434, %v424
      %442 = vst.msk [vmem:[%s233 + $0x1c] sm:$0xf] %vm434, %v425
      %443 = vst.msk [vmem:[%s233 + $0x20] sm:$0xf] %vm434, %v426
      %444 = vst.msk [vmem:[%s233 + $0x24] sm:$0xf] %vm434, %v427
      %445 = vst.msk [vmem:[%s233 + $0x28] sm:$0xf] %vm434, %v428
      %446 = vst.msk [vmem:[%s233 + $0x2c] sm:$0xf] %vm434, %v429
      %447 = vst.msk [vmem:[%s233 + $0x30] sm:$0xf] %vm434, %v430
      %448 = vst.msk [vmem:[%s233 + $0x34] sm:$0xf] %vm434, %v431
      %449 = vst.msk [vmem:[%s233 + $0x38] sm:$0xf] %vm434, %v432
      %450 = vst.msk [vmem:[%s233 + $0x3c] sm:$0xf] %vm434, %v433
      %vm451 = vcmask 523264
      %v452 = vsel %vm451, %v379, 0.0
      %v453 = vsel %vm451, %v381, 0.0
      %v454 = vadd.f32 %v452, %v453
      %v455 = vsel %vm451, %v384, 0.0
      %v456 = vadd.f32 %v454, %v455
      %v457 = vsel %vm451, %v386, 0.0
      %v458 = vadd.f32 %v456, %v457
      %v459 = vsel %vm451, %v389, 0.0
      %v460 = vadd.f32 %v458, %v459
      %v461 = vsel %vm451, %v391, 0.0
      %v462 = vadd.f32 %v460, %v461
      %v463 = vsel %vm451, %v394, 0.0
      %v464 = vadd.f32 %v462, %v463
      %v465 = vsel %vm451, %v396, 0.0
      %v466 = vadd.f32 %v464, %v465
      %v467 = vsel %vm451, %v399, 0.0
      %v468 = vadd.f32 %v466, %v467
      %v469 = vsel %vm451, %v401, 0.0
      %v470 = vadd.f32 %v468, %v469
      %v471 = vsel %vm451, %v404, 0.0
      %v472 = vadd.f32 %v470, %v471
      %v473 = vsel %vm451, %v406, 0.0
      %v474 = vadd.f32 %v472, %v473
      %v475 = vsel %vm451, %v409, 0.0
      %v476 = vadd.f32 %v474, %v475
      %v477 = vsel %vm451, %v411, 0.0
      %v478 = vadd.f32 %v476, %v477
      %v479 = vsel %vm451, %v414, 0.0
      %v480 = vadd.f32 %v478, %v479
      %v481 = vsel %vm451, %v416, 0.0
      %v482 = vadd.f32 %v480, %v481
      %v483 = vrot.slane %v482, 4
      %v484 = vadd.f32 %v482, %v483
      %v485 = vrot.slane %v484, 2
      %v486 = vadd.f32 %v484, %v485
      %v487 = vrot.slane %v486, 1
      %v488 = vadd.f32 %v486, %v487
      %v489 = vmul.f32 %v379, %v379
      %v490 = vmul.f32 %v381, %v381
      %v491 = vmul.f32 %v384, %v384
      %v492 = vmul.f32 %v386, %v386
      %v493 = vmul.f32 %v389, %v389
      %v494 = vmul.f32 %v391, %v391
      %v495 = vmul.f32 %v394, %v394
      %v496 = vmul.f32 %v396, %v396
      %v497 = vmul.f32 %v399, %v399
      %v498 = vmul.f32 %v401, %v401
      %v499 = vmul.f32 %v404, %v404
      %v500 = vmul.f32 %v406, %v406
      %v501 = vmul.f32 %v409, %v409
      %v502 = vmul.f32 %v411, %v411
      %v503 = vmul.f32 %v414, %v414
      %v504 = vmul.f32 %v416, %v416
      %v505 = vsel %vm451, %v489, 0.0
      %v506 = vsel %vm451, %v490, 0.0
      %v507 = vadd.f32 %v505, %v506
      %v508 = vsel %vm451, %v491, 0.0
      %v509 = vadd.f32 %v507, %v508
      %v510 = vsel %vm451, %v492, 0.0
      %v511 = vadd.f32 %v509, %v510
      %v512 = vsel %vm451, %v493, 0.0
      %v513 = vadd.f32 %v511, %v512
      %v514 = vsel %vm451, %v494, 0.0
      %v515 = vadd.f32 %v513, %v514
      %v516 = vsel %vm451, %v495, 0.0
      %v517 = vadd.f32 %v515, %v516
      %v518 = vsel %vm451, %v496, 0.0
      %v519 = vadd.f32 %v517, %v518
      %v520 = vsel %vm451, %v497, 0.0
      %v521 = vadd.f32 %v519, %v520
      %v522 = vsel %vm451, %v498, 0.0
      %v523 = vadd.f32 %v521, %v522
      %v524 = vsel %vm451, %v499, 0.0
      %v525 = vadd.f32 %v523, %v524
      %v526 = vsel %vm451, %v500, 0.0
      %v527 = vadd.f32 %v525, %v526
      %v528 = vsel %vm451, %v501, 0.0
      %v529 = vadd.f32 %v527, %v528
      %v530 = vsel %vm451, %v502, 0.0
      %v531 = vadd.f32 %v529, %v530
      %v532 = vsel %vm451, %v503, 0.0
      %v533 = vadd.f32 %v531, %v532
      %v534 = vsel %vm451, %v504, 0.0
      %v535 = vadd.f32 %v533, %v534
      %v536 = vrot.slane %v535, 4
      %v537 = vadd.f32 %v535, %v536
      %v538 = vrot.slane %v537, 2
      %v539 = vadd.f32 %v537, %v538
      %v540 = vrot.slane %v539, 1
      %v541 = vadd.f32 %v539, %v540
      %vm542 = vcmask 1040384
      %v543 = vsel %vm542, %v488, %v541
      %vm544 = vcmask 517120
      %545 = vst.msk [vmem:[%s238] sm:$0x3] %vm544, %v543
      %s546 = smul.u32 16, %s17
      %p547 = scmp.lt.s32.totalorder %s546, 63
      %s548 = scalar_select %p547, %s546, 63
      %s549 = smul.addr %s548, 4
      %s550 = scalar_lea.vmem %s4, %s549
      %p551 = scmp.lt.s32.totalorder %s17, 3
      %s552 = scalar_select %p551, %s17, 3
      %s553 = smul.addr %s552, 2
      %s554 = scalar_lea.vmem %s5, %s553
      // Predicated region
      $region37: #{basic_block_forward.6} parent=35 // pred_check
        %p555 = pneg %p124
      $region38: #{basic_block_forward.6} parent=35 // pred_check_branch
        %557 = sbr.rel (%p555) target = $region40
      $region39: #{basic_block_forward.6} parent=35 // pred_region
        %s558 = smul.u32 16, %s17
      $region40: #{basic_block_forward.6} parent=35 // pred_fallthru
        _
      // Predicated region
      $region41: #{basic_block_forward.6} parent=35 // pred_check
        %p559 = pneg %p150
      $region42: #{basic_block_forward.6} parent=35 // pred_check_branch
        %561 = sbr.rel (%p559) target = $region44
      $region43: #{basic_block_forward.6} parent=35 // pred_region
        _
      $region44: #{basic_block_forward.6} parent=35 // pred_fallthru
        _
    $region36: #{basic_block_forward.6} parent=5 // pred_fallthru
      _
    %p562 = scmp.le.s32.totalorder 2, %s12
    // Predicated region
    $region45: #{basic_block_forward.6} parent=5 // pred_check
      %p563 = pneg %p562
    $region46: #{basic_block_forward.6} parent=5 // pred_check_branch
      %565 = sbr.rel (%p563) target = $region48
    $region47: #{basic_block_forward.6} parent=5 // pred_region
      %s566 = ssub.s32 %s12, 2
      // Predicated region
      $region49: #{basic_block_forward.6} parent=47 // pred_check
        %p567 = pneg %p130
      $region50: #{basic_block_forward.6} parent=47 // pred_check_branch
        %569 = sbr.rel (%p567) target = $region52
      $region51: #{basic_block_forward.6} parent=47 // pred_region
        %s570 = smul.u32 16, %s18
        %p571 = scmp.lt.s32.totalorder %s570, 63
        %s572 = scalar_select %p571, %s570, 63
        %s573 = smul.addr %s572, 4
        %s574 = scalar_lea.vmem %s4, %s573
      $region52: #{basic_block_forward.6} parent=47 // pred_fallthru
        _
      // Predicated region
      $region53: #{basic_block_forward.6} parent=47 // pred_check
        %p575 = pneg %p156
      $region54: #{basic_block_forward.6} parent=47 // pred_check_branch
        %577 = sbr.rel (%p575) target = $region56
      $region55: #{basic_block_forward.6} parent=47 // pred_region
        %p578 = scmp.lt.s32.totalorder %s18, 3
        %s579 = scalar_select %p578, %s18, 3
        %s580 = smul.addr %s579, 2
        %s581 = scalar_lea.vmem %s5, %s580
      $region56: #{basic_block_forward.6} parent=47 // pred_fallthru
        _
    $region48: #{basic_block_forward.6} parent=5 // pred_fallthru
      _
  $region6: #{basic_block_forward.6} parent=0 // loop_footer
    %s16 = sadd.s32 1, %s12
  $region7: #{basic_block_forward.6} parent=0 // loop_footer_branch
    %11 = sbr.rel target = $region3
  $region8: #{basic_block_forward.6} parent=0 // loop_exit
    _

// kernel: basic_block_forward.5
$region0: #{basic_block_forward.5}
  #allocation0 [shape = 'u32[]', space=smem, size = 0x4, offset = 0x4, fixed_abs, tag = 'smem constant byte address 0x4 - core index']
  #allocation1 [shape = 'u32[72,128]{1,0:T(1,128)}', space=vmem, size = 0x9000, scoped, tag = 'internal scratch']
  #allocation2 [shape = 'bf16[18,18,16]{2,1,0:T(8,128)(2,1)}', space=vmem, size = 0x1b000, scoped, tag = 'scratch operand']
  %s0 = inlined_call_operand.vmem [shape: f32[1,16], index: 0, kind: input, shape index: {}]
  %s1 = inlined_call_operand.vmem [shape: f32[1,16], index: 1, kind: input, shape index: {}]
  %s2 = inlined_call_operand.vmem [shape: bf16[2,16,16,16], index: 2, kind: input, shape index: {}]
  %s3 = inlined_call_operand.vmem [shape: bf16[9,16,16], index: 3, kind: input, shape index: {}]
  %s4 = inlined_call_operand.vmem [shape: bf16[2,16,16,16], index: 4, kind: output, shape index: {0}]
  %s5 = inlined_call_operand.vmem [shape: f32[2,2,16], index: 5, kind: output, shape index: {1}]
  %6 = xla_tuple %s4, %s5
  %s7 = sld [smem:[#allocation0]]
  $region57: #{basic_block_forward.5} parent=0
    _
  %s9 = ssub.s32 1, %s7
  %s10 = scalar_select 0, %s9, %s7
  loop: start=0, step=1, limit=4
  $region2: #{basic_block_forward.5} parent=0 // loop_pre_header
    _
  $region3: #{basic_block_forward.5} parent=0 // loop_header
    %s12 = sphi 0, %s16
    %p13 = scmp.ge.s32.totalorder %s12, 4
    %s20 = sphi 0, %s20
    %s22 = sphi 0, %s20
    %s23 = sphi 0, %s22
    %s37 = sphi 0, %s23
    %s41 = sphi 0, %s41
    %s43 = sphi 0, %s41
    %s44 = sphi 0, %s43
    %s58 = sphi 0, %s44
    %s64 = sphi 0, %s66
    %s67 = sphi 0, %s64
    %s68 = sphi 0, %s67
    %s84 = sphi 0, %s68
    %s88 = sphi 0, %s88
    %s90 = sphi 0, %s88
    %s91 = sphi 0, %s90
    %s105 = sphi 0, %s91
    %s111 = sphi 0, %s113
    %s114 = sphi 0, %s111
    %s115 = sphi 0, %s114
    %s131 = sphi 0, %s115
    %s137 = sphi 0, %s139
    %s140 = sphi 0, %s137
    %s141 = sphi 0, %s140
    %s157 = sphi 0, %s141
  $region4: #{basic_block_forward.5} parent=0 // loop_header_branch
    %15 = sbr.rel (%p13) target = $region8
  $region5: #{basic_block_forward.5} parent=0 // loop_body
    %s17 = ssub.s32 %s12, 1
    %s18 = ssub.s32 %s12, 2
    %s19 = sadd.s32 %s12, 1
    %s21 = sadd.s32 %s20, 1
    %p24 = scmp.eq.s32.totalorder %s12, 1
    %p25 = scmp.ne.s32.totalorder %s20, %s22
    %p26 = scmp.eq.s32.totalorder %s12, 0
    %p27 = por %p25, %p26
    %p28 = scmp.ne.s32.totalorder %s20, %s22
    %p29 = scmp.eq.s32.totalorder %s17, 1
    %p30 = por %p28, %p29
    %p31 = scmp.ne.s32.totalorder %s22, %s23
    %p32 = scmp.eq.s32.totalorder %s17, 0
    %p33 = por %p31, %p32
    %p34 = scmp.ne.s32.totalorder %s22, %s23
    %p35 = scmp.eq.s32.totalorder %s18, 1
    %p36 = por %p34, %p35
    %p38 = scmp.ne.s32.totalorder %s23, %s37
    %p39 = scmp.eq.s32.totalorder %s18, 0
    %p40 = por %p38, %p39
    %s42 = sadd.s32 %s41, 1
    %p45 = scmp.eq.s32.totalorder %s12, 1
    %p46 = scmp.ne.s32.totalorder %s41, %s43
    %p47 = scmp.eq.s32.totalorder %s12, 0
    %p48 = por %p46, %p47
    %p49 = scmp.ne.s32.totalorder %s41, %s43
    %p50 = scmp.eq.s32.totalorder %s17, 1
    %p51 = por %p49, %p50
    %p52 = scmp.ne.s32.totalorder %s43, %s44
    %p53 = scmp.eq.s32.totalorder %s17, 0
    %p54 = por %p52, %p53
    %p55 = scmp.ne.s32.totalorder %s43, %s44
    %p56 = scmp.eq.s32.totalorder %s18, 1
    %p57 = por %p55, %p56
    %p59 = scmp.ne.s32.totalorder %s44, %s58
    %p60 = scmp.eq.s32.totalorder %s18, 0
    %p61 = por %p59, %p60
    %s62 = ssub.s32 %s12, %s19
    %p63 = scmp.eq.s32.totalorder %s62, 0
    %s65 = sadd.s32 %s64, 1
    %s66 = scalar_select %p63, %s64, %s65
    %p69 = pneg %p63
    %p70 = scmp.eq.s32.totalorder %s12, 1
    %p71 = por %p69, %p70
    %p72 = scmp.ne.s32.totalorder %s64, %s67
    %p73 = scmp.eq.s32.totalorder %s12, 0
    %p74 = por %p72, %p73
    %p75 = scmp.ne.s32.totalorder %s64, %s67
    %p76 = scmp.eq.s32.totalorder %s17, 1
    %p77 = por %p75, %p76
    %p78 = scmp.ne.s32.totalorder %s67, %s68
    %p79 = scmp.eq.s32.totalorder %s17, 0
    %p80 = por %p78, %p79
    %p81 = scmp.ne.s32.totalorder %s67, %s68
    %p82 = scmp.eq.s32.totalorder %s18, 1
    %p83 = por %p81, %p82
    %p85 = scmp.ne.s32.totalorder %s68, %s84
    %p86 = scmp.eq.s32.totalorder %s18, 0
    %p87 = por %p85, %p86
    %s89 = sadd.s32 %s88, 1
    %p92 = scmp.eq.s32.totalorder %s12, 1
    %p93 = scmp.ne.s32.totalorder %s88, %s90
    %p94 = scmp.eq.s32.totalorder %s12, 0
    %p95 = por %p93, %p94
    %p96 = scmp.ne.s32.totalorder %s88, %s90
    %p97 = scmp.eq.s32.totalorder %s17, 1
    %p98 = por %p96, %p97
    %p99 = scmp.ne.s32.totalorder %s90, %s91
    %p100 = scmp.eq.s32.totalorder %s17, 0
    %p101 = por %p99, %p100
    %p102 = scmp.ne.s32.totalorder %s90, %s91
    %p103 = scmp.eq.s32.totalorder %s18, 1
    %p104 = por %p102, %p103
    %p106 = scmp.ne.s32.totalorder %s91, %s105
    %p107 = scmp.eq.s32.totalorder %s18, 0
    %p108 = por %p106, %p107
    %s109 = ssub.s32 %s12, %s19
    %p110 = scmp.eq.s32.totalorder %s109, 0
    %s112 = sadd.s32 %s111, 1
    %s113 = scalar_select %p110, %s111, %s112
    %p116 = pneg %p110
    %p117 = scmp.eq.s32.totalorder %s12, 1
    %p118 = por %p116, %p117
    %p119 = scmp.ne.s32.totalorder %s111, %s114
    %p120 = scmp.eq.s32.totalorder %s12, 0
    %p121 = por %p119, %p120
    %p122 = scmp.ne.s32.totalorder %s111, %s114
    %p123 = scmp.eq.s32.totalorder %s17, 1
    %p124 = por %p122, %p123
    %p125 = scmp.ne.s32.totalorder %s114, %s115
    %p126 = scmp.eq.s32.totalorder %s17, 0
    %p127 = por %p125, %p126
    %p128 = scmp.ne.s32.totalorder %s114, %s115
    %p129 = scmp.eq.s32.totalorder %s18, 1
    %p130 = por %p128, %p129
    %p132 = scmp.ne.s32.totalorder %s115, %s131
    %p133 = scmp.eq.s32.totalorder %s18, 0
    %p134 = por %p132, %p133
    %s135 = ssub.s32 %s12, %s19
    %p136 = scmp.eq.s32.totalorder %s135, 0
    %s138 = sadd.s32 %s137, 1
    %s139 = scalar_select %p136, %s137, %s138
    %p142 = pneg %p136
    %p143 = scmp.eq.s32.totalorder %s12, 1
    %p144 = por %p142, %p143
    %p145 = scmp.ne.s32.totalorder %s137, %s140
    %p146 = scmp.eq.s32.totalorder %s12, 0
    %p147 = por %p145, %p146
    %p148 = scmp.ne.s32.totalorder %s137, %s140
    %p149 = scmp.eq.s32.totalorder %s17, 1
    %p150 = por %p148, %p149
    %p151 = scmp.ne.s32.totalorder %s140, %s141
    %p152 = scmp.eq.s32.totalorder %s17, 0
    %p153 = por %p151, %p152
    %p154 = scmp.ne.s32.totalorder %s140, %s141
    %p155 = scmp.eq.s32.totalorder %s18, 1
    %p156 = por %p154, %p155
    %p158 = scmp.ne.s32.totalorder %s141, %s157
    %p159 = scmp.eq.s32.totalorder %s18, 0
    %p160 = por %p158, %p159
    %p161 = scmp.le.s32.totalorder 1, %s12
    %p162 = scmp.lt.s32.totalorder %s12, 3
    %p163 = pnand %p161, %p162
    %p164 = pneg %p163
    // Predicated region
    $region9: #{basic_block_forward.5} parent=5 // pred_check
      _
    $region10: #{basic_block_forward.5} parent=5 // pred_check_branch
      %166 = sbr.rel (%p163) target = $region12
    $region11: #{basic_block_forward.5} parent=5 // pred_region
      %s167 = ssub.s32 %s12, 1
      // Predicated region
      $region13: #{basic_block_forward.5} parent=11 // pred_check
        %p168 = pneg %p33
      $region14: #{basic_block_forward.5} parent=11 // pred_check_branch
        %170 = sbr.rel (%p168) target = $region16
      $region15: #{basic_block_forward.5} parent=11 // pred_region
        _
      $region16: #{basic_block_forward.5} parent=11 // pred_fallthru
        _
      // Predicated region
      $region17: #{basic_block_forward.5} parent=11 // pred_check
        %p171 = pneg %p54
      $region18: #{basic_block_forward.5} parent=11 // pred_check_branch
        %173 = sbr.rel (%p171) target = $region20
      $region19: #{basic_block_forward.5} parent=11 // pred_region
        _
      $region20: #{basic_block_forward.5} parent=11 // pred_fallthru
        _
      // Predicated region
      $region21: #{basic_block_forward.5} parent=11 // pred_check
        %p174 = pneg %p101
      $region22: #{basic_block_forward.5} parent=11 // pred_check_branch
        %176 = sbr.rel (%p174) target = $region24
      $region23: #{basic_block_forward.5} parent=11 // pred_region
        _
      $region24: #{basic_block_forward.5} parent=11 // pred_fallthru
        _
    $region12: #{basic_block_forward.5} parent=5 // pred_fallthru
      _
    %p177 = scmp.lt.s32.totalorder %s12, 2
    // Predicated region
    $region25: #{basic_block_forward.5} parent=5 // pred_check
      %p178 = pneg %p177
    $region26: #{basic_block_forward.5} parent=5 // pred_check_branch
      %180 = sbr.rel (%p178) target = $region28
    $region27: #{basic_block_forward.5} parent=5 // pred_region
      // Predicated region
      $region29: #{basic_block_forward.5} parent=27 // pred_check
        %p181 = pneg %p74
      $region30: #{basic_block_forward.5} parent=27 // pred_check_branch
        %183 = sbr.rel (%p181) target = $region32
      $region31: #{basic_block_forward.5} parent=27 // pred_region
        %p184 = scmp.lt.s32.totalorder %s12, 1
        %s185 = scalar_select %p184, %s12, 1
        %s186 = smul.addr %s185, 32
        %s187 = smul.addr %s186, 4
        %s188 = scalar_lea.vmem %s2, %s187
      $region32: #{basic_block_forward.5} parent=27 // pred_fallthru
        _
    $region28: #{basic_block_forward.5} parent=5 // pred_fallthru
      _
    %p189 = scmp.le.s32.totalorder 1, %s12
    %p190 = scmp.lt.s32.totalorder %s12, 3
    %p191 = pnand %p189, %p190
    %p192 = pneg %p191
    // Predicated region
    $region33: #{basic_block_forward.5} parent=5 // pred_check
      _
    $region34: #{basic_block_forward.5} parent=5 // pred_check_branch
      %194 = sbr.rel (%p191) target = $region36
    $region35: #{basic_block_forward.5} parent=5 // pred_region
      %s195 = ssub.s32 %s12, 1
      %p196 = pneg %p33
      %p197 = pneg %p30
      %p198 = pneg %p54
      %p199 = pneg %p51
      %p200 = scmp.lt.s32.totalorder %s17, 1
      %s201 = scalar_select %p200, %s17, 1
      %s202 = smul.addr %s201, 32
      %s203 = smul.addr %s202, 4
      %s204 = scalar_lea.vmem %s2, %s203
      %p205 = pneg %p80
      %p206 = pneg %p77
      %p207 = pneg %p101
      %p208 = pneg %p98
      %p209 = pneg %p127
      %p210 = pneg %p124
      %p211 = scmp.lt.s32.totalorder %s17, 1
      %s212 = scalar_select %p211, %s17, 1
      %s213 = smul.addr %s212, 32
      %s214 = smul.addr %s213, 4
      %s215 = scalar_lea.vmem %s4, %s214
      %p216 = pneg %p153
      %p217 = pneg %p150
      %p218 = scmp.lt.s32.totalorder %s17, 1
      %s219 = scalar_select %p218, %s17, 1
      %s220 = smul.addr %s219, 2
      %s221 = scalar_lea.vmem %s5, %s220
      %p222 = scmp.lt.s32.totalorder %s17, 1
      %s223 = scalar_select %p222, %s17, 1
      %s224 = smul.addr %s223, 32
      %s225 = smul.addr %s224, 4
      %s226 = scalar_lea.vmem %s2, %s225
      %p227 = scmp.lt.s32.totalorder %s17, 1
      %s228 = scalar_select %p227, %s17, 1
      %s229 = smul.addr %s228, 32
      %s230 = smul.addr %s229, 4
      %s231 = scalar_lea.vmem %s4, %s230
      %p232 = scmp.lt.s32.totalorder %s17, 1
      %s233 = scalar_select %p232, %s17, 1
      %s234 = smul.addr %s233, 2
      %s235 = scalar_lea.vmem %s5, %s234
      %v237 = vld [vmem:[%s226] sm:$0xf]
      %v238 = vld [vmem:[%s226 + $0x4] sm:$0xf]
      %v239 = vld [vmem:[%s226 + $0x8] sm:$0xf]
      %v240 = vld [vmem:[%s226 + $0xc] sm:$0xf]
      %v241 = vld [vmem:[%s226 + $0x10] sm:$0xf]
      %v242 = vld [vmem:[%s226 + $0x14] sm:$0xf]
      %v243 = vld [vmem:[%s226 + $0x18] sm:$0xf]
      %v244 = vld [vmem:[%s226 + $0x1c] sm:$0xf]
      %v245 = vld [vmem:[%s226 + $0x20] sm:$0xf]
      %v246 = vld [vmem:[%s226 + $0x24] sm:$0xf]
      %v247 = vld [vmem:[%s226 + $0x28] sm:$0xf]
      %v248 = vld [vmem:[%s226 + $0x2c] sm:$0xf]
      %v249 = vld [vmem:[%s226 + $0x30] sm:$0xf]
      %v250 = vld [vmem:[%s226 + $0x34] sm:$0xf]
      %v251 = vld [vmem:[%s226 + $0x38] sm:$0xf]
      %v252 = vld [vmem:[%s226 + $0x3c] sm:$0xf]
      %v253 = vld [vmem:[%s226 + $0x40] sm:$0xf]
      %v254 = vld [vmem:[%s226 + $0x44] sm:$0xf]
      %v255 = vld [vmem:[%s226 + $0x48] sm:$0xf]
      %v256 = vld [vmem:[%s226 + $0x4c] sm:$0xf]
      %v257 = vld [vmem:[%s226 + $0x50] sm:$0xf]
      %v258 = vld [vmem:[%s226 + $0x54] sm:$0xf]
      %v259 = vld [vmem:[%s226 + $0x58] sm:$0xf]
      %v260 = vld [vmem:[%s226 + $0x5c] sm:$0xf]
      %v261 = vld [vmem:[%s226 + $0x60] sm:$0xf]
      %v262 = vld [vmem:[%s226 + $0x64] sm:$0xf]
      %v263 = vld [vmem:[%s226 + $0x68] sm:$0xf]
      %v264 = vld [vmem:[%s226 + $0x6c] sm:$0xf]
      %v265 = vld [vmem:[%s226 + $0x70] sm:$0xf]
      %v266 = vld [vmem:[%s226 + $0x74] sm:$0xf]
      %v267 = vld [vmem:[%s226 + $0x78] sm:$0xf]
      %v268 = vld [vmem:[%s226 + $0x7c] sm:$0xf]
      %v269 = vld [vmem:[%s0] sm:$0x1]
      %v270 = vunpack.c.l.bf16 %v237
      %v271 = vunpack.c.l.bf16 %v238
      %v272 = vunpack.c.l.bf16 %v239
      %v273 = vunpack.c.l.bf16 %v240
      %v274 = vunpack.c.l.bf16 %v241
      %v275 = vunpack.c.l.bf16 %v242
      %v276 = vunpack.c.l.bf16 %v243
      %v277 = vunpack.c.l.bf16 %v244
      %v278 = vunpack.c.l.bf16 %v245
      %v279 = vunpack.c.l.bf16 %v246
      %v280 = vunpack.c.l.bf16 %v247
      %v281 = vunpack.c.l.bf16 %v248
      %v282 = vunpack.c.l.bf16 %v249
      %v283 = vunpack.c.l.bf16 %v250
      %v284 = vunpack.c.l.bf16 %v251
      %v285 = vunpack.c.l.bf16 %v252
      %v286 = vunpack.c.l.bf16 %v253
      %v287 = vunpack.c.l.bf16 %v254
      %v288 = vunpack.c.l.bf16 %v255
      %v289 = vunpack.c.l.bf16 %v256
      %v290 = vunpack.c.l.bf16 %v257
      %v291 = vunpack.c.l.bf16 %v258
      %v292 = vunpack.c.l.bf16 %v259
      %v293 = vunpack.c.l.bf16 %v260
      %v294 = vunpack.c.l.bf16 %v261
      %v295 = vunpack.c.l.bf16 %v262
      %v296 = vunpack.c.l.bf16 %v263
      %v297 = vunpack.c.l.bf16 %v264
      %v298 = vunpack.c.l.bf16 %v265
      %v299 = vunpack.c.l.bf16 %v266
      %v300 = vunpack.c.l.bf16 %v267
      %v301 = vunpack.c.l.bf16 %v268
      %v303 = vperm.slane %v269, 0
      %v305 = vmul.f32 %v270, %v303
      %v306 = vmul.f32 %v271, %v303
      %v307 = vmul.f32 %v272, %v303
      %v308 = vmul.f32 %v273, %v303
      %v309 = vmul.f32 %v274, %v303
      %v310 = vmul.f32 %v275, %v303
      %v311 = vmul.f32 %v276, %v303
      %v312 = vmul.f32 %v277, %v303
      %v313 = vmul.f32 %v278, %v303
      %v314 = vmul.f32 %v279, %v303
      %v315 = vmul.f32 %v280, %v303
      %v316 = vmul.f32 %v281, %v303
      %v317 = vmul.f32 %v282, %v303
      %v318 = vmul.f32 %v283, %v303
      %v319 = vmul.f32 %v284, %v303
      %v320 = vmul.f32 %v285, %v303
      %v321 = vmul.f32 %v286, %v303
      %v322 = vmul.f32 %v287, %v303
      %v323 = vmul.f32 %v288, %v303
      %v324 = vmul.f32 %v289, %v303
      %v325 = vmul.f32 %v290, %v303
      %v326 = vmul.f32 %v291, %v303
      %v327 = vmul.f32 %v292, %v303
      %v328 = vmul.f32 %v293, %v303
      %v329 = vmul.f32 %v294, %v303
      %v330 = vmul.f32 %v295, %v303
      %v331 = vmul.f32 %v296, %v303
      %v332 = vmul.f32 %v297, %v303
      %v333 = vmul.f32 %v298, %v303
      %v334 = vmul.f32 %v299, %v303
      %v335 = vmul.f32 %v300, %v303
      %v336 = vmul.f32 %v301, %v303
      %v337 = vld [vmem:[%s1] sm:$0x1]
      %v339 = vperm.slane %v337, 0
      %v341 = vadd.f32 %v305, %v339
      %v342 = vadd.f32 %v306, %v339
      %v343 = vadd.f32 %v307, %v339
      %v344 = vadd.f32 %v308, %v339
      %v345 = vadd.f32 %v309, %v339
      %v346 = vadd.f32 %v310, %v339
      %v347 = vadd.f32 %v311, %v339
      %v348 = vadd.f32 %v312, %v339
      %v349 = vadd.f32 %v313, %v339
      %v350 = vadd.f32 %v314, %v339
      %v351 = vadd.f32 %v315, %v339
      %v352 = vadd.f32 %v316, %v339
      %v353 = vadd.f32 %v317, %v339
      %v354 = vadd.f32 %v318, %v339
      %v355 = vadd.f32 %v319, %v339
      %v356 = vadd.f32 %v320, %v339
      %v357 = vadd.f32 %v321, %v339
      %v358 = vadd.f32 %v322, %v339
      %v359 = vadd.f32 %v323, %v339
      %v360 = vadd.f32 %v324, %v339
      %v361 = vadd.f32 %v325, %v339
      %v362 = vadd.f32 %v326, %v339
      %v363 = vadd.f32 %v327, %v339
      %v364 = vadd.f32 %v328, %v339
      %v365 = vadd.f32 %v329, %v339
      %v366 = vadd.f32 %v330, %v339
      %v367 = vadd.f32 %v331, %v339
      %v368 = vadd.f32 %v332, %v339
      %v369 = vadd.f32 %v333, %v339
      %v370 = vadd.f32 %v334, %v339
      %v371 = vadd.f32 %v335, %v339
      %v372 = vadd.f32 %v336, %v339
      %v373 = vmax.f32 %v341, 0.0
      %v374 = vmax.f32 %v342, 0.0
      %v375 = vmax.f32 %v343, 0.0
      %v376 = vmax.f32 %v344, 0.0
      %v377 = vmax.f32 %v345, 0.0
      %v378 = vmax.f32 %v346, 0.0
      %v379 = vmax.f32 %v347, 0.0
      %v380 = vmax.f32 %v348, 0.0
      %v381 = vmax.f32 %v349, 0.0
      %v382 = vmax.f32 %v350, 0.0
      %v383 = vmax.f32 %v351, 0.0
      %v384 = vmax.f32 %v352, 0.0
      %v385 = vmax.f32 %v353, 0.0
      %v386 = vmax.f32 %v354, 0.0
      %v387 = vmax.f32 %v355, 0.0
      %v388 = vmax.f32 %v356, 0.0
      %v389 = vmax.f32 %v357, 0.0
      %v390 = vmax.f32 %v358, 0.0
      %v391 = vmax.f32 %v359, 0.0
      %v392 = vmax.f32 %v360, 0.0
      %v393 = vmax.f32 %v361, 0.0
      %v394 = vmax.f32 %v362, 0.0
      %v395 = vmax.f32 %v363, 0.0
      %v396 = vmax.f32 %v364, 0.0
      %v397 = vmax.f32 %v365, 0.0
      %v398 = vmax.f32 %v366, 0.0
      %v399 = vmax.f32 %v367, 0.0
      %v400 = vmax.f32 %v368, 0.0
      %v401 = vmax.f32 %v369, 0.0
      %v402 = vmax.f32 %v370, 0.0
      %v403 = vmax.f32 %v371, 0.0
      %v404 = vmax.f32 %v372, 0.0
      %vm405 = vcmask 125952
      %406 = vst.msk [vmem:[#allocation2] sm:$0xf] %vm405, 0
      %407 = vst.msk [vmem:[#allocation2 + $0x4] sm:$0xf] %vm405, 0
      %vm408 = vcmask 122880
      %409 = vst.msk [vmem:[#allocation2 + $0x8] sm:$0x1] %vm408, 0
      %s410 = scalar_lea.vmem [#allocation2], 204
      %411 = vst.msk [vmem:[%s410] sm:$0xf] %vm405, 0
      %412 = vst.msk [vmem:[%s410 + $0x4] sm:$0xf] %vm405, 0
      %413 = vst.msk [vmem:[%s410 + $0x8] sm:$0x1] %vm408, 0
      %vm414 = vcmask 122880
      %vm415 = vsmask.f32 256
      %vm416 = vmand %vm414, %vm415
      %v417 = vld [vmem:[#allocation2] sm:$0x1]
      %v418 = vsel %vm416, 0, %v417
      %419 = vst [vmem:[#allocation2] sm:$0x1] %v418
      %v420 = vld [vmem:[#allocation2 + $0xc] sm:$0x1]
      %v421 = vsel %vm416, 0, %v420
      %422 = vst [vmem:[#allocation2 + $0xc] sm:$0x1] %v421
      %v423 = vld [vmem:[#allocation2 + $0x18] sm:$0x1]
      %v424 = vsel %vm416, 0, %v423
      %425 = vst [vmem:[#allocation2 + $0x18] sm:$0x1] %v424
      %v426 = vld [vmem:[#allocation2 + $0x24] sm:$0x1]
      %v427 = vsel %vm416, 0, %v426
      %428 = vst [vmem:[#allocation2 + $0x24] sm:$0x1] %v427
      %v429 = vld [vmem:[#allocation2 + $0x30] sm:$0x1]
      %v430 = vsel %vm416, 0, %v429
      %431 = vst [vmem:[#allocation2 + $0x30] sm:$0x1] %v430
      %v432 = vld [vmem:[#allocation2 + $0x3c] sm:$0x1]
      %v433 = vsel %vm416, 0, %v432
      %434 = vst [vmem:[#allocation2 + $0x3c] sm:$0x1] %v433
      %v435 = vld [vmem:[#allocation2 + $0x48] sm:$0x1]
      %v436 = vsel %vm416, 0, %v435
      %437 = vst [vmem:[#allocation2 + $0x48] sm:$0x1] %v436
      %v438 = vld [vmem:[#allocation2 + $0x54] sm:$0x1]
      %v439 = vsel %vm416, 0, %v438
      %440 = vst [vmem:[#allocation2 + $0x54] sm:$0x1] %v439
      %v441 = vld [vmem:[#allocation2 + $0x60] sm:$0x1]
      %v442 = vsel %vm416, 0, %v441
      %443 = vst [vmem:[#allocation2 + $0x60] sm:$0x1] %v442
      %v444 = vld [vmem:[#allocation2 + $0x6c] sm:$0x1]
      %v445 = vsel %vm416, 0, %v444
      %446 = vst [vmem:[#allocation2 + $0x6c] sm:$0x1] %v445
      %v447 = vld [vmem:[#allocation2 + $0x78] sm:$0x1]
      %v448 = vsel %vm416, 0, %v447
      %449 = vst [vmem:[#allocation2 + $0x78] sm:$0x1] %v448
      %v450 = vld [vmem:[#allocation2 + $0x84] sm:$0x1]
      %v451 = vsel %vm416, 0, %v450
      %452 = vst [vmem:[#allocation2 + $0x84] sm:$0x1] %v451
      %v453 = vld [vmem:[#allocation2 + $0x90] sm:$0x1]
      %v454 = vsel %vm416, 0, %v453
      %455 = vst [vmem:[#allocation2 + $0x90] sm:$0x1] %v454
      %v456 = vld [vmem:[#allocation2 + $0x9c] sm:$0x1]
      %v457 = vsel %vm416, 0, %v456
      %458 = vst [vmem:[#allocation2 + $0x9c] sm:$0x1] %v457
      %v459 = vld [vmem:[#allocation2 + $0xa8] sm:$0x1]
      %v460 = vsel %vm416, 0, %v459
      %461 = vst [vmem:[#allocation2 + $0xa8] sm:$0x1] %v460
      %v462 = vld [vmem:[#allocation2 + $0xb4] sm:$0x1]
      %v463 = vsel %vm416, 0, %v462
      %464 = vst [vmem:[#allocation2 + $0xb4] sm:$0x1] %v463
      %v465 = vld [vmem:[#allocation2 + $0xc0] sm:$0x1]
      %v466 = vsel %vm416, 0, %v465
      %467 = vst [vmem:[#allocation2 + $0xc0] sm:$0x1] %v466
      %v468 = vld [vmem:[#allocation2 + $0xcc] sm:$0x1]
      %v469 = vsel %vm416, 0, %v468
      %470 = vst [vmem:[#allocation2 + $0xcc] sm:$0x1] %v469
      %vm471 = vsmask.f32 7938
      %vm472 = vmand %vm414, %vm471
      %v473 = vld [vmem:[#allocation2 + $0x8] sm:$0x1]
      %v474 = vsel %vm472, 0, %v473
      %475 = vst [vmem:[#allocation2 + $0x8] sm:$0x1] %v474
      %v476 = vld [vmem:[#allocation2 + $0x14] sm:$0x1]
      %v477 = vsel %vm472, 0, %v476
      %478 = vst [vmem:[#allocation2 + $0x14] sm:$0x1] %v477
      %v479 = vld [vmem:[#allocation2 + $0x20] sm:$0x1]
      %v480 = vsel %vm472, 0, %v479
      %481 = vst [vmem:[#allocation2 + $0x20] sm:$0x1] %v480
      %v482 = vld [vmem:[#allocation2 + $0x2c] sm:$0x1]
      %v483 = vsel %vm472, 0, %v482
      %484 = vst [vmem:[#allocation2 + $0x2c] sm:$0x1] %v483
      %v485 = vld [vmem:[#allocation2 + $0x38] sm:$0x1]
      %v486 = vsel %vm472, 0, %v485
      %487 = vst [vmem:[#allocation2 + $0x38] sm:$0x1] %v486
      %v488 = vld [vmem:[#allocation2 + $0x44] sm:$0x1]
      %v489 = vsel %vm472, 0, %v488
      %490 = vst [vmem:[#allocation2 + $0x44] sm:$0x1] %v489
      %v491 = vld [vmem:[#allocation2 + $0x50] sm:$0x1]
      %v492 = vsel %vm472, 0, %v491
      %493 = vst [vmem:[#allocation2 + $0x50] sm:$0x1] %v492
      %v494 = vld [vmem:[#allocation2 + $0x5c] sm:$0x1]
      %v495 = vsel %vm472, 0, %v494
      %496 = vst [vmem:[#allocation2 + $0x5c] sm:$0x1] %v495
      %v497 = vld [vmem:[#allocation2 + $0x68] sm:$0x1]
      %v498 = vsel %vm472, 0, %v497
      %499 = vst [vmem:[#allocation2 + $0x68] sm:$0x1] %v498
      %v500 = vld [vmem:[#allocation2 + $0x74] sm:$0x1]
      %v501 = vsel %vm472, 0, %v500
      %502 = vst [vmem:[#allocation2 + $0x74] sm:$0x1] %v501
      %v503 = vld [vmem:[#allocation2 + $0x80] sm:$0x1]
      %v504 = vsel %vm472, 0, %v503
      %505 = vst [vmem:[#allocation2 + $0x80] sm:$0x1] %v504
      %v506 = vld [vmem:[#allocation2 + $0x8c] sm:$0x1]
      %v507 = vsel %vm472, 0, %v506
      %508 = vst [vmem:[#allocation2 + $0x8c] sm:$0x1] %v507
      %v509 = vld [vmem:[#allocation2 + $0x98] sm:$0x1]
      %v510 = vsel %vm472, 0, %v509
      %511 = vst [vmem:[#allocation2 + $0x98] sm:$0x1] %v510
      %v512 = vld [vmem:[#allocation2 + $0xa4] sm:$0x1]
      %v513 = vsel %vm472, 0, %v512
      %514 = vst [vmem:[#allocation2 + $0xa4] sm:$0x1] %v513
      %v515 = vld [vmem:[#allocation2 + $0xb0] sm:$0x1]
      %v516 = vsel %vm472, 0, %v515
      %517 = vst [vmem:[#allocation2 + $0xb0] sm:$0x1] %v516
      %v518 = vld [vmem:[#allocation2 + $0xbc] sm:$0x1]
      %v519 = vsel %vm472, 0, %v518
      %520 = vst [vmem:[#allocation2 + $0xbc] sm:$0x1] %v519
      %v521 = vld [vmem:[#allocation2 + $0xc8] sm:$0x1]
      %v522 = vsel %vm472, 0, %v521
      %523 = vst [vmem:[#allocation2 + $0xc8] sm:$0x1] %v522
      %v524 = vld [vmem:[#allocation2 + $0xd4] sm:$0x1]
      %v525 = vsel %vm472, 0, %v524
      %526 = vst [vmem:[#allocation2 + $0xd4] sm:$0x1] %v525
      %v527 = vpack.c.bf16 %v373, %v373
      %v528 = vpack.c.bf16 %v374, %v374
      %v529 = vpack.c.bf16 %v375, %v375
      %v530 = vpack.c.bf16 %v376, %v376
      %v531 = vpack.c.bf16 %v377, %v377
      %v532 = vpack.c.bf16 %v378, %v378
      %v533 = vpack.c.bf16 %v379, %v379
      %v534 = vpack.c.bf16 %v380, %v380
      %v535 = vpack.c.bf16 %v381, %v381
      %v536 = vpack.c.bf16 %v382, %v382
      %v537 = vpack.c.bf16 %v383, %v383
      %v538 = vpack.c.bf16 %v384, %v384
      %v539 = vpack.c.bf16 %v385, %v385
      %v540 = vpack.c.bf16 %v386, %v386
      %v541 = vpack.c.bf16 %v387, %v387
      %v542 = vpack.c.bf16 %v388, %v388
      %v543 = vpack.c.bf16 %v389, %v389
      %v544 = vpack.c.bf16 %v390, %v390
      %v545 = vpack.c.bf16 %v391, %v391
      %v546 = vpack.c.bf16 %v392, %v392
      %v547 = vpack.c.bf16 %v393, %v393
      %v548 = vpack.c.bf16 %v394, %v394
      %v549 = vpack.c.bf16 %v395, %v395
      %v550 = vpack.c.bf16 %v396, %v396
      %v551 = vpack.c.bf16 %v397, %v397
      %v552 = vpack.c.bf16 %v398, %v398
      %v553 = vpack.c.bf16 %v399, %v399
      %v554 = vpack.c.bf16 %v400, %v400
      %v555 = vpack.c.bf16 %v401, %v401
      %v556 = vpack.c.bf16 %v402, %v402
      %v557 = vpack.c.bf16 %v403, %v403
      %v558 = vpack.c.bf16 %v404, %v404
      %vm559 = vsmask.f32 4368
      %vm560 = vmor %vm415, %vm559
      %v562 = vshrl.u32 %v527, 16
      %v564 = vrot.slane %v562, 7
      %v565 = vshll.u32 %v527, 16
      %v567 = vor.u32 %v564, %v565
      %v568 = vrot.slane %v564, 4
      %v570 = vshrl.u32 %v528, 16
      %v572 = vrot.slane %v570, 7
      %v573 = vshll.u32 %v528, 16
      %v575 = vor.u32 %v572, %v573
      %v576 = vsel %vm560, %v568, %v575
      %v577 = vrot.slane %v572, 4
      %v579 = vshrl.u32 %v529, 16
      %v581 = vrot.slane %v579, 7
      %v582 = vshll.u32 %v529, 16
      %v584 = vor.u32 %v581, %v582
      %v585 = vrot.slane %v581, 4
      %v587 = vshrl.u32 %v530, 16
      %v589 = vrot.slane %v587, 7
      %v590 = vshll.u32 %v530, 16
      %v592 = vor.u32 %v589, %v590
      %v593 = vsel %vm560, %v585, %v592
      %v594 = vrot.slane %v589, 4
      %v596 = vshrl.u32 %v531, 16
      %v598 = vrot.slane %v596, 7
      %v599 = vshll.u32 %v531, 16
      %v601 = vor.u32 %v598, %v599
      %v602 = vrot.slane %v598, 4
      %v604 = vshrl.u32 %v532, 16
      %v606 = vrot.slane %v604, 7
      %v607 = vshll.u32 %v532, 16
      %v609 = vor.u32 %v606, %v607
      %v610 = vsel %vm560, %v602, %v609
      %v611 = vrot.slane %v606, 4
      %v613 = vshrl.u32 %v533, 16
      %v615 = vrot.slane %v613, 7
      %v616 = vshll.u32 %v533, 16
      %v618 = vor.u32 %v615, %v616
      %v619 = vrot.slane %v615, 4
      %v621 = vshrl.u32 %v534, 16
      %v623 = vrot.slane %v621, 7
      %v624 = vshll.u32 %v534, 16
      %v626 = vor.u32 %v623, %v624
      %v627 = vsel %vm560, %v619, %v626
      %v628 = vrot.slane %v623, 4
      %v630 = vshrl.u32 %v535, 16
      %v632 = vrot.slane %v630, 7
      %v633 = vshll.u32 %v535, 16
      %v635 = vor.u32 %v632, %v633
      %v636 = vrot.slane %v632, 4
      %v638 = vshrl.u32 %v536, 16
      %v640 = vrot.slane %v638, 7
      %v641 = vshll.u32 %v536, 16
      %v643 = vor.u32 %v640, %v641
      %v644 = vsel %vm560, %v636, %v643
      %v645 = vrot.slane %v640, 4
      %v647 = vshrl.u32 %v537, 16
      %v649 = vrot.slane %v647, 7
      %v650 = vshll.u32 %v537, 16
      %v652 = vor.u32 %v649, %v650
      %v653 = vrot.slane %v649, 4
      %v655 = vshrl.u32 %v538, 16
      %v657 = vrot.slane %v655, 7
      %v658 = vshll.u32 %v538, 16
      %v660 = vor.u32 %v657, %v658
      %v661 = vsel %vm560, %v653, %v660
      %v662 = vrot.slane %v657, 4
      %v664 = vshrl.u32 %v539, 16
      %v666 = vrot.slane %v664, 7
      %v667 = vshll.u32 %v539, 16
      %v669 = vor.u32 %v666, %v667
      %v670 = vrot.slane %v666, 4
      %v672 = vshrl.u32 %v540, 16
      %v674 = vrot.slane %v672, 7
      %v675 = vshll.u32 %v540, 16
      %v677 = vor.u32 %v674, %v675
      %v678 = vsel %vm560, %v670, %v677
      %v679 = vrot.slane %v674, 4
      %v681 = vshrl.u32 %v541, 16
      %v683 = vrot.slane %v681, 7
      %v684 = vshll.u32 %v541, 16
      %v686 = vor.u32 %v683, %v684
      %v687 = vrot.slane %v683, 4
      %v689 = vshrl.u32 %v542, 16
      %v691 = vrot.slane %v689, 7
      %v692 = vshll.u32 %v542, 16
      %v694 = vor.u32 %v691, %v692
      %v695 = vsel %vm560, %v687, %v694
      %v696 = vrot.slane %v691, 4
      %v698 = vshrl.u32 %v543, 16
      %v700 = vrot.slane %v698, 7
      %v701 = vshll.u32 %v543, 16
      %v703 = vor.u32 %v700, %v701
      %v704 = vrot.slane %v700, 4
      %v706 = vshrl.u32 %v544, 16
      %v708 = vrot.slane %v706, 7
      %v709 = vshll.u32 %v544, 16
      %v711 = vor.u32 %v708, %v709
      %v712 = vsel %vm560, %v704, %v711
      %v713 = vrot.slane %v708, 4
      %v715 = vshrl.u32 %v545, 16
      %v717 = vrot.slane %v715, 7
      %v718 = vshll.u32 %v545, 16
      %v720 = vor.u32 %v717, %v718
      %v721 = vrot.slane %v717, 4
      %v723 = vshrl.u32 %v546, 16
      %v725 = vrot.slane %v723, 7
      %v726 = vshll.u32 %v546, 16
      %v728 = vor.u32 %v725, %v726
      %v729 = vsel %vm560, %v721, %v728
      %v730 = vrot.slane %v725, 4
      %v732 = vshrl.u32 %v547, 16
      %v734 = vrot.slane %v732, 7
      %v735 = vshll.u32 %v547, 16
      %v737 = vor.u32 %v734, %v735
      %v738 = vrot.slane %v734, 4
      %v740 = vshrl.u32 %v548, 16
      %v742 = vrot.slane %v740, 7
      %v743 = vshll.u32 %v548, 16
      %v745 = vor.u32 %v742, %v743
      %v746 = vsel %vm560, %v738, %v745
      %v747 = vrot.slane %v742, 4
      %v749 = vshrl.u32 %v549, 16
      %v751 = vrot.slane %v749, 7
      %v752 = vshll.u32 %v549, 16
      %v754 = vor.u32 %v751, %v752
      %v755 = vrot.slane %v751, 4
      %v757 = vshrl.u32 %v550, 16
      %v759 = vrot.slane %v757, 7
      %v760 = vshll.u32 %v550, 16
      %v762 = vor.u32 %v759, %v760
      %v763 = vsel %vm560, %v755, %v762
      %v764 = vrot.slane %v759, 4
      %v766 = vshrl.u32 %v551, 16
      %v768 = vrot.slane %v766, 7
      %v769 = vshll.u32 %v551, 16
      %v771 = vor.u32 %v768, %v769
      %v772 = vrot.slane %v768, 4
      %v774 = vshrl.u32 %v552, 16
      %v776 = vrot.slane %v774, 7
      %v777 = vshll.u32 %v552, 16
      %v779 = vor.u32 %v776, %v777
      %v780 = vsel %vm560, %v772, %v779
      %v781 = vrot.slane %v776, 4
      %v783 = vshrl.u32 %v553, 16
      %v785 = vrot.slane %v783, 7
      %v786 = vshll.u32 %v553, 16
      %v788 = vor.u32 %v785, %v786
      %v789 = vrot.slane %v785, 4
      %v791 = vshrl.u32 %v554, 16
      %v793 = vrot.slane %v791, 7
      %v794 = vshll.u32 %v554, 16
      %v796 = vor.u32 %v793, %v794
      %v797 = vsel %vm560, %v789, %v796
      %v798 = vrot.slane %v793, 4
      %v800 = vshrl.u32 %v555, 16
      %v802 = vrot.slane %v800, 7
      %v803 = vshll.u32 %v555, 16
      %v805 = vor.u32 %v802, %v803
      %v806 = vrot.slane %v802, 4
      %v808 = vshrl.u32 %v556, 16
      %v810 = vrot.slane %v808, 7
      %v811 = vshll.u32 %v556, 16
      %v813 = vor.u32 %v810, %v811
      %v814 = vsel %vm560, %v806, %v813
      %v815 = vrot.slane %v810, 4
      %v817 = vshrl.u32 %v557, 16
      %v819 = vrot.slane %v817, 7
      %v820 = vshll.u32 %v557, 16
      %v822 = vor.u32 %v819, %v820
      %v823 = vrot.slane %v819, 4
      %v825 = vshrl.u32 %v558, 16
      %v827 = vrot.slane %v825, 7
      %v828 = vshll.u32 %v558, 16
      %v830 = vor.u32 %v827, %v828
      %v831 = vsel %vm560, %v823, %v830
      %v832 = vrot.slane %v827, 4
      %s881 = scalar_lea.vmem [#allocation2], 12
      %vm882 = vcmask 125952
      %vm883 = vmand %vm882, %vm471
      %v884 = vld [vmem:[%s881] sm:$0xf]
      %v885 = vsel %vm883, %v567, %v884
      %886 = vst [vmem:[%s881] sm:$0xf] %v885
      %887 = vst.msk [vmem:[%s881 + $0x4] sm:$0xf] %vm405, %v576
      %v888 = vld [vmem:[%s881 + $0x8] sm:$0x1]
      %v889 = vsel %vm416, %v577, %v888
      %890 = vst [vmem:[%s881 + $0x8] sm:$0x1] %v889
      %v891 = vld [vmem:[%s881 + $0xc] sm:$0xf]
      %v892 = vsel %vm883, %v584, %v891
      %893 = vst [vmem:[%s881 + $0xc] sm:$0xf] %v892
      %894 = vst.msk [vmem:[%s881 + $0x10] sm:$0xf] %vm405, %v593
      %v895 = vld [vmem:[%s881 + $0x14] sm:$0x1]
      %v896 = vsel %vm416, %v594, %v895
      %897 = vst [vmem:[%s881 + $0x14] sm:$0x1] %v896
      %v898 = vld [vmem:[%s881 + $0x18] sm:$0xf]
      %v899 = vsel %vm883, %v601, %v898
      %900 = vst [vmem:[%s881 + $0x18] sm:$0xf] %v899
      %901 = vst.msk [vmem:[%s881 + $0x1c] sm:$0xf] %vm405, %v610
      %v902 = vld [vmem:[%s881 + $0x20] sm:$0x1]
      %v903 = vsel %vm416, %v611, %v902
      %904 = vst [vmem:[%s881 + $0x20] sm:$0x1] %v903
      %v905 = vld [vmem:[%s881 + $0x24] sm:$0xf]
      %v906 = vsel %vm883, %v618, %v905
      %907 = vst [vmem:[%s881 + $0x24] sm:$0xf] %v906
      %908 = vst.msk [vmem:[%s881 + $0x28] sm:$0xf] %vm405, %v627
      %v909 = vld [vmem:[%s881 + $0x2c] sm:$0x1]
      %v910 = vsel %vm416, %v628, %v909
      %911 = vst [vmem:[%s881 + $0x2c] sm:$0x1] %v910
      %v912 = vld [vmem:[%s881 + $0x30] sm:$0xf]
      %v913 = vsel %vm883, %v635, %v912
      %914 = vst [vmem:[%s881 + $0x30] sm:$0xf] %v913
      %915 = vst.msk [vmem:[%s881 + $0x34] sm:$0xf] %vm405, %v644
      %v916 = vld [vmem:[%s881 + $0x38] sm:$0x1]
      %v917 = vsel %vm416, %v645, %v916
      %918 = vst [vmem:[%s881 + $0x38] sm:$0x1] %v917
      %v919 = vld [vmem:[%s881 + $0x3c] sm:$0xf]
      %v920 = vsel %vm883, %v652, %v919
      %921 = vst [vmem:[%s881 + $0x3c] sm:$0xf] %v920
      %922 = vst.msk [vmem:[%s881 + $0x40] sm:$0xf] %vm405, %v661
      %v923 = vld [vmem:[%s881 + $0x44] sm:$0x1]
      %v924 = vsel %vm416, %v662, %v923
      %925 = vst [vmem:[%s881 + $0x44] sm:$0x1] %v924
      %v926 = vld [vmem:[%s881 + $0x48] sm:$0xf]
      %v927 = vsel %vm883, %v669, %v926
      %928 = vst [vmem:[%s881 + $0x48] sm:$0xf] %v927
      %929 = vst.msk [vmem:[%s881 + $0x4c] sm:$0xf] %vm405, %v678
      %v930 = vld [vmem:[%s881 + $0x50] sm:$0x1]
      %v931 = vsel %vm416, %v679, %v930
      %932 = vst [vmem:[%s881 + $0x50] sm:$0x1] %v931
      %v933 = vld [vmem:[%s881 + $0x54] sm:$0xf]
      %v934 = vsel %vm883, %v686, %v933
      %935 = vst [vmem:[%s881 + $0x54] sm:$0xf] %v934
      %936 = vst.msk [vmem:[%s881 + $0x58] sm:$0xf] %vm405, %v695
      %v937 = vld [vmem:[%s881 + $0x5c] sm:$0x1]
      %v938 = vsel %vm416, %v696, %v937
      %939 = vst [vmem:[%s881 + $0x5c] sm:$0x1] %v938
      %v940 = vld [vmem:[%s881 + $0x60] sm:$0xf]
      %v941 = vsel %vm883, %v703, %v940
      %942 = vst [vmem:[%s881 + $0x60] sm:$0xf] %v941
      %943 = vst.msk [vmem:[%s881 + $0x64] sm:$0xf] %vm405, %v712
      %v944 = vld [vmem:[%s881 + $0x68] sm:$0x1]
      %v945 = vsel %vm416, %v713, %v944
      %946 = vst [vmem:[%s881 + $0x68] sm:$0x1] %v945
      %v947 = vld [vmem:[%s881 + $0x6c] sm:$0xf]
      %v948 = vsel %vm883, %v720, %v947
      %949 = vst [vmem:[%s881 + $0x6c] sm:$0xf] %v948
      %950 = vst.msk [vmem:[%s881 + $0x70] sm:$0xf] %vm405, %v729
      %v951 = vld [vmem:[%s881 + $0x74] sm:$0x1]
      %v952 = vsel %vm416, %v730, %v951
      %953 = vst [vmem:[%s881 + $0x74] sm:$0x1] %v952
      %v954 = vld [vmem:[%s881 + $0x78] sm:$0xf]
      %v955 = vsel %vm883, %v737, %v954
      %956 = vst [vmem:[%s881 + $0x78] sm:$0xf] %v955
      %957 = vst.msk [vmem:[%s881 + $0x7c] sm:$0xf] %vm405, %v746
      %v958 = vld [vmem:[%s881 + $0x80] sm:$0x1]
      %v959 = vsel %vm416, %v747, %v958
      %960 = vst [vmem:[%s881 + $0x80] sm:$0x1] %v959
      %v961 = vld [vmem:[%s881 + $0x84] sm:$0xf]
      %v962 = vsel %vm883, %v754, %v961
      %963 = vst [vmem:[%s881 + $0x84] sm:$0xf] %v962
      %964 = vst.msk [vmem:[%s881 + $0x88] sm:$0xf] %vm405, %v763
      %v965 = vld [vmem:[%s881 + $0x8c] sm:$0x1]
      %v966 = vsel %vm416, %v764, %v965
      %967 = vst [vmem:[%s881 + $0x8c] sm:$0x1] %v966
      %v968 = vld [vmem:[%s881 + $0x90] sm:$0xf]
      %v969 = vsel %vm883, %v771, %v968
      %970 = vst [vmem:[%s881 + $0x90] sm:$0xf] %v969
      %971 = vst.msk [vmem:[%s881 + $0x94] sm:$0xf] %vm405, %v780
      %v972 = vld [vmem:[%s881 + $0x98] sm:$0x1]
      %v973 = vsel %vm416, %v781, %v972
      %974 = vst [vmem:[%s881 + $0x98] sm:$0x1] %v973
      %v975 = vld [vmem:[%s881 + $0x9c] sm:$0xf]
      %v976 = vsel %vm883, %v788, %v975
      %977 = vst [vmem:[%s881 + $0x9c] sm:$0xf] %v976
      %978 = vst.msk [vmem:[%s881 + $0xa0] sm:$0xf] %vm405, %v797
      %v979 = vld [vmem:[%s881 + $0xa4] sm:$0x1]
      %v980 = vsel %vm416, %v798, %v979
      %981 = vst [vmem:[%s881 + $0xa4] sm:$0x1] %v980
      %v982 = vld [vmem:[%s881 + $0xa8] sm:$0xf]
      %v983 = vsel %vm883, %v805, %v982
      %984 = vst [vmem:[%s881 + $0xa8] sm:$0xf] %v983
      %985 = vst.msk [vmem:[%s881 + $0xac] sm:$0xf] %vm405, %v814
      %v986 = vld [vmem:[%s881 + $0xb0] sm:$0x1]
      %v987 = vsel %vm416, %v815, %v986
      %988 = vst [vmem:[%s881 + $0xb0] sm:$0x1] %v987
      %v989 = vld [vmem:[%s881 + $0xb4] sm:$0xf]
      %v990 = vsel %vm883, %v822, %v989
      %991 = vst [vmem:[%s881 + $0xb4] sm:$0xf] %v990
      %992 = vst.msk [vmem:[%s881 + $0xb8] sm:$0xf] %vm405, %v831
      %v993 = vld [vmem:[%s881 + $0xbc] sm:$0x1]
      %v994 = vsel %vm416, %v832, %v993
      %995 = vst [vmem:[%s881 + $0xbc] sm:$0x1] %v994
      %v996 = vld [vmem:[#allocation2] sm:$0xf]
      %v997 = vld [vmem:[#allocation2 + $0x4] sm:$0xf]
      %v998 = vld [vmem:[#allocation2 + $0xc] sm:$0xf]
      %v999 = vld [vmem:[#allocation2 + $0x10] sm:$0xf]
      %v1000 = vld [vmem:[#allocation2 + $0x18] sm:$0xf]
      %v1001 = vld [vmem:[#allocation2 + $0x1c] sm:$0xf]
      %v1002 = vld [vmem:[#allocation2 + $0x24] sm:$0xf]
      %v1003 = vld [vmem:[#allocation2 + $0x28] sm:$0xf]
      %v1004 = vld [vmem:[#allocation2 + $0x30] sm:$0xf]
      %v1005 = vld [vmem:[#allocation2 + $0x34] sm:$0xf]
      %v1006 = vld [vmem:[#allocation2 + $0x3c] sm:$0xf]
      %v1007 = vld [vmem:[#allocation2 + $0x40] sm:$0xf]
      %v1008 = vld [vmem:[#allocation2 + $0x48] sm:$0xf]
      %v1009 = vld [vmem:[#allocation2 + $0x4c] sm:$0xf]
      %v1010 = vld [vmem:[#allocation2 + $0x54] sm:$0xf]
      %v1011 = vld [vmem:[#allocation2 + $0x58] sm:$0xf]
      %v1012 = vld [vmem:[#allocation2 + $0x60] sm:$0xf]
      %v1013 = vld [vmem:[#allocation2 + $0x64] sm:$0xf]
      %v1014 = vld [vmem:[#allocation2 + $0x6c] sm:$0xf]
      %v1015 = vld [vmem:[#allocation2 + $0x70] sm:$0xf]
      %v1016 = vld [vmem:[#allocation2 + $0x78] sm:$0xf]
      %v1017 = vld [vmem:[#allocation2 + $0x7c] sm:$0xf]
      %v1018 = vld [vmem:[#allocation2 + $0x84] sm:$0xf]
      %v1019 = vld [vmem:[#allocation2 + $0x88] sm:$0xf]
      %v1020 = vld [vmem:[#allocation2 + $0x90] sm:$0xf]
      %v1021 = vld [vmem:[#allocation2 + $0x94] sm:$0xf]
      %v1022 = vld [vmem:[#allocation2 + $0x9c] sm:$0xf]
      %v1023 = vld [vmem:[#allocation2 + $0xa0] sm:$0xf]
      %v1024 = vld [vmem:[#allocation2 + $0xa8] sm:$0xf]
      %v1025 = vld [vmem:[#allocation2 + $0xac] sm:$0xf]
      %v1026 = vld [vmem:[#allocation2 + $0xb4] sm:$0xf]
      %v1027 = vld [vmem:[#allocation2 + $0xb8] sm:$0xf]
      %v1028 = vld [vmem:[%s3] sm:$0xf]
      %v1029 = vld [vmem:[%s3 + $0x4] sm:$0xf]
      %v1030 = vld [vmem:[#allocation2 + $0x8] sm:$0x1]
      %v1031 = vld [vmem:[#allocation2 + $0x14] sm:$0x1]
      %v1032 = vld [vmem:[#allocation2 + $0x20] sm:$0x1]
      %v1033 = vld [vmem:[#allocation2 + $0x2c] sm:$0x1]
      %v1034 = vld [vmem:[#allocation2 + $0x38] sm:$0x1]
      %v1035 = vld [vmem:[#allocation2 + $0x44] sm:$0x1]
      %v1036 = vld [vmem:[#allocation2 + $0x50] sm:$0x1]
      %v1037 = vld [vmem:[#allocation2 + $0x5c] sm:$0x1]
      %v1038 = vld [vmem:[#allocation2 + $0x68] sm:$0x1]
      %v1039 = vld [vmem:[#allocation2 + $0x74] sm:$0x1]
      %v1040 = vld [vmem:[#allocation2 + $0x80] sm:$0x1]
      %v1041 = vld [vmem:[#allocation2 + $0x8c] sm:$0x1]
      %v1042 = vld [vmem:[#allocation2 + $0x98] sm:$0x1]
      %v1043 = vld [vmem:[#allocation2 + $0xa4] sm:$0x1]
      %v1044 = vld [vmem:[#allocation2 + $0xb0] sm:$0x1]
      %v1045 = vld [vmem:[#allocation2 + $0xbc] sm:$0x1]
      %vm1046 = vsmask.f32 3328
      %vm1047 = vsmask.f32 7440
      %vm1048 = vmor %vm1046, %vm1047
      %v1050 = vshrl.u32 %v996, 16
      %v1052 = vrot.slane %v1050, 4
      %v1053 = vshll.u32 %v996, 16
      %v1055 = vrot.slane %v1053, 5
      %v1056 = vor.u32 %v1052, %v1055
      %v1057 = vrot.slane %v1056, 4
      %v1059 = vshll.u32 %v997, 16
      %v1061 = vrot.slane %v1059, 5
      %v1062 = vsel %vm1048, %v1057, %v1061
      %v1063 = vshrl.u32 %v997, 16
      %v1065 = vrot.slane %v1063, 4
      %v1066 = vor.u32 %v1065, %v1061
      %v1067 = vrot.slane %v1066, 4
      %v1069 = vshll.u32 %v1030, 16
      %v1071 = vrot.slane %v1069, 5
      %v1072 = vsel %vm1048, %v1067, %v1071
      %v1074 = vshrl.u32 %v998, 16
      %v1076 = vrot.slane %v1074, 4
      %v1077 = vshll.u32 %v998, 16
      %v1079 = vrot.slane %v1077, 5
      %v1080 = vor.u32 %v1076, %v1079
      %v1081 = vrot.slane %v1080, 4
      %v1083 = vshll.u32 %v999, 16
      %v1085 = vrot.slane %v1083, 5
      %v1086 = vsel %vm1048, %v1081, %v1085
      %v1087 = vshrl.u32 %v999, 16
      %v1089 = vrot.slane %v1087, 4
      %v1090 = vor.u32 %v1089, %v1085
      %v1091 = vrot.slane %v1090, 4
      %v1093 = vshll.u32 %v1031, 16
      %v1095 = vrot.slane %v1093, 5
      %v1096 = vsel %vm1048, %v1091, %v1095
      %v1098 = vshrl.u32 %v1000, 16
      %v1100 = vrot.slane %v1098, 4
      %v1101 = vshll.u32 %v1000, 16
      %v1103 = vrot.slane %v1101, 5
      %v1104 = vor.u32 %v1100, %v1103
      %v1105 = vrot.slane %v1104, 4
      %v1107 = vshll.u32 %v1001, 16
      %v1109 = vrot.slane %v1107, 5
      %v1110 = vsel %vm1048, %v1105, %v1109
      %v1111 = vshrl.u32 %v1001, 16
      %v1113 = vrot.slane %v1111, 4
      %v1114 = vor.u32 %v1113, %v1109
      %v1115 = vrot.slane %v1114, 4
      %v1117 = vshll.u32 %v1032, 16
      %v1119 = vrot.slane %v1117, 5
      %v1120 = vsel %vm1048, %v1115, %v1119
      %v1122 = vshrl.u32 %v1002, 16
      %v1124 = vrot.slane %v1122, 4
      %v1125 = vshll.u32 %v1002, 16
      %v1127 = vrot.slane %v1125, 5
      %v1128 = vor.u32 %v1124, %v1127
      %v1129 = vrot.slane %v1128, 4
      %v1131 = vshll.u32 %v1003, 16
      %v1133 = vrot.slane %v1131, 5
      %v1134 = vsel %vm1048, %v1129, %v1133
      %v1135 = vshrl.u32 %v1003, 16
      %v1137 = vrot.slane %v1135, 4
      %v1138 = vor.u32 %v1137, %v1133
      %v1139 = vrot.slane %v1138, 4
      %v1141 = vshll.u32 %v1033, 16
      %v1143 = vrot.slane %v1141, 5
      %v1144 = vsel %vm1048, %v1139, %v1143
      %v1146 = vshrl.u32 %v1004, 16
      %v1148 = vrot.slane %v1146, 4
      %v1149 = vshll.u32 %v1004, 16
      %v1151 = vrot.slane %v1149, 5
      %v1152 = vor.u32 %v1148, %v1151
      %v1153 = vrot.slane %v1152, 4
      %v1155 = vshll.u32 %v1005, 16
      %v1157 = vrot.slane %v1155, 5
      %v1158 = vsel %vm1048, %v1153, %v1157
      %v1159 = vshrl.u32 %v1005, 16
      %v1161 = vrot.slane %v1159, 4
      %v1162 = vor.u32 %v1161, %v1157
      %v1163 = vrot.slane %v1162, 4
      %v1165 = vshll.u32 %v1034, 16
      %v1167 = vrot.slane %v1165, 5
      %v1168 = vsel %vm1048, %v1163, %v1167
      %v1170 = vshrl.u32 %v1006, 16
      %v1172 = vrot.slane %v1170, 4
      %v1173 = vshll.u32 %v1006, 16
      %v1175 = vrot.slane %v1173, 5
      %v1176 = vor.u32 %v1172, %v1175
      %v1177 = vrot.slane %v1176, 4
      %v1179 = vshll.u32 %v1007, 16
      %v1181 = vrot.slane %v1179, 5
      %v1182 = vsel %vm1048, %v1177, %v1181
      %v1183 = vshrl.u32 %v1007, 16
      %v1185 = vrot.slane %v1183, 4
      %v1186 = vor.u32 %v1185, %v1181
      %v1187 = vrot.slane %v1186, 4
      %v1189 = vshll.u32 %v1035, 16
      %v1191 = vrot.slane %v1189, 5
      %v1192 = vsel %vm1048, %v1187, %v1191
      %v1194 = vshrl.u32 %v1008, 16
      %v1196 = vrot.slane %v1194, 4
      %v1197 = vshll.u32 %v1008, 16
      %v1199 = vrot.slane %v1197, 5
      %v1200 = vor.u32 %v1196, %v1199
      %v1201 = vrot.slane %v1200, 4
      %v1203 = vshll.u32 %v1009, 16
      %v1205 = vrot.slane %v1203, 5
      %v1206 = vsel %vm1048, %v1201, %v1205
      %v1207 = vshrl.u32 %v1009, 16
      %v1209 = vrot.slane %v1207, 4
      %v1210 = vor.u32 %v1209, %v1205
      %v1211 = vrot.slane %v1210, 4
      %v1213 = vshll.u32 %v1036, 16
      %v1215 = vrot.slane %v1213, 5
      %v1216 = vsel %vm1048, %v1211, %v1215
      %v1218 = vshrl.u32 %v1010, 16
      %v1220 = vrot.slane %v1218, 4
      %v1221 = vshll.u32 %v1010, 16
      %v1223 = vrot.slane %v1221, 5
      %v1224 = vor.u32 %v1220, %v1223
      %v1225 = vrot.slane %v1224, 4
      %v1227 = vshll.u32 %v1011, 16
      %v1229 = vrot.slane %v1227, 5
      %v1230 = vsel %vm1048, %v1225, %v1229
      %v1231 = vshrl.u32 %v1011, 16
      %v1233 = vrot.slane %v1231, 4
      %v1234 = vor.u32 %v1233, %v1229
      %v1235 = vrot.slane %v1234, 4
      %v1237 = vshll.u32 %v1037, 16
      %v1239 = vrot.slane %v1237, 5
      %v1240 = vsel %vm1048, %v1235, %v1239
      %v1242 = vshrl.u32 %v1012, 16
      %v1244 = vrot.slane %v1242, 4
      %v1245 = vshll.u32 %v1012, 16
      %v1247 = vrot.slane %v1245, 5
      %v1248 = vor.u32 %v1244, %v1247
      %v1249 = vrot.slane %v1248, 4
      %v1251 = vshll.u32 %v1013, 16
      %v1253 = vrot.slane %v1251, 5
      %v1254 = vsel %vm1048, %v1249, %v1253
      %v1255 = vshrl.u32 %v1013, 16
      %v1257 = vrot.slane %v1255, 4
      %v1258 = vor.u32 %v1257, %v1253
      %v1259 = vrot.slane %v1258, 4
      %v1261 = vshll.u32 %v1038, 16
      %v1263 = vrot.slane %v1261, 5
      %v1264 = vsel %vm1048, %v1259, %v1263
      %v1266 = vshrl.u32 %v1014, 16
      %v1268 = vrot.slane %v1266, 4
      %v1269 = vshll.u32 %v1014, 16
      %v1271 = vrot.slane %v1269, 5
      %v1272 = vor.u32 %v1268, %v1271
      %v1273 = vrot.slane %v1272, 4
      %v1275 = vshll.u32 %v1015, 16
      %v1277 = vrot.slane %v1275, 5
      %v1278 = vsel %vm1048, %v1273, %v1277
      %v1279 = vshrl.u32 %v1015, 16
      %v1281 = vrot.slane %v1279, 4
      %v1282 = vor.u32 %v1281, %v1277
      %v1283 = vrot.slane %v1282, 4
      %v1285 = vshll.u32 %v1039, 16
      %v1287 = vrot.slane %v1285, 5
      %v1288 = vsel %vm1048, %v1283, %v1287
      %v1290 = vshrl.u32 %v1016, 16
      %v1292 = vrot.slane %v1290, 4
      %v1293 = vshll.u32 %v1016, 16
      %v1295 = vrot.slane %v1293, 5
      %v1296 = vor.u32 %v1292, %v1295
      %v1297 = vrot.slane %v1296, 4
      %v1299 = vshll.u32 %v1017, 16
      %v1301 = vrot.slane %v1299, 5
      %v1302 = vsel %vm1048, %v1297, %v1301
      %v1303 = vshrl.u32 %v1017, 16
      %v1305 = vrot.slane %v1303, 4
      %v1306 = vor.u32 %v1305, %v1301
      %v1307 = vrot.slane %v1306, 4
      %v1309 = vshll.u32 %v1040, 16
      %v1311 = vrot.slane %v1309, 5
      %v1312 = vsel %vm1048, %v1307, %v1311
      %v1314 = vshrl.u32 %v1018, 16
      %v1316 = vrot.slane %v1314, 4
      %v1317 = vshll.u32 %v1018, 16
      %v1319 = vrot.slane %v1317, 5
      %v1320 = vor.u32 %v1316, %v1319
      %v1321 = vrot.slane %v1320, 4
      %v1323 = vshll.u32 %v1019, 16
      %v1325 = vrot.slane %v1323, 5
      %v1326 = vsel %vm1048, %v1321, %v1325
      %v1327 = vshrl.u32 %v1019, 16
      %v1329 = vrot.slane %v1327, 4
      %v1330 = vor.u32 %v1329, %v1325
      %v1331 = vrot.slane %v1330, 4
      %v1333 = vshll.u32 %v1041, 16
      %v1335 = vrot.slane %v1333, 5
      %v1336 = vsel %vm1048, %v1331, %v1335
      %v1338 = vshrl.u32 %v1020, 16
      %v1340 = vrot.slane %v1338, 4
      %v1341 = vshll.u32 %v1020, 16
      %v1343 = vrot.slane %v1341, 5
      %v1344 = vor.u32 %v1340, %v1343
      %v1345 = vrot.slane %v1344, 4
      %v1347 = vshll.u32 %v1021, 16
      %v1349 = vrot.slane %v1347, 5
      %v1350 = vsel %vm1048, %v1345, %v1349
      %v1351 = vshrl.u32 %v1021, 16
      %v1353 = vrot.slane %v1351, 4
      %v1354 = vor.u32 %v1353, %v1349
      %v1355 = vrot.slane %v1354, 4
      %v1357 = vshll.u32 %v1042, 16
      %v1359 = vrot.slane %v1357, 5
      %v1360 = vsel %vm1048, %v1355, %v1359
      %v1362 = vshrl.u32 %v1022, 16
      %v1364 = vrot.slane %v1362, 4
      %v1365 = vshll.u32 %v1022, 16
      %v1367 = vrot.slane %v1365, 5
      %v1368 = vor.u32 %v1364, %v1367
      %v1369 = vrot.slane %v1368, 4
      %v1371 = vshll.u32 %v1023, 16
      %v1373 = vrot.slane %v1371, 5
      %v1374 = vsel %vm1048, %v1369, %v1373
      %v1375 = vshrl.u32 %v1023, 16
      %v1377 = vrot.slane %v1375, 4
      %v1378 = vor.u32 %v1377, %v1373
      %v1379 = vrot.slane %v1378, 4
      %v1381 = vshll.u32 %v1043, 16
      %v1383 = vrot.slane %v1381, 5
      %v1384 = vsel %vm1048, %v1379, %v1383
      %v1386 = vshrl.u32 %v1024, 16
      %v1388 = vrot.slane %v1386, 4
      %v1389 = vshll.u32 %v1024, 16
      %v1391 = vrot.slane %v1389, 5
      %v1392 = vor.u32 %v1388, %v1391
      %v1393 = vrot.slane %v1392, 4
      %v1395 = vshll.u32 %v1025, 16
      %v1397 = vrot.slane %v1395, 5
      %v1398 = vsel %vm1048, %v1393, %v1397
      %v1399 = vshrl.u32 %v1025, 16
      %v1401 = vrot.slane %v1399, 4
      %v1402 = vor.u32 %v1401, %v1397
      %v1403 = vrot.slane %v1402, 4
      %v1405 = vshll.u32 %v1044, 16
      %v1407 = vrot.slane %v1405, 5
      %v1408 = vsel %vm1048, %v1403, %v1407
      %v1410 = vshrl.u32 %v1026, 16
      %v1412 = vrot.slane %v1410, 4
      %v1413 = vshll.u32 %v1026, 16
      %v1415 = vrot.slane %v1413, 5
      %v1416 = vor.u32 %v1412, %v1415
      %v1417 = vrot.slane %v1416, 4
      %v1419 = vshll.u32 %v1027, 16
      %v1421 = vrot.slane %v1419, 5
      %v1422 = vsel %vm1048, %v1417, %v1421
      %v1423 = vshrl.u32 %v1027, 16
      %v1425 = vrot.slane %v1423, 4
      %v1426 = vor.u32 %v1425, %v1421
      %v1427 = vrot.slane %v1426, 4
      %v1429 = vshll.u32 %v1045, 16
      %v1431 = vrot.slane %v1429, 5
      %v1432 = vsel %vm1048, %v1427, %v1431
      %s1433 = scalar_lea.vmem %s3, 8
      %v1434 = vld [vmem:[%s1433] sm:$0xf]
      %v1435 = vld [vmem:[%s1433 + $0x4] sm:$0xf]
      %v1436 = vunpack.c.l.b16 %v1062
      %v1437 = vunpack.c.l.b16 %v1072
      %v1438 = vunpack.c.l.b16 %v1086
      %v1439 = vunpack.c.l.b16 %v1096
      %v1440 = vunpack.c.l.b16 %v1110
      %v1441 = vunpack.c.l.b16 %v1120
      %v1442 = vunpack.c.l.b16 %v1134
      %v1443 = vunpack.c.l.b16 %v1144
      %v1444 = vunpack.c.l.b16 %v1158
      %v1445 = vunpack.c.l.b16 %v1168
      %v1446 = vunpack.c.l.b16 %v1182
      %v1447 = vunpack.c.l.b16 %v1192
      %v1448 = vunpack.c.l.b16 %v1206
      %v1449 = vunpack.c.l.b16 %v1216
      %v1450 = vunpack.c.l.b16 %v1230
      %v1451 = vunpack.c.l.b16 %v1240
      %v1452 = vunpack.c.l.b16 %v1254
      %v1453 = vunpack.c.l.b16 %v1264
      %v1454 = vunpack.c.l.b16 %v1278
      %v1455 = vunpack.c.l.b16 %v1288
      %v1456 = vunpack.c.l.b16 %v1302
      %v1457 = vunpack.c.l.b16 %v1312
      %v1458 = vunpack.c.l.b16 %v1326
      %v1459 = vunpack.c.l.b16 %v1336
      %v1460 = vunpack.c.l.b16 %v1350
      %v1461 = vunpack.c.l.b16 %v1360
      %v1462 = vunpack.c.l.b16 %v1374
      %v1463 = vunpack.c.l.b16 %v1384
      %v1464 = vunpack.c.l.b16 %v1398
      %v1465 = vunpack.c.l.b16 %v1408
      %v1466 = vunpack.c.l.b16 %v1422
      %v1467 = vunpack.c.l.b16 %v1432
      %v1468 = vpack.c.b16 %v1437, %v1436
      %v1469 = vpack.c.b16 %v1439, %v1438
      %v1470 = vpack.c.b16 %v1441, %v1440
      %v1471 = vpack.c.b16 %v1443, %v1442
      %v1472 = vpack.c.b16 %v1445, %v1444
      %v1473 = vpack.c.b16 %v1447, %v1446
      %v1474 = vpack.c.b16 %v1449, %v1448
      %v1475 = vpack.c.b16 %v1451, %v1450
      %v1476 = vpack.c.b16 %v1453, %v1452
      %v1477 = vpack.c.b16 %v1455, %v1454
      %v1478 = vpack.c.b16 %v1457, %v1456
      %v1479 = vpack.c.b16 %v1459, %v1458
      %v1480 = vpack.c.b16 %v1461, %v1460
      %v1481 = vpack.c.b16 %v1463, %v1462
      %v1482 = vpack.c.b16 %v1465, %v1464
      %v1483 = vpack.c.b16 %v1467, %v1466
      %v1486 = vunpack.c.l.b16 %v1434
      %v1487 = vunpack.c.l.b16 %v1435
      %v1488 = vpack.c.b16 %v1487, %v1486
      %vm1490 = vcmask 130048
      %v1492 = vsel %vm1490, %v1468, 0
      %v1495 = vsel %vm1490, %v1469, 0
      %v1498 = vsel %vm1490, %v1470, 0
      %v1501 = vsel %vm1490, %v1471, 0
      %v1504 = vsel %vm1490, %v1472, 0
      %v1507 = vsel %vm1490, %v1473, 0
      %v1510 = vsel %vm1490, %v1474, 0
      %v1513 = vsel %vm1490, %v1475, 0
      %v1516 = vsel %vm1490, %v1476, 0
      %v1519 = vsel %vm1490, %v1477, 0
      %v1522 = vsel %vm1490, %v1478, 0
      %v1525 = vsel %vm1490, %v1479, 0
      %v1528 = vsel %vm1490, %v1480, 0
      %v1531 = vsel %vm1490, %v1481, 0
      %v1534 = vsel %vm1490, %v1482, 0
      %v1537 = vsel %vm1490, %v1483, 0
      %1539 = vmatpush.bf16.msra.mxu0 0
      %1540 = vmatpush.bf16.msra.mxu0 0
      %1541 = vmatpush.bf16.msra.mxu0 0
      %1542 = vmatpush.bf16.msra.mxu0 0
      %1543 = vmatpush.bf16.msra.mxu0 0
      %1544 = vmatpush.bf16.msra.mxu0 0
      %1545 = vmatpush.bf16.msra.mxu0 0
      %1546 = vmatpush.bf16.msra.mxu0 %v1488
      %1547 = vmatmul.bf16.gmra.mxu0 %v1492
      %v1548 = vpop.f32.mrf.mxu0
      %v1549 = vadd.f32 0.0, %v1548
      %v1550 = vpop.f32.mrf.mxu0
      %v1551 = vadd.f32 0.0, %v1550
      %1552 = vmatmul.bf16.gmra.mxu0 %v1495
      %v1553 = vpop.f32.mrf.mxu0
      %v1554 = vadd.f32 0.0, %v1553
      %v1555 = vpop.f32.mrf.mxu0
      %v1556 = vadd.f32 0.0, %v1555
      %1557 = vmatmul.bf16.gmra.mxu0 %v1498
      %v1558 = vpop.f32.mrf.mxu0
      %v1559 = vadd.f32 0.0, %v1558
      %v1560 = vpop.f32.mrf.mxu0
      %v1561 = vadd.f32 0.0, %v1560
      %1562 = vmatmul.bf16.gmra.mxu0 %v1501
      %v1563 = vpop.f32.mrf.mxu0
      %v1564 = vadd.f32 0.0, %v1563
      %v1565 = vpop.f32.mrf.mxu0
      %v1566 = vadd.f32 0.0, %v1565
      %1567 = vmatmul.bf16.gmra.mxu0 %v1504
      %v1568 = vpop.f32.mrf.mxu0
      %v1569 = vadd.f32 0.0, %v1568
      %v1570 = vpop.f32.mrf.mxu0
      %v1571 = vadd.f32 0.0, %v1570
      %1572 = vmatmul.bf16.gmra.mxu0 %v1507
      %v1573 = vpop.f32.mrf.mxu0
      %v1574 = vadd.f32 0.0, %v1573
      %v1575 = vpop.f32.mrf.mxu0
      %v1576 = vadd.f32 0.0, %v1575
      %1577 = vmatmul.bf16.gmra.mxu0 %v1510
      %v1578 = vpop.f32.mrf.mxu0
      %v1579 = vadd.f32 0.0, %v1578
      %v1580 = vpop.f32.mrf.mxu0
      %v1581 = vadd.f32 0.0, %v1580
      %1582 = vmatmul.bf16.gmra.mxu0 %v1513
      %v1583 = vpop.f32.mrf.mxu0
      %v1584 = vadd.f32 0.0, %v1583
      %v1585 = vpop.f32.mrf.mxu0
      %v1586 = vadd.f32 0.0, %v1585
      %1587 = vmatmul.bf16.gmra.mxu0 %v1516
      %v1588 = vpop.f32.mrf.mxu0
      %v1589 = vadd.f32 0.0, %v1588
      %v1590 = vpop.f32.mrf.mxu0
      %v1591 = vadd.f32 0.0, %v1590
      %1592 = vmatmul.bf16.gmra.mxu0 %v1519
      %v1593 = vpop.f32.mrf.mxu0
      %v1594 = vadd.f32 0.0, %v1593
      %v1595 = vpop.f32.mrf.mxu0
      %v1596 = vadd.f32 0.0, %v1595
      %1597 = vmatmul.bf16.gmra.mxu0 %v1522
      %v1598 = vpop.f32.mrf.mxu0
      %v1599 = vadd.f32 0.0, %v1598
      %v1600 = vpop.f32.mrf.mxu0
      %v1601 = vadd.f32 0.0, %v1600
      %1602 = vmatmul.bf16.gmra.mxu0 %v1525
      %v1603 = vpop.f32.mrf.mxu0
      %v1604 = vadd.f32 0.0, %v1603
      %v1605 = vpop.f32.mrf.mxu0
      %v1606 = vadd.f32 0.0, %v1605
      %1607 = vmatmul.bf16.gmra.mxu0 %v1528
      %v1608 = vpop.f32.mrf.mxu0
      %v1609 = vadd.f32 0.0, %v1608
      %v1610 = vpop.f32.mrf.mxu0
      %v1611 = vadd.f32 0.0, %v1610
      %1612 = vmatmul.bf16.gmra.mxu0 %v1531
      %v1613 = vpop.f32.mrf.mxu0
      %v1614 = vadd.f32 0.0, %v1613
      %v1615 = vpop.f32.mrf.mxu0
      %v1616 = vadd.f32 0.0, %v1615
      %1617 = vmatmul.bf16.gmra.mxu0 %v1534
      %v1618 = vpop.f32.mrf.mxu0
      %v1619 = vadd.f32 0.0, %v1618
      %v1620 = vpop.f32.mrf.mxu0
      %v1621 = vadd.f32 0.0, %v1620
      %1622 = vmatmul.bf16.gmra.mxu0 %v1537
      %v1623 = vpop.f32.mrf.mxu0
      %v1624 = vadd.f32 0.0, %v1623
      %v1625 = vpop.f32.mrf.mxu0
      %v1626 = vadd.f32 0.0, %v1625
      %1627 = vdwg.mxu0
      %v1660 = vunpack.c.l.b16 %v996
      %v1661 = vunpack.c.l.b16 %v997
      %v1662 = vunpack.c.l.b16 %v998
      %v1663 = vunpack.c.l.b16 %v999
      %v1664 = vunpack.c.l.b16 %v1000
      %v1665 = vunpack.c.l.b16 %v1001
      %v1666 = vunpack.c.l.b16 %v1002
      %v1667 = vunpack.c.l.b16 %v1003
      %v1668 = vunpack.c.l.b16 %v1004
      %v1669 = vunpack.c.l.b16 %v1005
      %v1670 = vunpack.c.l.b16 %v1006
      %v1671 = vunpack.c.l.b16 %v1007
      %v1672 = vunpack.c.l.b16 %v1008
      %v1673 = vunpack.c.l.b16 %v1009
      %v1674 = vunpack.c.l.b16 %v1010
      %v1675 = vunpack.c.l.b16 %v1011
      %v1676 = vunpack.c.l.b16 %v1012
      %v1677 = vunpack.c.l.b16 %v1013
      %v1678 = vunpack.c.l.b16 %v1014
      %v1679 = vunpack.c.l.b16 %v1015
      %v1680 = vunpack.c.l.b16 %v1016
      %v1681 = vunpack.c.l.b16 %v1017
      %v1682 = vunpack.c.l.b16 %v1018
      %v1683 = vunpack.c.l.b16 %v1019
      %v1684 = vunpack.c.l.b16 %v1020
      %v1685 = vunpack.c.l.b16 %v1021
      %v1686 = vunpack.c.l.b16 %v1022
      %v1687 = vunpack.c.l.b16 %v1023
      %v1688 = vunpack.c.l.b16 %v1024
      %v1689 = vunpack.c.l.b16 %v1025
      %v1690 = vunpack.c.l.b16 %v1026
      %v1691 = vunpack.c.l.b16 %v1027
      %v1692 = vpack.c.b16 %v1661, %v1660
      %v1693 = vpack.c.b16 %v1663, %v1662
      %v1694 = vpack.c.b16 %v1665, %v1664
      %v1695 = vpack.c.b16 %v1667, %v1666
      %v1696 = vpack.c.b16 %v1669, %v1668
      %v1697 = vpack.c.b16 %v1671, %v1670
      %v1698 = vpack.c.b16 %v1673, %v1672
      %v1699 = vpack.c.b16 %v1675, %v1674
      %v1700 = vpack.c.b16 %v1677, %v1676
      %v1701 = vpack.c.b16 %v1679, %v1678
      %v1702 = vpack.c.b16 %v1681, %v1680
      %v1703 = vpack.c.b16 %v1683, %v1682
      %v1704 = vpack.c.b16 %v1685, %v1684
      %v1705 = vpack.c.b16 %v1687, %v1686
      %v1706 = vpack.c.b16 %v1689, %v1688
      %v1707 = vpack.c.b16 %v1691, %v1690
      %v1710 = vunpack.c.l.b16 %v1028
      %v1711 = vunpack.c.l.b16 %v1029
      %v1712 = vpack.c.b16 %v1711, %v1710
      %v1715 = vsel %vm1490, %v1692, 0
      %v1718 = vsel %vm1490, %v1693, 0
      %v1721 = vsel %vm1490, %v1694, 0
      %v1724 = vsel %vm1490, %v1695, 0
      %v1727 = vsel %vm1490, %v1696, 0
      %v1730 = vsel %vm1490, %v1697, 0
      %v1733 = vsel %vm1490, %v1698, 0
      %v1736 = vsel %vm1490, %v1699, 0
      %v1739 = vsel %vm1490, %v1700, 0
      %v1742 = vsel %vm1490, %v1701, 0
      %v1745 = vsel %vm1490, %v1702, 0
      %v1748 = vsel %vm1490, %v1703, 0
      %v1751 = vsel %vm1490, %v1704, 0
      %v1754 = vsel %vm1490, %v1705, 0
      %v1757 = vsel %vm1490, %v1706, 0
      %v1760 = vsel %vm1490, %v1707, 0
      %1762 = vmatpush.bf16.msra.mxu0 0
      %1763 = vmatpush.bf16.msra.mxu0 0
      %1764 = vmatpush.bf16.msra.mxu0 0
      %1765 = vmatpush.bf16.msra.mxu0 0
      %1766 = vmatpush.bf16.msra.mxu0 0
      %1767 = vmatpush.bf16.msra.mxu0 0
      %1768 = vmatpush.bf16.msra.mxu0 0
      %1769 = vmatpush.bf16.msra.mxu0 %v1712
      %1770 = vmatmul.bf16.gmra.mxu0 %v1715
      %v1771 = vpop.f32.mrf.mxu0
      %v1772 = vadd.f32 %v1549, %v1771
      %v1773 = vpop.f32.mrf.mxu0
      %v1774 = vadd.f32 %v1551, %v1773
      %1775 = vmatmul.bf16.gmra.mxu0 %v1718
      %v1776 = vpop.f32.mrf.mxu0
      %v1777 = vadd.f32 %v1554, %v1776
      %v1778 = vpop.f32.mrf.mxu0
      %v1779 = vadd.f32 %v1556, %v1778
      %1780 = vmatmul.bf16.gmra.mxu0 %v1721
      %v1781 = vpop.f32.mrf.mxu0
      %v1782 = vadd.f32 %v1559, %v1781
      %v1783 = vpop.f32.mrf.mxu0
      %v1784 = vadd.f32 %v1561, %v1783
      %1785 = vmatmul.bf16.gmra.mxu0 %v1724
      %v1786 = vpop.f32.mrf.mxu0
      %v1787 = vadd.f32 %v1564, %v1786
      %v1788 = vpop.f32.mrf.mxu0
      %v1789 = vadd.f32 %v1566, %v1788
      %1790 = vmatmul.bf16.gmra.mxu0 %v1727
      %v1791 = vpop.f32.mrf.mxu0
      %v1792 = vadd.f32 %v1569, %v1791
      %v1793 = vpop.f32.mrf.mxu0
      %v1794 = vadd.f32 %v1571, %v1793
      %1795 = vmatmul.bf16.gmra.mxu0 %v1730
      %v1796 = vpop.f32.mrf.mxu0
      %v1797 = vadd.f32 %v1574, %v1796
      %v1798 = vpop.f32.mrf.mxu0
      %v1799 = vadd.f32 %v1576, %v1798
      %1800 = vmatmul.bf16.gmra.mxu0 %v1733
      %v1801 = vpop.f32.mrf.mxu0
      %v1802 = vadd.f32 %v1579, %v1801
      %v1803 = vpop.f32.mrf.mxu0
      %v1804 = vadd.f32 %v1581, %v1803
      %1805 = vmatmul.bf16.gmra.mxu0 %v1736
      %v1806 = vpop.f32.mrf.mxu0
      %v1807 = vadd.f32 %v1584, %v1806
      %v1808 = vpop.f32.mrf.mxu0
      %v1809 = vadd.f32 %v1586, %v1808
      %1810 = vmatmul.bf16.gmra.mxu0 %v1739
      %v1811 = vpop.f32.mrf.mxu0
      %v1812 = vadd.f32 %v1589, %v1811
      %v1813 = vpop.f32.mrf.mxu0
      %v1814 = vadd.f32 %v1591, %v1813
      %1815 = vmatmul.bf16.gmra.mxu0 %v1742
      %v1816 = vpop.f32.mrf.mxu0
      %v1817 = vadd.f32 %v1594, %v1816
      %v1818 = vpop.f32.mrf.mxu0
      %v1819 = vadd.f32 %v1596, %v1818
      %1820 = vmatmul.bf16.gmra.mxu0 %v1745
      %v1821 = vpop.f32.mrf.mxu0
      %v1822 = vadd.f32 %v1599, %v1821
      %v1823 = vpop.f32.mrf.mxu0
      %v1824 = vadd.f32 %v1601, %v1823
      %1825 = vmatmul.bf16.gmra.mxu0 %v1748
      %v1826 = vpop.f32.mrf.mxu0
      %v1827 = vadd.f32 %v1604, %v1826
      %v1828 = vpop.f32.mrf.mxu0
      %v1829 = vadd.f32 %v1606, %v1828
      %1830 = vmatmul.bf16.gmra.mxu0 %v1751
      %v1831 = vpop.f32.mrf.mxu0
      %v1832 = vadd.f32 %v1609, %v1831
      %v1833 = vpop.f32.mrf.mxu0
      %v1834 = vadd.f32 %v1611, %v1833
      %1835 = vmatmul.bf16.gmra.mxu0 %v1754
      %v1836 = vpop.f32.mrf.mxu0
      %v1837 = vadd.f32 %v1614, %v1836
      %v1838 = vpop.f32.mrf.mxu0
      %v1839 = vadd.f32 %v1616, %v1838
      %1840 = vmatmul.bf16.gmra.mxu0 %v1757
      %v1841 = vpop.f32.mrf.mxu0
      %v1842 = vadd.f32 %v1619, %v1841
      %v1843 = vpop.f32.mrf.mxu0
      %v1844 = vadd.f32 %v1621, %v1843
      %1845 = vmatmul.bf16.gmra.mxu0 %v1760
      %v1846 = vpop.f32.mrf.mxu0
      %v1847 = vadd.f32 %v1624, %v1846
      %v1848 = vpop.f32.mrf.mxu0
      %v1849 = vadd.f32 %v1626, %v1848
      %1850 = vdwg.mxu0
      %v1851 = vld [vmem:[#allocation2] sm:$0xe]
      %v1852 = vld [vmem:[#allocation2 + $0xc] sm:$0xe]
      %v1853 = vld [vmem:[#allocation2 + $0x18] sm:$0xe]
      %v1854 = vld [vmem:[#allocation2 + $0x24] sm:$0xe]
      %v1855 = vld [vmem:[#allocation2 + $0x30] sm:$0xe]
      %v1856 = vld [vmem:[#allocation2 + $0x3c] sm:$0xe]
      %v1857 = vld [vmem:[#allocation2 + $0x48] sm:$0xe]
      %v1858 = vld [vmem:[#allocation2 + $0x54] sm:$0xe]
      %v1859 = vld [vmem:[#allocation2 + $0x60] sm:$0xe]
      %v1860 = vld [vmem:[#allocation2 + $0x6c] sm:$0xe]
      %v1861 = vld [vmem:[#allocation2 + $0x78] sm:$0xe]
      %v1862 = vld [vmem:[#allocation2 + $0x84] sm:$0xe]
      %v1863 = vld [vmem:[#allocation2 + $0x90] sm:$0xe]
      %v1864 = vld [vmem:[#allocation2 + $0x9c] sm:$0xe]
      %v1865 = vld [vmem:[#allocation2 + $0xa8] sm:$0xe]
      %v1866 = vld [vmem:[#allocation2 + $0xb4] sm:$0xe]
      %vm1899 = vcmask 1042432
      %vm1900 = vcmask 1046532
      %vm1901 = vmor %vm1899, %vm1900
      %v1902 = vrot.slane %v1851, 5
      %v1903 = vrot.slane %v1902, 4
      %v1904 = vrot.slane %v997, 5
      %v1905 = vsel %vm1901, %v1903, %v1904
      %v1906 = vrot.slane %v1904, 4
      %v1907 = vrot.slane %v1030, 5
      %v1908 = vsel %vm1901, %v1906, %v1907
      %v1909 = vrot.slane %v1852, 5
      %v1910 = vrot.slane %v1909, 4
      %v1911 = vrot.slane %v999, 5
      %v1912 = vsel %vm1901, %v1910, %v1911
      %v1913 = vrot.slane %v1911, 4
      %v1914 = vrot.slane %v1031, 5
      %v1915 = vsel %vm1901, %v1913, %v1914
      %v1916 = vrot.slane %v1853, 5
      %v1917 = vrot.slane %v1916, 4
      %v1918 = vrot.slane %v1001, 5
      %v1919 = vsel %vm1901, %v1917, %v1918
      %v1920 = vrot.slane %v1918, 4
      %v1921 = vrot.slane %v1032, 5
      %v1922 = vsel %vm1901, %v1920, %v1921
      %v1923 = vrot.slane %v1854, 5
      %v1924 = vrot.slane %v1923, 4
      %v1925 = vrot.slane %v1003, 5
      %v1926 = vsel %vm1901, %v1924, %v1925
      %v1927 = vrot.slane %v1925, 4
      %v1928 = vrot.slane %v1033, 5
      %v1929 = vsel %vm1901, %v1927, %v1928
      %v1930 = vrot.slane %v1855, 5
      %v1931 = vrot.slane %v1930, 4
      %v1932 = vrot.slane %v1005, 5
      %v1933 = vsel %vm1901, %v1931, %v1932
      %v1934 = vrot.slane %v1932, 4
      %v1935 = vrot.slane %v1034, 5
      %v1936 = vsel %vm1901, %v1934, %v1935
      %v1937 = vrot.slane %v1856, 5
      %v1938 = vrot.slane %v1937, 4
      %v1939 = vrot.slane %v1007, 5
      %v1940 = vsel %vm1901, %v1938, %v1939
      %v1941 = vrot.slane %v1939, 4
      %v1942 = vrot.slane %v1035, 5
      %v1943 = vsel %vm1901, %v1941, %v1942
      %v1944 = vrot.slane %v1857, 5
      %v1945 = vrot.slane %v1944, 4
      %v1946 = vrot.slane %v1009, 5
      %v1947 = vsel %vm1901, %v1945, %v1946
      %v1948 = vrot.slane %v1946, 4
      %v1949 = vrot.slane %v1036, 5
      %v1950 = vsel %vm1901, %v1948, %v1949
      %v1951 = vrot.slane %v1858, 5
      %v1952 = vrot.slane %v1951, 4
      %v1953 = vrot.slane %v1011, 5
      %v1954 = vsel %vm1901, %v1952, %v1953
      %v1955 = vrot.slane %v1953, 4
      %v1956 = vrot.slane %v1037, 5
      %v1957 = vsel %vm1901, %v1955, %v1956
      %v1958 = vrot.slane %v1859, 5
      %v1959 = vrot.slane %v1958, 4
      %v1960 = vrot.slane %v1013, 5
      %v1961 = vsel %vm1901, %v1959, %v1960
      %v1962 = vrot.slane %v1960, 4
      %v1963 = vrot.slane %v1038, 5
      %v1964 = vsel %vm1901, %v1962, %v1963
      %v1965 = vrot.slane %v1860, 5
      %v1966 = vrot.slane %v1965, 4
      %v1967 = vrot.slane %v1015, 5
      %v1968 = vsel %vm1901, %v1966, %v1967
      %v1969 = vrot.slane %v1967, 4
      %v1970 = vrot.slane %v1039, 5
      %v1971 = vsel %vm1901, %v1969, %v1970
      %v1972 = vrot.slane %v1861, 5
      %v1973 = vrot.slane %v1972, 4
      %v1974 = vrot.slane %v1017, 5
      %v1975 = vsel %vm1901, %v1973, %v1974
      %v1976 = vrot.slane %v1974, 4
      %v1977 = vrot.slane %v1040, 5
      %v1978 = vsel %vm1901, %v1976, %v1977
      %v1979 = vrot.slane %v1862, 5
      %v1980 = vrot.slane %v1979, 4
      %v1981 = vrot.slane %v1019, 5
      %v1982 = vsel %vm1901, %v1980, %v1981
      %v1983 = vrot.slane %v1981, 4
      %v1984 = vrot.slane %v1041, 5
      %v1985 = vsel %vm1901, %v1983, %v1984
      %v1986 = vrot.slane %v1863, 5
      %v1987 = vrot.slane %v1986, 4
      %v1988 = vrot.slane %v1021, 5
      %v1989 = vsel %vm1901, %v1987, %v1988
      %v1990 = vrot.slane %v1988, 4
      %v1991 = vrot.slane %v1042, 5
      %v1992 = vsel %vm1901, %v1990, %v1991
      %v1993 = vrot.slane %v1864, 5
      %v1994 = vrot.slane %v1993, 4
      %v1995 = vrot.slane %v1023, 5
      %v1996 = vsel %vm1901, %v1994, %v1995
      %v1997 = vrot.slane %v1995, 4
      %v1998 = vrot.slane %v1043, 5
      %v1999 = vsel %vm1901, %v1997, %v1998
      %v2000 = vrot.slane %v1865, 5
      %v2001 = vrot.slane %v2000, 4
      %v2002 = vrot.slane %v1025, 5
      %v2003 = vsel %vm1901, %v2001, %v2002
      %v2004 = vrot.slane %v2002, 4
      %v2005 = vrot.slane %v1044, 5
      %v2006 = vsel %vm1901, %v2004, %v2005
      %v2007 = vrot.slane %v1866, 5
      %v2008 = vrot.slane %v2007, 4
      %v2009 = vrot.slane %v1027, 5
      %v2010 = vsel %vm1901, %v2008, %v2009
      %v2011 = vrot.slane %v2009, 4
      %v2012 = vrot.slane %v1045, 5
      %v2013 = vsel %vm1901, %v2011, %v2012
      %s2014 = scalar_lea.vmem %s3, 16
      %v2015 = vld [vmem:[%s2014] sm:$0xf]
      %v2016 = vld [vmem:[%s2014 + $0x4] sm:$0xf]
      %v2017 = vunpack.c.l.b16 %v1905
      %v2018 = vunpack.c.l.b16 %v1908
      %v2019 = vunpack.c.l.b16 %v1912
      %v2020 = vunpack.c.l.b16 %v1915
      %v2021 = vunpack.c.l.b16 %v1919
      %v2022 = vunpack.c.l.b16 %v1922
      %v2023 = vunpack.c.l.b16 %v1926
      %v2024 = vunpack.c.l.b16 %v1929
      %v2025 = vunpack.c.l.b16 %v1933
      %v2026 = vunpack.c.l.b16 %v1936
      %v2027 = vunpack.c.l.b16 %v1940
      %v2028 = vunpack.c.l.b16 %v1943
      %v2029 = vunpack.c.l.b16 %v1947
      %v2030 = vunpack.c.l.b16 %v1950
      %v2031 = vunpack.c.l.b16 %v1954
      %v2032 = vunpack.c.l.b16 %v1957
      %v2033 = vunpack.c.l.b16 %v1961
      %v2034 = vunpack.c.l.b16 %v1964
      %v2035 = vunpack.c.l.b16 %v1968
      %v2036 = vunpack.c.l.b16 %v1971
      %v2037 = vunpack.c.l.b16 %v1975
      %v2038 = vunpack.c.l.b16 %v1978
      %v2039 = vunpack.c.l.b16 %v1982
      %v2040 = vunpack.c.l.b16 %v1985
      %v2041 = vunpack.c.l.b16 %v1989
      %v2042 = vunpack.c.l.b16 %v1992
      %v2043 = vunpack.c.l.b16 %v1996
      %v2044 = vunpack.c.l.b16 %v1999
      %v2045 = vunpack.c.l.b16 %v2003
      %v2046 = vunpack.c.l.b16 %v2006
      %v2047 = vunpack.c.l.b16 %v2010
      %v2048 = vunpack.c.l.b16 %v2013
      %v2049 = vpack.c.b16 %v2018, %v2017
      %v2050 = vpack.c.b16 %v2020, %v2019
      %v2051 = vpack.c.b16 %v2022, %v2021
      %v2052 = vpack.c.b16 %v2024, %v2023
      %v2053 = vpack.c.b16 %v2026, %v2025
      %v2054 = vpack.c.b16 %v2028, %v2027
      %v2055 = vpack.c.b16 %v2030, %v2029
      %v2056 = vpack.c.b16 %v2032, %v2031
      %v2057 = vpack.c.b16 %v2034, %v2033
      %v2058 = vpack.c.b16 %v2036, %v2035
      %v2059 = vpack.c.b16 %v2038, %v2037
      %v2060 = vpack.c.b16 %v2040, %v2039
      %v2061 = vpack.c.b16 %v2042, %v2041
      %v2062 = vpack.c.b16 %v2044, %v2043
      %v2063 = vpack.c.b16 %v2046, %v2045
      %v2064 = vpack.c.b16 %v2048, %v2047
      %v2067 = vunpack.c.l.b16 %v2015
      %v2068 = vunpack.c.l.b16 %v2016
      %v2069 = vpack.c.b16 %v2068, %v2067
      %v2072 = vsel %vm1490, %v2049, 0
      %v2075 = vsel %vm1490, %v2050, 0
      %v2078 = vsel %vm1490, %v2051, 0
      %v2081 = vsel %vm1490, %v2052, 0
      %v2084 = vsel %vm1490, %v2053, 0
      %v2087 = vsel %vm1490, %v2054, 0
      %v2090 = vsel %vm1490, %v2055, 0
      %v2093 = vsel %vm1490, %v2056, 0
      %v2096 = vsel %vm1490, %v2057, 0
      %v2099 = vsel %vm1490, %v2058, 0
      %v2102 = vsel %vm1490, %v2059, 0
      %v2105 = vsel %vm1490, %v2060, 0
      %v2108 = vsel %vm1490, %v2061, 0
      %v2111 = vsel %vm1490, %v2062, 0
      %v2114 = vsel %vm1490, %v2063, 0
      %v2117 = vsel %vm1490, %v2064, 0
      %2119 = vmatpush.bf16.msra.mxu0 0
      %2120 = vmatpush.bf16.msra.mxu0 0
      %2121 = vmatpush.bf16.msra.mxu0 0
      %2122 = vmatpush.bf16.msra.mxu0 0
      %2123 = vmatpush.bf16.msra.mxu0 0
      %2124 = vmatpush.bf16.msra.mxu0 0
      %2125 = vmatpush.bf16.msra.mxu0 0
      %2126 = vmatpush.bf16.msra.mxu0 %v2069
      %2127 = vmatmul.bf16.gmra.mxu0 %v2072
      %v2128 = vpop.f32.mrf.mxu0
      %v2129 = vadd.f32 0.0, %v2128
      %v2130 = vpop.f32.mrf.mxu0
      %v2131 = vadd.f32 0.0, %v2130
      %2132 = vmatmul.bf16.gmra.mxu0 %v2075
      %v2133 = vpop.f32.mrf.mxu0
      %v2134 = vadd.f32 0.0, %v2133
      %v2135 = vpop.f32.mrf.mxu0
      %v2136 = vadd.f32 0.0, %v2135
      %2137 = vmatmul.bf16.gmra.mxu0 %v2078
      %v2138 = vpop.f32.mrf.mxu0
      %v2139 = vadd.f32 0.0, %v2138
      %v2140 = vpop.f32.mrf.mxu0
      %v2141 = vadd.f32 0.0, %v2140
      %2142 = vmatmul.bf16.gmra.mxu0 %v2081
      %v2143 = vpop.f32.mrf.mxu0
      %v2144 = vadd.f32 0.0, %v2143
      %v2145 = vpop.f32.mrf.mxu0
      %v2146 = vadd.f32 0.0, %v2145
      %2147 = vmatmul.bf16.gmra.mxu0 %v2084
      %v2148 = vpop.f32.mrf.mxu0
      %v2149 = vadd.f32 0.0, %v2148
      %v2150 = vpop.f32.mrf.mxu0
      %v2151 = vadd.f32 0.0, %v2150
      %2152 = vmatmul.bf16.gmra.mxu0 %v2087
      %v2153 = vpop.f32.mrf.mxu0
      %v2154 = vadd.f32 0.0, %v2153
      %v2155 = vpop.f32.mrf.mxu0
      %v2156 = vadd.f32 0.0, %v2155
      %2157 = vmatmul.bf16.gmra.mxu0 %v2090
      %v2158 = vpop.f32.mrf.mxu0
      %v2159 = vadd.f32 0.0, %v2158
      %v2160 = vpop.f32.mrf.mxu0
      %v2161 = vadd.f32 0.0, %v2160
      %2162 = vmatmul.bf16.gmra.mxu0 %v2093
      %v2163 = vpop.f32.mrf.mxu0
      %v2164 = vadd.f32 0.0, %v2163
      %v2165 = vpop.f32.mrf.mxu0
      %v2166 = vadd.f32 0.0, %v2165
      %2167 = vmatmul.bf16.gmra.mxu0 %v2096
      %v2168 = vpop.f32.mrf.mxu0
      %v2169 = vadd.f32 0.0, %v2168
      %v2170 = vpop.f32.mrf.mxu0
      %v2171 = vadd.f32 0.0, %v2170
      %2172 = vmatmul.bf16.gmra.mxu0 %v2099
      %v2173 = vpop.f32.mrf.mxu0
      %v2174 = vadd.f32 0.0, %v2173
      %v2175 = vpop.f32.mrf.mxu0
      %v2176 = vadd.f32 0.0, %v2175
      %2177 = vmatmul.bf16.gmra.mxu0 %v2102
      %v2178 = vpop.f32.mrf.mxu0
      %v2179 = vadd.f32 0.0, %v2178
      %v2180 = vpop.f32.mrf.mxu0
      %v2181 = vadd.f32 0.0, %v2180
      %2182 = vmatmul.bf16.gmra.mxu0 %v2105
      %v2183 = vpop.f32.mrf.mxu0
      %v2184 = vadd.f32 0.0, %v2183
      %v2185 = vpop.f32.mrf.mxu0
      %v2186 = vadd.f32 0.0, %v2185
      %2187 = vmatmul.bf16.gmra.mxu0 %v2108
      %v2188 = vpop.f32.mrf.mxu0
      %v2189 = vadd.f32 0.0, %v2188
      %v2190 = vpop.f32.mrf.mxu0
      %v2191 = vadd.f32 0.0, %v2190
      %2192 = vmatmul.bf16.gmra.mxu0 %v2111
      %v2193 = vpop.f32.mrf.mxu0
      %v2194 = vadd.f32 0.0, %v2193
      %v2195 = vpop.f32.mrf.mxu0
      %v2196 = vadd.f32 0.0, %v2195
      %2197 = vmatmul.bf16.gmra.mxu0 %v2114
      %v2198 = vpop.f32.mrf.mxu0
      %v2199 = vadd.f32 0.0, %v2198
      %v2200 = vpop.f32.mrf.mxu0
      %v2201 = vadd.f32 0.0, %v2200
      %2202 = vmatmul.bf16.gmra.mxu0 %v2117
      %v2203 = vpop.f32.mrf.mxu0
      %v2204 = vadd.f32 0.0, %v2203
      %v2205 = vpop.f32.mrf.mxu0
      %v2206 = vadd.f32 0.0, %v2205
      %2207 = vdwg.mxu0
      %v2208 = vadd.f32 %v1772, %v2129
      %v2209 = vadd.f32 %v1774, %v2131
      %v2210 = vadd.f32 %v1777, %v2134
      %v2211 = vadd.f32 %v1779, %v2136
      %v2212 = vadd.f32 %v1782, %v2139
      %v2213 = vadd.f32 %v1784, %v2141
      %v2214 = vadd.f32 %v1787, %v2144
      %v2215 = vadd.f32 %v1789, %v2146
      %v2216 = vadd.f32 %v1792, %v2149
      %v2217 = vadd.f32 %v1794, %v2151
      %v2218 = vadd.f32 %v1797, %v2154
      %v2219 = vadd.f32 %v1799, %v2156
      %v2220 = vadd.f32 %v1802, %v2159
      %v2221 = vadd.f32 %v1804, %v2161
      %v2222 = vadd.f32 %v1807, %v2164
      %v2223 = vadd.f32 %v1809, %v2166
      %v2224 = vadd.f32 %v1812, %v2169
      %v2225 = vadd.f32 %v1814, %v2171
      %v2226 = vadd.f32 %v1817, %v2174
      %v2227 = vadd.f32 %v1819, %v2176
      %v2228 = vadd.f32 %v1822, %v2179
      %v2229 = vadd.f32 %v1824, %v2181
      %v2230 = vadd.f32 %v1827, %v2184
      %v2231 = vadd.f32 %v1829, %v2186
      %v2232 = vadd.f32 %v1832, %v2189
      %v2233 = vadd.f32 %v1834, %v2191
      %v2234 = vadd.f32 %v1837, %v2194
      %v2235 = vadd.f32 %v1839, %v2196
      %v2236 = vadd.f32 %v1842, %v2199
      %v2237 = vadd.f32 %v1844, %v2201
      %v2238 = vadd.f32 %v1847, %v2204
      %v2239 = vadd.f32 %v1849, %v2206
      %v2240 = vld [vmem:[%s881] sm:$0xf]
      %v2241 = vld [vmem:[%s881 + $0x4] sm:$0xf]
      %v2242 = vld [vmem:[%s881 + $0xc] sm:$0xf]
      %v2243 = vld [vmem:[%s881 + $0x10] sm:$0xf]
      %v2244 = vld [vmem:[%s881 + $0x18] sm:$0xf]
      %v2245 = vld [vmem:[%s881 + $0x1c] sm:$0xf]
      %v2246 = vld [vmem:[%s881 + $0x24] sm:$0xf]
      %v2247 = vld [vmem:[%s881 + $0x28] sm:$0xf]
      %v2248 = vld [vmem:[%s881 + $0x30] sm:$0xf]
      %v2249 = vld [vmem:[%s881 + $0x34] sm:$0xf]
      %v2250 = vld [vmem:[%s881 + $0x3c] sm:$0xf]
      %v2251 = vld [vmem:[%s881 + $0x40] sm:$0xf]
      %v2252 = vld [vmem:[%s881 + $0x48] sm:$0xf]
      %v2253 = vld [vmem:[%s881 + $0x4c] sm:$0xf]
      %v2254 = vld [vmem:[%s881 + $0x54] sm:$0xf]
      %v2255 = vld [vmem:[%s881 + $0x58] sm:$0xf]
      %v2256 = vld [vmem:[%s881 + $0x60] sm:$0xf]
      %v2257 = vld [vmem:[%s881 + $0x64] sm:$0xf]
      %v2258 = vld [vmem:[%s881 + $0x6c] sm:$0xf]
      %v2259 = vld [vmem:[%s881 + $0x70] sm:$0xf]
      %v2260 = vld [vmem:[%s881 + $0x78] sm:$0xf]
      %v2261 = vld [vmem:[%s881 + $0x7c] sm:$0xf]
      %v2262 = vld [vmem:[%s881 + $0x84] sm:$0xf]
      %v2263 = vld [vmem:[%s881 + $0x88] sm:$0xf]
      %v2264 = vld [vmem:[%s881 + $0x90] sm:$0xf]
      %v2265 = vld [vmem:[%s881 + $0x94] sm:$0xf]
      %v2266 = vld [vmem:[%s881 + $0x9c] sm:$0xf]
      %v2267 = vld [vmem:[%s881 + $0xa0] sm:$0xf]
      %v2268 = vld [vmem:[%s881 + $0xa8] sm:$0xf]
      %v2269 = vld [vmem:[%s881 + $0xac] sm:$0xf]
      %v2270 = vld [vmem:[%s881 + $0xb4] sm:$0xf]
      %v2271 = vld [vmem:[%s881 + $0xb8] sm:$0xf]
      %s2272 = scalar_lea.vmem %s3, 24
      %v2273 = vld [vmem:[%s2272] sm:$0xf]
      %v2274 = vld [vmem:[%s2272 + $0x4] sm:$0xf]
      %v2307 = vunpack.c.l.b16 %v2240
      %v2308 = vunpack.c.l.b16 %v2241
      %v2309 = vunpack.c.l.b16 %v2242
      %v2310 = vunpack.c.l.b16 %v2243
      %v2311 = vunpack.c.l.b16 %v2244
      %v2312 = vunpack.c.l.b16 %v2245
      %v2313 = vunpack.c.l.b16 %v2246
      %v2314 = vunpack.c.l.b16 %v2247
      %v2315 = vunpack.c.l.b16 %v2248
      %v2316 = vunpack.c.l.b16 %v2249
      %v2317 = vunpack.c.l.b16 %v2250
      %v2318 = vunpack.c.l.b16 %v2251
      %v2319 = vunpack.c.l.b16 %v2252
      %v2320 = vunpack.c.l.b16 %v2253
      %v2321 = vunpack.c.l.b16 %v2254
      %v2322 = vunpack.c.l.b16 %v2255
      %v2323 = vunpack.c.l.b16 %v2256
      %v2324 = vunpack.c.l.b16 %v2257
      %v2325 = vunpack.c.l.b16 %v2258
      %v2326 = vunpack.c.l.b16 %v2259
      %v2327 = vunpack.c.l.b16 %v2260
      %v2328 = vunpack.c.l.b16 %v2261
      %v2329 = vunpack.c.l.b16 %v2262
      %v2330 = vunpack.c.l.b16 %v2263
      %v2331 = vunpack.c.l.b16 %v2264
      %v2332 = vunpack.c.l.b16 %v2265
      %v2333 = vunpack.c.l.b16 %v2266
      %v2334 = vunpack.c.l.b16 %v2267
      %v2335 = vunpack.c.l.b16 %v2268
      %v2336 = vunpack.c.l.b16 %v2269
      %v2337 = vunpack.c.l.b16 %v2270
      %v2338 = vunpack.c.l.b16 %v2271
      %v2339 = vpack.c.b16 %v2308, %v2307
      %v2340 = vpack.c.b16 %v2310, %v2309
      %v2341 = vpack.c.b16 %v2312, %v2311
      %v2342 = vpack.c.b16 %v2314, %v2313
      %v2343 = vpack.c.b16 %v2316, %v2315
      %v2344 = vpack.c.b16 %v2318, %v2317
      %v2345 = vpack.c.b16 %v2320, %v2319
      %v2346 = vpack.c.b16 %v2322, %v2321
      %v2347 = vpack.c.b16 %v2324, %v2323
      %v2348 = vpack.c.b16 %v2326, %v2325
      %v2349 = vpack.c.b16 %v2328, %v2327
      %v2350 = vpack.c.b16 %v2330, %v2329
      %v2351 = vpack.c.b16 %v2332, %v2331
      %v2352 = vpack.c.b16 %v2334, %v2333
      %v2353 = vpack.c.b16 %v2336, %v2335
      %v2354 = vpack.c.b16 %v2338, %v2337
      %v2357 = vunpack.c.l.b16 %v2273
      %v2358 = vunpack.c.l.b16 %v2274
      %v2359 = vpack.c.b16 %v2358, %v2357
      %v2362 = vsel %vm1490, %v2339, 0
      %v2365 = vsel %vm1490, %v2340, 0
      %v2368 = vsel %vm1490, %v2341, 0
      %v2371 = vsel %vm1490, %v2342, 0
      %v2374 = vsel %vm1490, %v2343, 0
      %v2377 = vsel %vm1490, %v2344, 0
      %v2380 = vsel %vm1490, %v2345, 0
      %v2383 = vsel %vm1490, %v2346, 0
      %v2386 = vsel %vm1490, %v2347, 0
      %v2389 = vsel %vm1490, %v2348, 0
      %v2392 = vsel %vm1490, %v2349, 0
      %v2395 = vsel %vm1490, %v2350, 0
      %v2398 = vsel %vm1490, %v2351, 0
      %v2401 = vsel %vm1490, %v2352, 0
      %v2404 = vsel %vm1490, %v2353, 0
      %v2407 = vsel %vm1490, %v2354, 0
      %2409 = vmatpush.bf16.msra.mxu0 0
      %2410 = vmatpush.bf16.msra.mxu0 0
      %2411 = vmatpush.bf16.msra.mxu0 0
      %2412 = vmatpush.bf16.msra.mxu0 0
      %2413 = vmatpush.bf16.msra.mxu0 0
      %2414 = vmatpush.bf16.msra.mxu0 0
      %2415 = vmatpush.bf16.msra.mxu0 0
      %2416 = vmatpush.bf16.msra.mxu0 %v2359
      %2417 = vmatmul.bf16.gmra.mxu0 %v2362
      %v2418 = vpop.f32.mrf.mxu0
      %v2419 = vadd.f32 0.0, %v2418
      %v2420 = vpop.f32.mrf.mxu0
      %v2421 = vadd.f32 0.0, %v2420
      %2422 = vmatmul.bf16.gmra.mxu0 %v2365
      %v2423 = vpop.f32.mrf.mxu0
      %v2424 = vadd.f32 0.0, %v2423
      %v2425 = vpop.f32.mrf.mxu0
      %v2426 = vadd.f32 0.0, %v2425
      %2427 = vmatmul.bf16.gmra.mxu0 %v2368
      %v2428 = vpop.f32.mrf.mxu0
      %v2429 = vadd.f32 0.0, %v2428
      %v2430 = vpop.f32.mrf.mxu0
      %v2431 = vadd.f32 0.0, %v2430
      %2432 = vmatmul.bf16.gmra.mxu0 %v2371
      %v2433 = vpop.f32.mrf.mxu0
      %v2434 = vadd.f32 0.0, %v2433
      %v2435 = vpop.f32.mrf.mxu0
      %v2436 = vadd.f32 0.0, %v2435
      %2437 = vmatmul.bf16.gmra.mxu0 %v2374
      %v2438 = vpop.f32.mrf.mxu0
      %v2439 = vadd.f32 0.0, %v2438
      %v2440 = vpop.f32.mrf.mxu0
      %v2441 = vadd.f32 0.0, %v2440
      %2442 = vmatmul.bf16.gmra.mxu0 %v2377
      %v2443 = vpop.f32.mrf.mxu0
      %v2444 = vadd.f32 0.0, %v2443
      %v2445 = vpop.f32.mrf.mxu0
      %v2446 = vadd.f32 0.0, %v2445
      %2447 = vmatmul.bf16.gmra.mxu0 %v2380
      %v2448 = vpop.f32.mrf.mxu0
      %v2449 = vadd.f32 0.0, %v2448
      %v2450 = vpop.f32.mrf.mxu0
      %v2451 = vadd.f32 0.0, %v2450
      %2452 = vmatmul.bf16.gmra.mxu0 %v2383
      %v2453 = vpop.f32.mrf.mxu0
      %v2454 = vadd.f32 0.0, %v2453
      %v2455 = vpop.f32.mrf.mxu0
      %v2456 = vadd.f32 0.0, %v2455
      %2457 = vmatmul.bf16.gmra.mxu0 %v2386
      %v2458 = vpop.f32.mrf.mxu0
      %v2459 = vadd.f32 0.0, %v2458
      %v2460 = vpop.f32.mrf.mxu0
      %v2461 = vadd.f32 0.0, %v2460
      %2462 = vmatmul.bf16.gmra.mxu0 %v2389
      %v2463 = vpop.f32.mrf.mxu0
      %v2464 = vadd.f32 0.0, %v2463
      %v2465 = vpop.f32.mrf.mxu0
      %v2466 = vadd.f32 0.0, %v2465
      %2467 = vmatmul.bf16.gmra.mxu0 %v2392
      %v2468 = vpop.f32.mrf.mxu0
      %v2469 = vadd.f32 0.0, %v2468
      %v2470 = vpop.f32.mrf.mxu0
      %v2471 = vadd.f32 0.0, %v2470
      %2472 = vmatmul.bf16.gmra.mxu0 %v2395
      %v2473 = vpop.f32.mrf.mxu0
      %v2474 = vadd.f32 0.0, %v2473
      %v2475 = vpop.f32.mrf.mxu0
      %v2476 = vadd.f32 0.0, %v2475
      %2477 = vmatmul.bf16.gmra.mxu0 %v2398
      %v2478 = vpop.f32.mrf.mxu0
      %v2479 = vadd.f32 0.0, %v2478
      %v2480 = vpop.f32.mrf.mxu0
      %v2481 = vadd.f32 0.0, %v2480
      %2482 = vmatmul.bf16.gmra.mxu0 %v2401
      %v2483 = vpop.f32.mrf.mxu0
      %v2484 = vadd.f32 0.0, %v2483
      %v2485 = vpop.f32.mrf.mxu0
      %v2486 = vadd.f32 0.0, %v2485
      %2487 = vmatmul.bf16.gmra.mxu0 %v2404
      %v2488 = vpop.f32.mrf.mxu0
      %v2489 = vadd.f32 0.0, %v2488
      %v2490 = vpop.f32.mrf.mxu0
      %v2491 = vadd.f32 0.0, %v2490
      %2492 = vmatmul.bf16.gmra.mxu0 %v2407
      %v2493 = vpop.f32.mrf.mxu0
      %v2494 = vadd.f32 0.0, %v2493
      %v2495 = vpop.f32.mrf.mxu0
      %v2496 = vadd.f32 0.0, %v2495
      %2497 = vdwg.mxu0
      %v2498 = vadd.f32 %v2208, %v2419
      %v2499 = vadd.f32 %v2209, %v2421
      %v2500 = vadd.f32 %v2210, %v2424
      %v2501 = vadd.f32 %v2211, %v2426
      %v2502 = vadd.f32 %v2212, %v2429
      %v2503 = vadd.f32 %v2213, %v2431
      %v2504 = vadd.f32 %v2214, %v2434
      %v2505 = vadd.f32 %v2215, %v2436
      %v2506 = vadd.f32 %v2216, %v2439
      %v2507 = vadd.f32 %v2217, %v2441
      %v2508 = vadd.f32 %v2218, %v2444
      %v2509 = vadd.f32 %v2219, %v2446
      %v2510 = vadd.f32 %v2220, %v2449
      %v2511 = vadd.f32 %v2221, %v2451
      %v2512 = vadd.f32 %v2222, %v2454
      %v2513 = vadd.f32 %v2223, %v2456
      %v2514 = vadd.f32 %v2224, %v2459
      %v2515 = vadd.f32 %v2225, %v2461
      %v2516 = vadd.f32 %v2226, %v2464
      %v2517 = vadd.f32 %v2227, %v2466
      %v2518 = vadd.f32 %v2228, %v2469
      %v2519 = vadd.f32 %v2229, %v2471
      %v2520 = vadd.f32 %v2230, %v2474
      %v2521 = vadd.f32 %v2231, %v2476
      %v2522 = vadd.f32 %v2232, %v2479
      %v2523 = vadd.f32 %v2233, %v2481
      %v2524 = vadd.f32 %v2234, %v2484
      %v2525 = vadd.f32 %v2235, %v2486
      %v2526 = vadd.f32 %v2236, %v2489
      %v2527 = vadd.f32 %v2237, %v2491
      %v2528 = vadd.f32 %v2238, %v2494
      %v2529 = vadd.f32 %v2239, %v2496
      %v2530 = vld [vmem:[%s881] sm:$0xf]
      %v2531 = vld [vmem:[%s881 + $0x4] sm:$0xf]
      %v2532 = vld [vmem:[%s881 + $0x8] sm:$0x1]
      %v2533 = vld [vmem:[%s881 + $0xc] sm:$0xf]
      %v2534 = vld [vmem:[%s881 + $0x10] sm:$0xf]
      %v2535 = vld [vmem:[%s881 + $0x14] sm:$0x1]
      %v2536 = vld [vmem:[%s881 + $0x18] sm:$0xf]
      %v2537 = vld [vmem:[%s881 + $0x1c] sm:$0xf]
      %v2538 = vld [vmem:[%s881 + $0x20] sm:$0x1]
      %v2539 = vld [vmem:[%s881 + $0x24] sm:$0xf]
      %v2540 = vld [vmem:[%s881 + $0x28] sm:$0xf]
      %v2541 = vld [vmem:[%s881 + $0x2c] sm:$0x1]
      %v2542 = vld [vmem:[%s881 + $0x30] sm:$0xf]
      %v2543 = vld [vmem:[%s881 + $0x34] sm:$0xf]
      %v2544 = vld [vmem:[%s881 + $0x38] sm:$0x1]
      %v2545 = vld [vmem:[%s881 + $0x3c] sm:$0xf]
      %v2546 = vld [vmem:[%s881 + $0x40] sm:$0xf]
      %v2547 = vld [vmem:[%s881 + $0x44] sm:$0x1]
      %v2548 = vld [vmem:[%s881 + $0x48] sm:$0xf]
      %v2549 = vld [vmem:[%s881 + $0x4c] sm:$0xf]
      %v2550 = vld [vmem:[%s881 + $0x50] sm:$0x1]
      %v2551 = vld [vmem:[%s881 + $0x54] sm:$0xf]
      %v2552 = vld [vmem:[%s881 + $0x58] sm:$0xf]
      %v2553 = vld [vmem:[%s881 + $0x5c] sm:$0x1]
      %v2554 = vld [vmem:[%s881 + $0x60] sm:$0xf]
      %v2555 = vld [vmem:[%s881 + $0x64] sm:$0xf]
      %v2556 = vld [vmem:[%s881 + $0x68] sm:$0x1]
      %v2557 = vld [vmem:[%s881 + $0x6c] sm:$0xf]
      %v2558 = vld [vmem:[%s881 + $0x70] sm:$0xf]
      %v2559 = vld [vmem:[%s881 + $0x74] sm:$0x1]
      %v2560 = vld [vmem:[%s881 + $0x78] sm:$0xf]
      %v2561 = vld [vmem:[%s881 + $0x7c] sm:$0xf]
      %v2562 = vld [vmem:[%s881 + $0x80] sm:$0x1]
      %v2563 = vld [vmem:[%s881 + $0x84] sm:$0xf]
      %v2564 = vld [vmem:[%s881 + $0x88] sm:$0xf]
      %v2565 = vld [vmem:[%s881 + $0x8c] sm:$0x1]
      %v2566 = vld [vmem:[%s881 + $0x90] sm:$0xf]
      %v2567 = vld [vmem:[%s881 + $0x94] sm:$0xf]
      %v2568 = vld [vmem:[%s881 + $0x98] sm:$0x1]
      %v2569 = vld [vmem:[%s881 + $0x9c] sm:$0xf]
      %v2570 = vld [vmem:[%s881 + $0xa0] sm:$0xf]
      %v2571 = vld [vmem:[%s881 + $0xa4] sm:$0x1]
      %v2572 = vld [vmem:[%s881 + $0xa8] sm:$0xf]
      %v2573 = vld [vmem:[%s881 + $0xac] sm:$0xf]
      %v2574 = vld [vmem:[%s881 + $0xb0] sm:$0x1]
      %v2575 = vld [vmem:[%s881 + $0xb4] sm:$0xf]
      %v2576 = vld [vmem:[%s881 + $0xb8] sm:$0xf]
      %v2577 = vld [vmem:[%s881 + $0xbc] sm:$0x1]
      %v2579 = vshrl.u32 %v2530, 16
      %v2581 = vrot.slane %v2579, 4
      %v2582 = vshll.u32 %v2530, 16
      %v2584 = vrot.slane %v2582, 5
      %v2585 = vor.u32 %v2581, %v2584
      %v2586 = vrot.slane %v2585, 4
      %v2588 = vshll.u32 %v2531, 16
      %v2590 = vrot.slane %v2588, 5
      %v2591 = vsel %vm1048, %v2586, %v2590
      %v2592 = vshrl.u32 %v2531, 16
      %v2594 = vrot.slane %v2592, 4
      %v2595 = vor.u32 %v2594, %v2590
      %v2596 = vrot.slane %v2595, 4
      %v2598 = vshll.u32 %v2532, 16
      %v2600 = vrot.slane %v2598, 5
      %v2601 = vsel %vm1048, %v2596, %v2600
      %v2603 = vshrl.u32 %v2533, 16
      %v2605 = vrot.slane %v2603, 4
      %v2606 = vshll.u32 %v2533, 16
      %v2608 = vrot.slane %v2606, 5
      %v2609 = vor.u32 %v2605, %v2608
      %v2610 = vrot.slane %v2609, 4
      %v2612 = vshll.u32 %v2534, 16
      %v2614 = vrot.slane %v2612, 5
      %v2615 = vsel %vm1048, %v2610, %v2614
      %v2616 = vshrl.u32 %v2534, 16
      %v2618 = vrot.slane %v2616, 4
      %v2619 = vor.u32 %v2618, %v2614
      %v2620 = vrot.slane %v2619, 4
      %v2622 = vshll.u32 %v2535, 16
      %v2624 = vrot.slane %v2622, 5
      %v2625 = vsel %vm1048, %v2620, %v2624
      %v2627 = vshrl.u32 %v2536, 16
      %v2629 = vrot.slane %v2627, 4
      %v2630 = vshll.u32 %v2536, 16
      %v2632 = vrot.slane %v2630, 5
      %v2633 = vor.u32 %v2629, %v2632
      %v2634 = vrot.slane %v2633, 4
      %v2636 = vshll.u32 %v2537, 16
      %v2638 = vrot.slane %v2636, 5
      %v2639 = vsel %vm1048, %v2634, %v2638
      %v2640 = vshrl.u32 %v2537, 16
      %v2642 = vrot.slane %v2640, 4
      %v2643 = vor.u32 %v2642, %v2638
      %v2644 = vrot.slane %v2643, 4
      %v2646 = vshll.u32 %v2538, 16
      %v2648 = vrot.slane %v2646, 5
      %v2649 = vsel %vm1048, %v2644, %v2648
      %v2651 = vshrl.u32 %v2539, 16
      %v2653 = vrot.slane %v2651, 4
      %v2654 = vshll.u32 %v2539, 16
      %v2656 = vrot.slane %v2654, 5
      %v2657 = vor.u32 %v2653, %v2656
      %v2658 = vrot.slane %v2657, 4
      %v2660 = vshll.u32 %v2540, 16
      %v2662 = vrot.slane %v2660, 5
      %v2663 = vsel %vm1048, %v2658, %v2662
      %v2664 = vshrl.u32 %v2540, 16
      %v2666 = vrot.slane %v2664, 4
      %v2667 = vor.u32 %v2666, %v2662
      %v2668 = vrot.slane %v2667, 4
      %v2670 = vshll.u32 %v2541, 16
      %v2672 = vrot.slane %v2670, 5
      %v2673 = vsel %vm1048, %v2668, %v2672
      %v2675 = vshrl.u32 %v2542, 16
      %v2677 = vrot.slane %v2675, 4
      %v2678 = vshll.u32 %v2542, 16
      %v2680 = vrot.slane %v2678, 5
      %v2681 = vor.u32 %v2677, %v2680
      %v2682 = vrot.slane %v2681, 4
      %v2684 = vshll.u32 %v2543, 16
      %v2686 = vrot.slane %v2684, 5
      %v2687 = vsel %vm1048, %v2682, %v2686
      %v2688 = vshrl.u32 %v2543, 16
      %v2690 = vrot.slane %v2688, 4
      %v2691 = vor.u32 %v2690, %v2686
      %v2692 = vrot.slane %v2691, 4
      %v2694 = vshll.u32 %v2544, 16
      %v2696 = vrot.slane %v2694, 5
      %v2697 = vsel %vm1048, %v2692, %v2696
      %v2699 = vshrl.u32 %v2545, 16
      %v2701 = vrot.slane %v2699, 4
      %v2702 = vshll.u32 %v2545, 16
      %v2704 = vrot.slane %v2702, 5
      %v2705 = vor.u32 %v2701, %v2704
      %v2706 = vrot.slane %v2705, 4
      %v2708 = vshll.u32 %v2546, 16
      %v2710 = vrot.slane %v2708, 5
      %v2711 = vsel %vm1048, %v2706, %v2710
      %v2712 = vshrl.u32 %v2546, 16
      %v2714 = vrot.slane %v2712, 4
      %v2715 = vor.u32 %v2714, %v2710
      %v2716 = vrot.slane %v2715, 4
      %v2718 = vshll.u32 %v2547, 16
      %v2720 = vrot.slane %v2718, 5
      %v2721 = vsel %vm1048, %v2716, %v2720
      %v2723 = vshrl.u32 %v2548, 16
      %v2725 = vrot.slane %v2723, 4
      %v2726 = vshll.u32 %v2548, 16
      %v2728 = vrot.slane %v2726, 5
      %v2729 = vor.u32 %v2725, %v2728
      %v2730 = vrot.slane %v2729, 4
      %v2732 = vshll.u32 %v2549, 16
      %v2734 = vrot.slane %v2732, 5
      %v2735 = vsel %vm1048, %v2730, %v2734
      %v2736 = vshrl.u32 %v2549, 16
      %v2738 = vrot.slane %v2736, 4
      %v2739 = vor.u32 %v2738, %v2734
      %v2740 = vrot.slane %v2739, 4
      %v2742 = vshll.u32 %v2550, 16
      %v2744 = vrot.slane %v2742, 5
      %v2745 = vsel %vm1048, %v2740, %v2744
      %v2747 = vshrl.u32 %v2551, 16
      %v2749 = vrot.slane %v2747, 4
      %v2750 = vshll.u32 %v2551, 16
      %v2752 = vrot.slane %v2750, 5
      %v2753 = vor.u32 %v2749, %v2752
      %v2754 = vrot.slane %v2753, 4
      %v2756 = vshll.u32 %v2552, 16
      %v2758 = vrot.slane %v2756, 5
      %v2759 = vsel %vm1048, %v2754, %v2758
      %v2760 = vshrl.u32 %v2552, 16
      %v2762 = vrot.slane %v2760, 4
      %v2763 = vor.u32 %v2762, %v2758
      %v2764 = vrot.slane %v2763, 4
      %v2766 = vshll.u32 %v2553, 16
      %v2768 = vrot.slane %v2766, 5
      %v2769 = vsel %vm1048, %v2764, %v2768
      %v2771 = vshrl.u32 %v2554, 16
      %v2773 = vrot.slane %v2771, 4
      %v2774 = vshll.u32 %v2554, 16
      %v2776 = vrot.slane %v2774, 5
      %v2777 = vor.u32 %v2773, %v2776
      %v2778 = vrot.slane %v2777, 4
      %v2780 = vshll.u32 %v2555, 16
      %v2782 = vrot.slane %v2780, 5
      %v2783 = vsel %vm1048, %v2778, %v2782
      %v2784 = vshrl.u32 %v2555, 16
      %v2786 = vrot.slane %v2784, 4
      %v2787 = vor.u32 %v2786, %v2782
      %v2788 = vrot.slane %v2787, 4
      %v2790 = vshll.u32 %v2556, 16
      %v2792 = vrot.slane %v2790, 5
      %v2793 = vsel %vm1048, %v2788, %v2792
      %v2795 = vshrl.u32 %v2557, 16
      %v2797 = vrot.slane %v2795, 4
      %v2798 = vshll.u32 %v2557, 16
      %v2800 = vrot.slane %v2798, 5
      %v2801 = vor.u32 %v2797, %v2800
      %v2802 = vrot.slane %v2801, 4
      %v2804 = vshll.u32 %v2558, 16
      %v2806 = vrot.slane %v2804, 5
      %v2807 = vsel %vm1048, %v2802, %v2806
      %v2808 = vshrl.u32 %v2558, 16
      %v2810 = vrot.slane %v2808, 4
      %v2811 = vor.u32 %v2810, %v2806
      %v2812 = vrot.slane %v2811, 4
      %v2814 = vshll.u32 %v2559, 16
      %v2816 = vrot.slane %v2814, 5
      %v2817 = vsel %vm1048, %v2812, %v2816
      %v2819 = vshrl.u32 %v2560, 16
      %v2821 = vrot.slane %v2819, 4
      %v2822 = vshll.u32 %v2560, 16
      %v2824 = vrot.slane %v2822, 5
      %v2825 = vor.u32 %v2821, %v2824
      %v2826 = vrot.slane %v2825, 4
      %v2828 = vshll.u32 %v2561, 16
      %v2830 = vrot.slane %v2828, 5
      %v2831 = vsel %vm1048, %v2826, %v2830
      %v2832 = vshrl.u32 %v2561, 16
      %v2834 = vrot.slane %v2832, 4
      %v2835 = vor.u32 %v2834, %v2830
      %v2836 = vrot.slane %v2835, 4
      %v2838 = vshll.u32 %v2562, 16
      %v2840 = vrot.slane %v2838, 5
      %v2841 = vsel %vm1048, %v2836, %v2840
      %v2843 = vshrl.u32 %v2563, 16
      %v2845 = vrot.slane %v2843, 4
      %v2846 = vshll.u32 %v2563, 16
      %v2848 = vrot.slane %v2846, 5
      %v2849 = vor.u32 %v2845, %v2848
      %v2850 = vrot.slane %v2849, 4
      %v2852 = vshll.u32 %v2564, 16
      %v2854 = vrot.slane %v2852, 5
      %v2855 = vsel %vm1048, %v2850, %v2854
      %v2856 = vshrl.u32 %v2564, 16
      %v2858 = vrot.slane %v2856, 4
      %v2859 = vor.u32 %v2858, %v2854
      %v2860 = vrot.slane %v2859, 4
      %v2862 = vshll.u32 %v2565, 16
      %v2864 = vrot.slane %v2862, 5
      %v2865 = vsel %vm1048, %v2860, %v2864
      %v2867 = vshrl.u32 %v2566, 16
      %v2869 = vrot.slane %v2867, 4
      %v2870 = vshll.u32 %v2566, 16
      %v2872 = vrot.slane %v2870, 5
      %v2873 = vor.u32 %v2869, %v2872
      %v2874 = vrot.slane %v2873, 4
      %v2876 = vshll.u32 %v2567, 16
      %v2878 = vrot.slane %v2876, 5
      %v2879 = vsel %vm1048, %v2874, %v2878
      %v2880 = vshrl.u32 %v2567, 16
      %v2882 = vrot.slane %v2880, 4
      %v2883 = vor.u32 %v2882, %v2878
      %v2884 = vrot.slane %v2883, 4
      %v2886 = vshll.u32 %v2568, 16
      %v2888 = vrot.slane %v2886, 5
      %v2889 = vsel %vm1048, %v2884, %v2888
      %v2891 = vshrl.u32 %v2569, 16
      %v2893 = vrot.slane %v2891, 4
      %v2894 = vshll.u32 %v2569, 16
      %v2896 = vrot.slane %v2894, 5
      %v2897 = vor.u32 %v2893, %v2896
      %v2898 = vrot.slane %v2897, 4
      %v2900 = vshll.u32 %v2570, 16
      %v2902 = vrot.slane %v2900, 5
      %v2903 = vsel %vm1048, %v2898, %v2902
      %v2904 = vshrl.u32 %v2570, 16
      %v2906 = vrot.slane %v2904, 4
      %v2907 = vor.u32 %v2906, %v2902
      %v2908 = vrot.slane %v2907, 4
      %v2910 = vshll.u32 %v2571, 16
      %v2912 = vrot.slane %v2910, 5
      %v2913 = vsel %vm1048, %v2908, %v2912
      %v2915 = vshrl.u32 %v2572, 16
      %v2917 = vrot.slane %v2915, 4
      %v2918 = vshll.u32 %v2572, 16
      %v2920 = vrot.slane %v2918, 5
      %v2921 = vor.u32 %v2917, %v2920
      %v2922 = vrot.slane %v2921, 4
      %v2924 = vshll.u32 %v2573, 16
      %v2926 = vrot.slane %v2924, 5
      %v2927 = vsel %vm1048, %v2922, %v2926
      %v2928 = vshrl.u32 %v2573, 16
      %v2930 = vrot.slane %v2928, 4
      %v2931 = vor.u32 %v2930, %v2926
      %v2932 = vrot.slane %v2931, 4
      %v2934 = vshll.u32 %v2574, 16
      %v2936 = vrot.slane %v2934, 5
      %v2937 = vsel %vm1048, %v2932, %v2936
      %v2939 = vshrl.u32 %v2575, 16
      %v2941 = vrot.slane %v2939, 4
      %v2942 = vshll.u32 %v2575, 16
      %v2944 = vrot.slane %v2942, 5
      %v2945 = vor.u32 %v2941, %v2944
      %v2946 = vrot.slane %v2945, 4
      %v2948 = vshll.u32 %v2576, 16
      %v2950 = vrot.slane %v2948, 5
      %v2951 = vsel %vm1048, %v2946, %v2950
      %v2952 = vshrl.u32 %v2576, 16
      %v2954 = vrot.slane %v2952, 4
      %v2955 = vor.u32 %v2954, %v2950
      %v2956 = vrot.slane %v2955, 4
      %v2958 = vshll.u32 %v2577, 16
      %v2960 = vrot.slane %v2958, 5
      %v2961 = vsel %vm1048, %v2956, %v2960
      %s2962 = scalar_lea.vmem %s3, 32
      %v2963 = vld [vmem:[%s2962] sm:$0xf]
      %v2964 = vld [vmem:[%s2962 + $0x4] sm:$0xf]
      %v2965 = vunpack.c.l.b16 %v2591
      %v2966 = vunpack.c.l.b16 %v2601
      %v2967 = vunpack.c.l.b16 %v2615
      %v2968 = vunpack.c.l.b16 %v2625
      %v2969 = vunpack.c.l.b16 %v2639
      %v2970 = vunpack.c.l.b16 %v2649
      %v2971 = vunpack.c.l.b16 %v2663
      %v2972 = vunpack.c.l.b16 %v2673
      %v2973 = vunpack.c.l.b16 %v2687
      %v2974 = vunpack.c.l.b16 %v2697
      %v2975 = vunpack.c.l.b16 %v2711
      %v2976 = vunpack.c.l.b16 %v2721
      %v2977 = vunpack.c.l.b16 %v2735
      %v2978 = vunpack.c.l.b16 %v2745
      %v2979 = vunpack.c.l.b16 %v2759
      %v2980 = vunpack.c.l.b16 %v2769
      %v2981 = vunpack.c.l.b16 %v2783
      %v2982 = vunpack.c.l.b16 %v2793
      %v2983 = vunpack.c.l.b16 %v2807
      %v2984 = vunpack.c.l.b16 %v2817
      %v2985 = vunpack.c.l.b16 %v2831
      %v2986 = vunpack.c.l.b16 %v2841
      %v2987 = vunpack.c.l.b16 %v2855
      %v2988 = vunpack.c.l.b16 %v2865
      %v2989 = vunpack.c.l.b16 %v2879
      %v2990 = vunpack.c.l.b16 %v2889
      %v2991 = vunpack.c.l.b16 %v2903
      %v2992 = vunpack.c.l.b16 %v2913
      %v2993 = vunpack.c.l.b16 %v2927
      %v2994 = vunpack.c.l.b16 %v2937
      %v2995 = vunpack.c.l.b16 %v2951
      %v2996 = vunpack.c.l.b16 %v2961
      %v2997 = vpack.c.b16 %v2966, %v2965
      %v2998 = vpack.c.b16 %v2968, %v2967
      %v2999 = vpack.c.b16 %v2970, %v2969
      %v3000 = vpack.c.b16 %v2972, %v2971
      %v3001 = vpack.c.b16 %v2974, %v2973
      %v3002 = vpack.c.b16 %v2976, %v2975
      %v3003 = vpack.c.b16 %v2978, %v2977
      %v3004 = vpack.c.b16 %v2980, %v2979
      %v3005 = vpack.c.b16 %v2982, %v2981
      %v3006 = vpack.c.b16 %v2984, %v2983
      %v3007 = vpack.c.b16 %v2986, %v2985
      %v3008 = vpack.c.b16 %v2988, %v2987
      %v3009 = vpack.c.b16 %v2990, %v2989
      %v3010 = vpack.c.b16 %v2992, %v2991
      %v3011 = vpack.c.b16 %v2994, %v2993
      %v3012 = vpack.c.b16 %v2996, %v2995
      %v3015 = vunpack.c.l.b16 %v2963
      %v3016 = vunpack.c.l.b16 %v2964
      %v3017 = vpack.c.b16 %v3016, %v3015
      %v3020 = vsel %vm1490, %v2997, 0
      %v3023 = vsel %vm1490, %v2998, 0
      %v3026 = vsel %vm1490, %v2999, 0
      %v3029 = vsel %vm1490, %v3000, 0
      %v3032 = vsel %vm1490, %v3001, 0
      %v3035 = vsel %vm1490, %v3002, 0
      %v3038 = vsel %vm1490, %v3003, 0
      %v3041 = vsel %vm1490, %v3004, 0
      %v3044 = vsel %vm1490, %v3005, 0
      %v3047 = vsel %vm1490, %v3006, 0
      %v3050 = vsel %vm1490, %v3007, 0
      %v3053 = vsel %vm1490, %v3008, 0
      %v3056 = vsel %vm1490, %v3009, 0
      %v3059 = vsel %vm1490, %v3010, 0
      %v3062 = vsel %vm1490, %v3011, 0
      %v3065 = vsel %vm1490, %v3012, 0
      %3067 = vmatpush.bf16.msra.mxu0 0
      %3068 = vmatpush.bf16.msra.mxu0 0
      %3069 = vmatpush.bf16.msra.mxu0 0
      %3070 = vmatpush.bf16.msra.mxu0 0
      %3071 = vmatpush.bf16.msra.mxu0 0
      %3072 = vmatpush.bf16.msra.mxu0 0
      %3073 = vmatpush.bf16.msra.mxu0 0
      %3074 = vmatpush.bf16.msra.mxu0 %v3017
      %3075 = vmatmul.bf16.gmra.mxu0 %v3020
      %v3076 = vpop.f32.mrf.mxu0
      %v3077 = vadd.f32 0.0, %v3076
      %v3078 = vpop.f32.mrf.mxu0
      %v3079 = vadd.f32 0.0, %v3078
      %3080 = vmatmul.bf16.gmra.mxu0 %v3023
      %v3081 = vpop.f32.mrf.mxu0
      %v3082 = vadd.f32 0.0, %v3081
      %v3083 = vpop.f32.mrf.mxu0
      %v3084 = vadd.f32 0.0, %v3083
      %3085 = vmatmul.bf16.gmra.mxu0 %v3026
      %v3086 = vpop.f32.mrf.mxu0
      %v3087 = vadd.f32 0.0, %v3086
      %v3088 = vpop.f32.mrf.mxu0
      %v3089 = vadd.f32 0.0, %v3088
      %3090 = vmatmul.bf16.gmra.mxu0 %v3029
      %v3091 = vpop.f32.mrf.mxu0
      %v3092 = vadd.f32 0.0, %v3091
      %v3093 = vpop.f32.mrf.mxu0
      %v3094 = vadd.f32 0.0, %v3093
      %3095 = vmatmul.bf16.gmra.mxu0 %v3032
      %v3096 = vpop.f32.mrf.mxu0
      %v3097 = vadd.f32 0.0, %v3096
      %v3098 = vpop.f32.mrf.mxu0
      %v3099 = vadd.f32 0.0, %v3098
      %3100 = vmatmul.bf16.gmra.mxu0 %v3035
      %v3101 = vpop.f32.mrf.mxu0
      %v3102 = vadd.f32 0.0, %v3101
      %v3103 = vpop.f32.mrf.mxu0
      %v3104 = vadd.f32 0.0, %v3103
      %3105 = vmatmul.bf16.gmra.mxu0 %v3038
      %v3106 = vpop.f32.mrf.mxu0
      %v3107 = vadd.f32 0.0, %v3106
      %v3108 = vpop.f32.mrf.mxu0
      %v3109 = vadd.f32 0.0, %v3108
      %3110 = vmatmul.bf16.gmra.mxu0 %v3041
      %v3111 = vpop.f32.mrf.mxu0
      %v3112 = vadd.f32 0.0, %v3111
      %v3113 = vpop.f32.mrf.mxu0
      %v3114 = vadd.f32 0.0, %v3113
      %3115 = vmatmul.bf16.gmra.mxu0 %v3044
      %v3116 = vpop.f32.mrf.mxu0
      %v3117 = vadd.f32 0.0, %v3116
      %v3118 = vpop.f32.mrf.mxu0
      %v3119 = vadd.f32 0.0, %v3118
      %3120 = vmatmul.bf16.gmra.mxu0 %v3047
      %v3121 = vpop.f32.mrf.mxu0
      %v3122 = vadd.f32 0.0, %v3121
      %v3123 = vpop.f32.mrf.mxu0
      %v3124 = vadd.f32 0.0, %v3123
      %3125 = vmatmul.bf16.gmra.mxu0 %v3050
      %v3126 = vpop.f32.mrf.mxu0
      %v3127 = vadd.f32 0.0, %v3126
      %v3128 = vpop.f32.mrf.mxu0
      %v3129 = vadd.f32 0.0, %v3128
      %3130 = vmatmul.bf16.gmra.mxu0 %v3053
      %v3131 = vpop.f32.mrf.mxu0
      %v3132 = vadd.f32 0.0, %v3131
      %v3133 = vpop.f32.mrf.mxu0
      %v3134 = vadd.f32 0.0, %v3133
      %3135 = vmatmul.bf16.gmra.mxu0 %v3056
      %v3136 = vpop.f32.mrf.mxu0
      %v3137 = vadd.f32 0.0, %v3136
      %v3138 = vpop.f32.mrf.mxu0
      %v3139 = vadd.f32 0.0, %v3138
      %3140 = vmatmul.bf16.gmra.mxu0 %v3059
      %v3141 = vpop.f32.mrf.mxu0
      %v3142 = vadd.f32 0.0, %v3141
      %v3143 = vpop.f32.mrf.mxu0
      %v3144 = vadd.f32 0.0, %v3143
      %3145 = vmatmul.bf16.gmra.mxu0 %v3062
      %v3146 = vpop.f32.mrf.mxu0
      %v3147 = vadd.f32 0.0, %v3146
      %v3148 = vpop.f32.mrf.mxu0
      %v3149 = vadd.f32 0.0, %v3148
      %3150 = vmatmul.bf16.gmra.mxu0 %v3065
      %v3151 = vpop.f32.mrf.mxu0
      %v3152 = vadd.f32 0.0, %v3151
      %v3153 = vpop.f32.mrf.mxu0
      %v3154 = vadd.f32 0.0, %v3153
      %3155 = vdwg.mxu0
      %v3156 = vadd.f32 %v2498, %v3077
      %v3157 = vadd.f32 %v2499, %v3079
      %v3158 = vadd.f32 %v2500, %v3082
      %v3159 = vadd.f32 %v2501, %v3084
      %v3160 = vadd.f32 %v2502, %v3087
      %v3161 = vadd.f32 %v2503, %v3089
      %v3162 = vadd.f32 %v2504, %v3092
      %v3163 = vadd.f32 %v2505, %v3094
      %v3164 = vadd.f32 %v2506, %v3097
      %v3165 = vadd.f32 %v2507, %v3099
      %v3166 = vadd.f32 %v2508, %v3102
      %v3167 = vadd.f32 %v2509, %v3104
      %v3168 = vadd.f32 %v2510, %v3107
      %v3169 = vadd.f32 %v2511, %v3109
      %v3170 = vadd.f32 %v2512, %v3112
      %v3171 = vadd.f32 %v2513, %v3114
      %v3172 = vadd.f32 %v2514, %v3117
      %v3173 = vadd.f32 %v2515, %v3119
      %v3174 = vadd.f32 %v2516, %v3122
      %v3175 = vadd.f32 %v2517, %v3124
      %v3176 = vadd.f32 %v2518, %v3127
      %v3177 = vadd.f32 %v2519, %v3129
      %v3178 = vadd.f32 %v2520, %v3132
      %v3179 = vadd.f32 %v2521, %v3134
      %v3180 = vadd.f32 %v2522, %v3137
      %v3181 = vadd.f32 %v2523, %v3139
      %v3182 = vadd.f32 %v2524, %v3142
      %v3183 = vadd.f32 %v2525, %v3144
      %v3184 = vadd.f32 %v2526, %v3147
      %v3185 = vadd.f32 %v2527, %v3149
      %v3186 = vadd.f32 %v2528, %v3152
      %v3187 = vadd.f32 %v2529, %v3154
      %v3188 = vld [vmem:[%s881] sm:$0xe]
      %v3189 = vld [vmem:[%s881 + $0xc] sm:$0xe]
      %v3190 = vld [vmem:[%s881 + $0x18] sm:$0xe]
      %v3191 = vld [vmem:[%s881 + $0x24] sm:$0xe]
      %v3192 = vld [vmem:[%s881 + $0x30] sm:$0xe]
      %v3193 = vld [vmem:[%s881 + $0x3c] sm:$0xe]
      %v3194 = vld [vmem:[%s881 + $0x48] sm:$0xe]
      %v3195 = vld [vmem:[%s881 + $0x54] sm:$0xe]
      %v3196 = vld [vmem:[%s881 + $0x60] sm:$0xe]
      %v3197 = vld [vmem:[%s881 + $0x6c] sm:$0xe]
      %v3198 = vld [vmem:[%s881 + $0x78] sm:$0xe]
      %v3199 = vld [vmem:[%s881 + $0x84] sm:$0xe]
      %v3200 = vld [vmem:[%s881 + $0x90] sm:$0xe]
      %v3201 = vld [vmem:[%s881 + $0x9c] sm:$0xe]
      %v3202 = vld [vmem:[%s881 + $0xa8] sm:$0xe]
      %v3203 = vld [vmem:[%s881 + $0xb4] sm:$0xe]
      %v3252 = vrot.slane %v3188, 5
      %v3253 = vrot.slane %v3252, 4
      %v3254 = vrot.slane %v2531, 5
      %v3255 = vsel %vm1901, %v3253, %v3254
      %v3256 = vrot.slane %v3254, 4
      %v3257 = vrot.slane %v2532, 5
      %v3258 = vsel %vm1901, %v3256, %v3257
      %v3259 = vrot.slane %v3189, 5
      %v3260 = vrot.slane %v3259, 4
      %v3261 = vrot.slane %v2534, 5
      %v3262 = vsel %vm1901, %v3260, %v3261
      %v3263 = vrot.slane %v3261, 4
      %v3264 = vrot.slane %v2535, 5
      %v3265 = vsel %vm1901, %v3263, %v3264
      %v3266 = vrot.slane %v3190, 5
      %v3267 = vrot.slane %v3266, 4
      %v3268 = vrot.slane %v2537, 5
      %v3269 = vsel %vm1901, %v3267, %v3268
      %v3270 = vrot.slane %v3268, 4
      %v3271 = vrot.slane %v2538, 5
      %v3272 = vsel %vm1901, %v3270, %v3271
      %v3273 = vrot.slane %v3191, 5
      %v3274 = vrot.slane %v3273, 4
      %v3275 = vrot.slane %v2540, 5
      %v3276 = vsel %vm1901, %v3274, %v3275
      %v3277 = vrot.slane %v3275, 4
      %v3278 = vrot.slane %v2541, 5
      %v3279 = vsel %vm1901, %v3277, %v3278
      %v3280 = vrot.slane %v3192, 5
      %v3281 = vrot.slane %v3280, 4
      %v3282 = vrot.slane %v2543, 5
      %v3283 = vsel %vm1901, %v3281, %v3282
      %v3284 = vrot.slane %v3282, 4
      %v3285 = vrot.slane %v2544, 5
      %v3286 = vsel %vm1901, %v3284, %v3285
      %v3287 = vrot.slane %v3193, 5
      %v3288 = vrot.slane %v3287, 4
      %v3289 = vrot.slane %v2546, 5
      %v3290 = vsel %vm1901, %v3288, %v3289
      %v3291 = vrot.slane %v3289, 4
      %v3292 = vrot.slane %v2547, 5
      %v3293 = vsel %vm1901, %v3291, %v3292
      %v3294 = vrot.slane %v3194, 5
      %v3295 = vrot.slane %v3294, 4
      %v3296 = vrot.slane %v2549, 5
      %v3297 = vsel %vm1901, %v3295, %v3296
      %v3298 = vrot.slane %v3296, 4
      %v3299 = vrot.slane %v2550, 5
      %v3300 = vsel %vm1901, %v3298, %v3299
      %v3301 = vrot.slane %v3195, 5
      %v3302 = vrot.slane %v3301, 4
      %v3303 = vrot.slane %v2552, 5
      %v3304 = vsel %vm1901, %v3302, %v3303
      %v3305 = vrot.slane %v3303, 4
      %v3306 = vrot.slane %v2553, 5
      %v3307 = vsel %vm1901, %v3305, %v3306
      %v3308 = vrot.slane %v3196, 5
      %v3309 = vrot.slane %v3308, 4
      %v3310 = vrot.slane %v2555, 5
      %v3311 = vsel %vm1901, %v3309, %v3310
      %v3312 = vrot.slane %v3310, 4
      %v3313 = vrot.slane %v2556, 5
      %v3314 = vsel %vm1901, %v3312, %v3313
      %v3315 = vrot.slane %v3197, 5
      %v3316 = vrot.slane %v3315, 4
      %v3317 = vrot.slane %v2558, 5
      %v3318 = vsel %vm1901, %v3316, %v3317
      %v3319 = vrot.slane %v3317, 4
      %v3320 = vrot.slane %v2559, 5
      %v3321 = vsel %vm1901, %v3319, %v3320
      %v3322 = vrot.slane %v3198, 5
      %v3323 = vrot.slane %v3322, 4
      %v3324 = vrot.slane %v2561, 5
      %v3325 = vsel %vm1901, %v3323, %v3324
      %v3326 = vrot.slane %v3324, 4
      %v3327 = vrot.slane %v2562, 5
      %v3328 = vsel %vm1901, %v3326, %v3327
      %v3329 = vrot.slane %v3199, 5
      %v3330 = vrot.slane %v3329, 4
      %v3331 = vrot.slane %v2564, 5
      %v3332 = vsel %vm1901, %v3330, %v3331
      %v3333 = vrot.slane %v3331, 4
      %v3334 = vrot.slane %v2565, 5
      %v3335 = vsel %vm1901, %v3333, %v3334
      %v3336 = vrot.slane %v3200, 5
      %v3337 = vrot.slane %v3336, 4
      %v3338 = vrot.slane %v2567, 5
      %v3339 = vsel %vm1901, %v3337, %v3338
      %v3340 = vrot.slane %v3338, 4
      %v3341 = vrot.slane %v2568, 5
      %v3342 = vsel %vm1901, %v3340, %v3341
      %v3343 = vrot.slane %v3201, 5
      %v3344 = vrot.slane %v3343, 4
      %v3345 = vrot.slane %v2570, 5
      %v3346 = vsel %vm1901, %v3344, %v3345
      %v3347 = vrot.slane %v3345, 4
      %v3348 = vrot.slane %v2571, 5
      %v3349 = vsel %vm1901, %v3347, %v3348
      %v3350 = vrot.slane %v3202, 5
      %v3351 = vrot.slane %v3350, 4
      %v3352 = vrot.slane %v2573, 5
      %v3353 = vsel %vm1901, %v3351, %v3352
      %v3354 = vrot.slane %v3352, 4
      %v3355 = vrot.slane %v2574, 5
      %v3356 = vsel %vm1901, %v3354, %v3355
      %v3357 = vrot.slane %v3203, 5
      %v3358 = vrot.slane %v3357, 4
      %v3359 = vrot.slane %v2576, 5
      %v3360 = vsel %vm1901, %v3358, %v3359
      %v3361 = vrot.slane %v3359, 4
      %v3362 = vrot.slane %v2577, 5
      %v3363 = vsel %vm1901, %v3361, %v3362
      %s3364 = scalar_lea.vmem %s3, 40
      %v3365 = vld [vmem:[%s3364] sm:$0xf]
      %v3366 = vld [vmem:[%s3364 + $0x4] sm:$0xf]
      %v3367 = vunpack.c.l.b16 %v3255
      %v3368 = vunpack.c.l.b16 %v3258
      %v3369 = vunpack.c.l.b16 %v3262
      %v3370 = vunpack.c.l.b16 %v3265
      %v3371 = vunpack.c.l.b16 %v3269
      %v3372 = vunpack.c.l.b16 %v3272
      %v3373 = vunpack.c.l.b16 %v3276
      %v3374 = vunpack.c.l.b16 %v3279
      %v3375 = vunpack.c.l.b16 %v3283
      %v3376 = vunpack.c.l.b16 %v3286
      %v3377 = vunpack.c.l.b16 %v3290
      %v3378 = vunpack.c.l.b16 %v3293
      %v3379 = vunpack.c.l.b16 %v3297
      %v3380 = vunpack.c.l.b16 %v3300
      %v3381 = vunpack.c.l.b16 %v3304
      %v3382 = vunpack.c.l.b16 %v3307
      %v3383 = vunpack.c.l.b16 %v3311
      %v3384 = vunpack.c.l.b16 %v3314
      %v3385 = vunpack.c.l.b16 %v3318
      %v3386 = vunpack.c.l.b16 %v3321
      %v3387 = vunpack.c.l.b16 %v3325
      %v3388 = vunpack.c.l.b16 %v3328
      %v3389 = vunpack.c.l.b16 %v3332
      %v3390 = vunpack.c.l.b16 %v3335
      %v3391 = vunpack.c.l.b16 %v3339
      %v3392 = vunpack.c.l.b16 %v3342
      %v3393 = vunpack.c.l.b16 %v3346
      %v3394 = vunpack.c.l.b16 %v3349
      %v3395 = vunpack.c.l.b16 %v3353
      %v3396 = vunpack.c.l.b16 %v3356
      %v3397 = vunpack.c.l.b16 %v3360
      %v3398 = vunpack.c.l.b16 %v3363
      %v3399 = vpack.c.b16 %v3368, %v3367
      %v3400 = vpack.c.b16 %v3370, %v3369
      %v3401 = vpack.c.b16 %v3372, %v3371
      %v3402 = vpack.c.b16 %v3374, %v3373
      %v3403 = vpack.c.b16 %v3376, %v3375
      %v3404 = vpack.c.b16 %v3378, %v3377
      %v3405 = vpack.c.b16 %v3380, %v3379
      %v3406 = vpack.c.b16 %v3382, %v3381
      %v3407 = vpack.c.b16 %v3384, %v3383
      %v3408 = vpack.c.b16 %v3386, %v3385
      %v3409 = vpack.c.b16 %v3388, %v3387
      %v3410 = vpack.c.b16 %v3390, %v3389
      %v3411 = vpack.c.b16 %v3392, %v3391
      %v3412 = vpack.c.b16 %v3394, %v3393
      %v3413 = vpack.c.b16 %v3396, %v3395
      %v3414 = vpack.c.b16 %v3398, %v3397
      %v3417 = vunpack.c.l.b16 %v3365
      %v3418 = vunpack.c.l.b16 %v3366
      %v3419 = vpack.c.b16 %v3418, %v3417
      %v3422 = vsel %vm1490, %v3399, 0
      %v3425 = vsel %vm1490, %v3400, 0
      %v3428 = vsel %vm1490, %v3401, 0
      %v3431 = vsel %vm1490, %v3402, 0
      %v3434 = vsel %vm1490, %v3403, 0
      %v3437 = vsel %vm1490, %v3404, 0
      %v3440 = vsel %vm1490, %v3405, 0
      %v3443 = vsel %vm1490, %v3406, 0
      %v3446 = vsel %vm1490, %v3407, 0
      %v3449 = vsel %vm1490, %v3408, 0
      %v3452 = vsel %vm1490, %v3409, 0
      %v3455 = vsel %vm1490, %v3410, 0
      %v3458 = vsel %vm1490, %v3411, 0
      %v3461 = vsel %vm1490, %v3412, 0
      %v3464 = vsel %vm1490, %v3413, 0
      %v3467 = vsel %vm1490, %v3414, 0
      %3469 = vmatpush.bf16.msra.mxu0 0
      %3470 = vmatpush.bf16.msra.mxu0 0
      %3471 = vmatpush.bf16.msra.mxu0 0
      %3472 = vmatpush.bf16.msra.mxu0 0
      %3473 = vmatpush.bf16.msra.mxu0 0
      %3474 = vmatpush.bf16.msra.mxu0 0
      %3475 = vmatpush.bf16.msra.mxu0 0
      %3476 = vmatpush.bf16.msra.mxu0 %v3419
      %3477 = vmatmul.bf16.gmra.mxu0 %v3422
      %v3478 = vpop.f32.mrf.mxu0
      %v3479 = vadd.f32 0.0, %v3478
      %v3480 = vpop.f32.mrf.mxu0
      %v3481 = vadd.f32 0.0, %v3480
      %3482 = vmatmul.bf16.gmra.mxu0 %v3425
      %v3483 = vpop.f32.mrf.mxu0
      %v3484 = vadd.f32 0.0, %v3483
      %v3485 = vpop.f32.mrf.mxu0
      %v3486 = vadd.f32 0.0, %v3485
      %3487 = vmatmul.bf16.gmra.mxu0 %v3428
      %v3488 = vpop.f32.mrf.mxu0
      %v3489 = vadd.f32 0.0, %v3488
      %v3490 = vpop.f32.mrf.mxu0
      %v3491 = vadd.f32 0.0, %v3490
      %3492 = vmatmul.bf16.gmra.mxu0 %v3431
      %v3493 = vpop.f32.mrf.mxu0
      %v3494 = vadd.f32 0.0, %v3493
      %v3495 = vpop.f32.mrf.mxu0
      %v3496 = vadd.f32 0.0, %v3495
      %3497 = vmatmul.bf16.gmra.mxu0 %v3434
      %v3498 = vpop.f32.mrf.mxu0
      %v3499 = vadd.f32 0.0, %v3498
      %v3500 = vpop.f32.mrf.mxu0
      %v3501 = vadd.f32 0.0, %v3500
      %3502 = vmatmul.bf16.gmra.mxu0 %v3437
      %v3503 = vpop.f32.mrf.mxu0
      %v3504 = vadd.f32 0.0, %v3503
      %v3505 = vpop.f32.mrf.mxu0
      %v3506 = vadd.f32 0.0, %v3505
      %3507 = vmatmul.bf16.gmra.mxu0 %v3440
      %v3508 = vpop.f32.mrf.mxu0
      %v3509 = vadd.f32 0.0, %v3508
      %v3510 = vpop.f32.mrf.mxu0
      %v3511 = vadd.f32 0.0, %v3510
      %3512 = vmatmul.bf16.gmra.mxu0 %v3443
      %v3513 = vpop.f32.mrf.mxu0
      %v3514 = vadd.f32 0.0, %v3513
      %v3515 = vpop.f32.mrf.mxu0
      %v3516 = vadd.f32 0.0, %v3515
      %3517 = vmatmul.bf16.gmra.mxu0 %v3446
      %v3518 = vpop.f32.mrf.mxu0
      %v3519 = vadd.f32 0.0, %v3518
      %v3520 = vpop.f32.mrf.mxu0
      %v3521 = vadd.f32 0.0, %v3520
      %3522 = vmatmul.bf16.gmra.mxu0 %v3449
      %v3523 = vpop.f32.mrf.mxu0
      %v3524 = vadd.f32 0.0, %v3523
      %v3525 = vpop.f32.mrf.mxu0
      %v3526 = vadd.f32 0.0, %v3525
      %3527 = vmatmul.bf16.gmra.mxu0 %v3452
      %v3528 = vpop.f32.mrf.mxu0
      %v3529 = vadd.f32 0.0, %v3528
      %v3530 = vpop.f32.mrf.mxu0
      %v3531 = vadd.f32 0.0, %v3530
      %3532 = vmatmul.bf16.gmra.mxu0 %v3455
      %v3533 = vpop.f32.mrf.mxu0
      %v3534 = vadd.f32 0.0, %v3533
      %v3535 = vpop.f32.mrf.mxu0
      %v3536 = vadd.f32 0.0, %v3535
      %3537 = vmatmul.bf16.gmra.mxu0 %v3458
      %v3538 = vpop.f32.mrf.mxu0
      %v3539 = vadd.f32 0.0, %v3538
      %v3540 = vpop.f32.mrf.mxu0
      %v3541 = vadd.f32 0.0, %v3540
      %3542 = vmatmul.bf16.gmra.mxu0 %v3461
      %v3543 = vpop.f32.mrf.mxu0
      %v3544 = vadd.f32 0.0, %v3543
      %v3545 = vpop.f32.mrf.mxu0
      %v3546 = vadd.f32 0.0, %v3545
      %3547 = vmatmul.bf16.gmra.mxu0 %v3464
      %v3548 = vpop.f32.mrf.mxu0
      %v3549 = vadd.f32 0.0, %v3548
      %v3550 = vpop.f32.mrf.mxu0
      %v3551 = vadd.f32 0.0, %v3550
      %3552 = vmatmul.bf16.gmra.mxu0 %v3467
      %v3553 = vpop.f32.mrf.mxu0
      %v3554 = vadd.f32 0.0, %v3553
      %v3555 = vpop.f32.mrf.mxu0
      %v3556 = vadd.f32 0.0, %v3555
      %3557 = vdwg.mxu0
      %v3558 = vadd.f32 %v3156, %v3479
      %v3559 = vadd.f32 %v3157, %v3481
      %v3560 = vadd.f32 %v3158, %v3484
      %v3561 = vadd.f32 %v3159, %v3486
      %v3562 = vadd.f32 %v3160, %v3489
      %v3563 = vadd.f32 %v3161, %v3491
      %v3564 = vadd.f32 %v3162, %v3494
      %v3565 = vadd.f32 %v3163, %v3496
      %v3566 = vadd.f32 %v3164, %v3499
      %v3567 = vadd.f32 %v3165, %v3501
      %v3568 = vadd.f32 %v3166, %v3504
      %v3569 = vadd.f32 %v3167, %v3506
      %v3570 = vadd.f32 %v3168, %v3509
      %v3571 = vadd.f32 %v3169, %v3511
      %v3572 = vadd.f32 %v3170, %v3514
      %v3573 = vadd.f32 %v3171, %v3516
      %v3574 = vadd.f32 %v3172, %v3519
      %v3575 = vadd.f32 %v3173, %v3521
      %v3576 = vadd.f32 %v3174, %v3524
      %v3577 = vadd.f32 %v3175, %v3526
      %v3578 = vadd.f32 %v3176, %v3529
      %v3579 = vadd.f32 %v3177, %v3531
      %v3580 = vadd.f32 %v3178, %v3534
      %v3581 = vadd.f32 %v3179, %v3536
      %v3582 = vadd.f32 %v3180, %v3539
      %v3583 = vadd.f32 %v3181, %v3541
      %v3584 = vadd.f32 %v3182, %v3544
      %v3585 = vadd.f32 %v3183, %v3546
      %v3586 = vadd.f32 %v3184, %v3549
      %v3587 = vadd.f32 %v3185, %v3551
      %v3588 = vadd.f32 %v3186, %v3554
      %v3589 = vadd.f32 %v3187, %v3556
      %s3590 = scalar_lea.vmem [#allocation2], 24
      %v3591 = vld [vmem:[%s3590] sm:$0xf]
      %v3592 = vld [vmem:[%s3590 + $0x4] sm:$0xf]
      %v3593 = vld [vmem:[%s3590 + $0xc] sm:$0xf]
      %v3594 = vld [vmem:[%s3590 + $0x10] sm:$0xf]
      %v3595 = vld [vmem:[%s3590 + $0x18] sm:$0xf]
      %v3596 = vld [vmem:[%s3590 + $0x1c] sm:$0xf]
      %v3597 = vld [vmem:[%s3590 + $0x24] sm:$0xf]
      %v3598 = vld [vmem:[%s3590 + $0x28] sm:$0xf]
      %v3599 = vld [vmem:[%s3590 + $0x30] sm:$0xf]
      %v3600 = vld [vmem:[%s3590 + $0x34] sm:$0xf]
      %v3601 = vld [vmem:[%s3590 + $0x3c] sm:$0xf]
      %v3602 = vld [vmem:[%s3590 + $0x40] sm:$0xf]
      %v3603 = vld [vmem:[%s3590 + $0x48] sm:$0xf]
      %v3604 = vld [vmem:[%s3590 + $0x4c] sm:$0xf]
      %v3605 = vld [vmem:[%s3590 + $0x54] sm:$0xf]
      %v3606 = vld [vmem:[%s3590 + $0x58] sm:$0xf]
      %v3607 = vld [vmem:[%s3590 + $0x60] sm:$0xf]
      %v3608 = vld [vmem:[%s3590 + $0x64] sm:$0xf]
      %v3609 = vld [vmem:[%s3590 + $0x6c] sm:$0xf]
      %v3610 = vld [vmem:[%s3590 + $0x70] sm:$0xf]
      %v3611 = vld [vmem:[%s3590 + $0x78] sm:$0xf]
      %v3612 = vld [vmem:[%s3590 + $0x7c] sm:$0xf]
      %v3613 = vld [vmem:[%s3590 + $0x84] sm:$0xf]
      %v3614 = vld [vmem:[%s3590 + $0x88] sm:$0xf]
      %v3615 = vld [vmem:[%s3590 + $0x90] sm:$0xf]
      %v3616 = vld [vmem:[%s3590 + $0x94] sm:$0xf]
      %v3617 = vld [vmem:[%s3590 + $0x9c] sm:$0xf]
      %v3618 = vld [vmem:[%s3590 + $0xa0] sm:$0xf]
      %v3619 = vld [vmem:[%s3590 + $0xa8] sm:$0xf]
      %v3620 = vld [vmem:[%s3590 + $0xac] sm:$0xf]
      %v3621 = vld [vmem:[%s3590 + $0xb4] sm:$0xf]
      %v3622 = vld [vmem:[%s3590 + $0xb8] sm:$0xf]
      %s3623 = scalar_lea.vmem %s3, 48
      %v3624 = vld [vmem:[%s3623] sm:$0xf]
      %v3625 = vld [vmem:[%s3623 + $0x4] sm:$0xf]
      %v3658 = vunpack.c.l.b16 %v3591
      %v3659 = vunpack.c.l.b16 %v3592
      %v3660 = vunpack.c.l.b16 %v3593
      %v3661 = vunpack.c.l.b16 %v3594
      %v3662 = vunpack.c.l.b16 %v3595
      %v3663 = vunpack.c.l.b16 %v3596
      %v3664 = vunpack.c.l.b16 %v3597
      %v3665 = vunpack.c.l.b16 %v3598
      %v3666 = vunpack.c.l.b16 %v3599
      %v3667 = vunpack.c.l.b16 %v3600
      %v3668 = vunpack.c.l.b16 %v3601
      %v3669 = vunpack.c.l.b16 %v3602
      %v3670 = vunpack.c.l.b16 %v3603
      %v3671 = vunpack.c.l.b16 %v3604
      %v3672 = vunpack.c.l.b16 %v3605
      %v3673 = vunpack.c.l.b16 %v3606
      %v3674 = vunpack.c.l.b16 %v3607
      %v3675 = vunpack.c.l.b16 %v3608
      %v3676 = vunpack.c.l.b16 %v3609
      %v3677 = vunpack.c.l.b16 %v3610
      %v3678 = vunpack.c.l.b16 %v3611
      %v3679 = vunpack.c.l.b16 %v3612
      %v3680 = vunpack.c.l.b16 %v3613
      %v3681 = vunpack.c.l.b16 %v3614
      %v3682 = vunpack.c.l.b16 %v3615
      %v3683 = vunpack.c.l.b16 %v3616
      %v3684 = vunpack.c.l.b16 %v3617
      %v3685 = vunpack.c.l.b16 %v3618
      %v3686 = vunpack.c.l.b16 %v3619
      %v3687 = vunpack.c.l.b16 %v3620
      %v3688 = vunpack.c.l.b16 %v3621
      %v3689 = vunpack.c.l.b16 %v3622
      %v3690 = vpack.c.b16 %v3659, %v3658
      %v3691 = vpack.c.b16 %v3661, %v3660
      %v3692 = vpack.c.b16 %v3663, %v3662
      %v3693 = vpack.c.b16 %v3665, %v3664
      %v3694 = vpack.c.b16 %v3667, %v3666
      %v3695 = vpack.c.b16 %v3669, %v3668
      %v3696 = vpack.c.b16 %v3671, %v3670
      %v3697 = vpack.c.b16 %v3673, %v3672
      %v3698 = vpack.c.b16 %v3675, %v3674
      %v3699 = vpack.c.b16 %v3677, %v3676
      %v3700 = vpack.c.b16 %v3679, %v3678
      %v3701 = vpack.c.b16 %v3681, %v3680
      %v3702 = vpack.c.b16 %v3683, %v3682
      %v3703 = vpack.c.b16 %v3685, %v3684
      %v3704 = vpack.c.b16 %v3687, %v3686
      %v3705 = vpack.c.b16 %v3689, %v3688
      %v3708 = vunpack.c.l.b16 %v3624
      %v3709 = vunpack.c.l.b16 %v3625
      %v3710 = vpack.c.b16 %v3709, %v3708
      %v3713 = vsel %vm1490, %v3690, 0
      %v3716 = vsel %vm1490, %v3691, 0
      %v3719 = vsel %vm1490, %v3692, 0
      %v3722 = vsel %vm1490, %v3693, 0
      %v3725 = vsel %vm1490, %v3694, 0
      %v3728 = vsel %vm1490, %v3695, 0
      %v3731 = vsel %vm1490, %v3696, 0
      %v3734 = vsel %vm1490, %v3697, 0
      %v3737 = vsel %vm1490, %v3698, 0
      %v3740 = vsel %vm1490, %v3699, 0
      %v3743 = vsel %vm1490, %v3700, 0
      %v3746 = vsel %vm1490, %v3701, 0
      %v3749 = vsel %vm1490, %v3702, 0
      %v3752 = vsel %vm1490, %v3703, 0
      %v3755 = vsel %vm1490, %v3704, 0
      %v3758 = vsel %vm1490, %v3705, 0
      %3760 = vmatpush.bf16.msra.mxu0 0
      %3761 = vmatpush.bf16.msra.mxu0 0
      %3762 = vmatpush.bf16.msra.mxu0 0
      %3763 = vmatpush.bf16.msra.mxu0 0
      %3764 = vmatpush.bf16.msra.mxu0 0
      %3765 = vmatpush.bf16.msra.mxu0 0
      %3766 = vmatpush.bf16.msra.mxu0 0
      %3767 = vmatpush.bf16.msra.mxu0 %v3710
      %3768 = vmatmul.bf16.gmra.mxu0 %v3713
      %v3769 = vpop.f32.mrf.mxu0
      %v3770 = vadd.f32 0.0, %v3769
      %v3771 = vpop.f32.mrf.mxu0
      %v3772 = vadd.f32 0.0, %v3771
      %3773 = vmatmul.bf16.gmra.mxu0 %v3716
      %v3774 = vpop.f32.mrf.mxu0
      %v3775 = vadd.f32 0.0, %v3774
      %v3776 = vpop.f32.mrf.mxu0
      %v3777 = vadd.f32 0.0, %v3776
      %3778 = vmatmul.bf16.gmra.mxu0 %v3719
      %v3779 = vpop.f32.mrf.mxu0
      %v3780 = vadd.f32 0.0, %v3779
      %v3781 = vpop.f32.mrf.mxu0
      %v3782 = vadd.f32 0.0, %v3781
      %3783 = vmatmul.bf16.gmra.mxu0 %v3722
      %v3784 = vpop.f32.mrf.mxu0
      %v3785 = vadd.f32 0.0, %v3784
      %v3786 = vpop.f32.mrf.mxu0
      %v3787 = vadd.f32 0.0, %v3786
      %3788 = vmatmul.bf16.gmra.mxu0 %v3725
      %v3789 = vpop.f32.mrf.mxu0
      %v3790 = vadd.f32 0.0, %v3789
      %v3791 = vpop.f32.mrf.mxu0
      %v3792 = vadd.f32 0.0, %v3791
      %3793 = vmatmul.bf16.gmra.mxu0 %v3728
      %v3794 = vpop.f32.mrf.mxu0
      %v3795 = vadd.f32 0.0, %v3794
      %v3796 = vpop.f32.mrf.mxu0
      %v3797 = vadd.f32 0.0, %v3796
      %3798 = vmatmul.bf16.gmra.mxu0 %v3731
      %v3799 = vpop.f32.mrf.mxu0
      %v3800 = vadd.f32 0.0, %v3799
      %v3801 = vpop.f32.mrf.mxu0
      %v3802 = vadd.f32 0.0, %v3801
      %3803 = vmatmul.bf16.gmra.mxu0 %v3734
      %v3804 = vpop.f32.mrf.mxu0
      %v3805 = vadd.f32 0.0, %v3804
      %v3806 = vpop.f32.mrf.mxu0
      %v3807 = vadd.f32 0.0, %v3806
      %3808 = vmatmul.bf16.gmra.mxu0 %v3737
      %v3809 = vpop.f32.mrf.mxu0
      %v3810 = vadd.f32 0.0, %v3809
      %v3811 = vpop.f32.mrf.mxu0
      %v3812 = vadd.f32 0.0, %v3811
      %3813 = vmatmul.bf16.gmra.mxu0 %v3740
      %v3814 = vpop.f32.mrf.mxu0
      %v3815 = vadd.f32 0.0, %v3814
      %v3816 = vpop.f32.mrf.mxu0
      %v3817 = vadd.f32 0.0, %v3816
      %3818 = vmatmul.bf16.gmra.mxu0 %v3743
      %v3819 = vpop.f32.mrf.mxu0
      %v3820 = vadd.f32 0.0, %v3819
      %v3821 = vpop.f32.mrf.mxu0
      %v3822 = vadd.f32 0.0, %v3821
      %3823 = vmatmul.bf16.gmra.mxu0 %v3746
      %v3824 = vpop.f32.mrf.mxu0
      %v3825 = vadd.f32 0.0, %v3824
      %v3826 = vpop.f32.mrf.mxu0
      %v3827 = vadd.f32 0.0, %v3826
      %3828 = vmatmul.bf16.gmra.mxu0 %v3749
      %v3829 = vpop.f32.mrf.mxu0
      %v3830 = vadd.f32 0.0, %v3829
      %v3831 = vpop.f32.mrf.mxu0
      %v3832 = vadd.f32 0.0, %v3831
      %3833 = vmatmul.bf16.gmra.mxu0 %v3752
      %v3834 = vpop.f32.mrf.mxu0
      %v3835 = vadd.f32 0.0, %v3834
      %v3836 = vpop.f32.mrf.mxu0
      %v3837 = vadd.f32 0.0, %v3836
      %3838 = vmatmul.bf16.gmra.mxu0 %v3755
      %v3839 = vpop.f32.mrf.mxu0
      %v3840 = vadd.f32 0.0, %v3839
      %v3841 = vpop.f32.mrf.mxu0
      %v3842 = vadd.f32 0.0, %v3841
      %3843 = vmatmul.bf16.gmra.mxu0 %v3758
      %v3844 = vpop.f32.mrf.mxu0
      %v3845 = vadd.f32 0.0, %v3844
      %v3846 = vpop.f32.mrf.mxu0
      %v3847 = vadd.f32 0.0, %v3846
      %3848 = vdwg.mxu0
      %v3849 = vadd.f32 %v3558, %v3770
      %v3850 = vadd.f32 %v3559, %v3772
      %v3851 = vadd.f32 %v3560, %v3775
      %v3852 = vadd.f32 %v3561, %v3777
      %v3853 = vadd.f32 %v3562, %v3780
      %v3854 = vadd.f32 %v3563, %v3782
      %v3855 = vadd.f32 %v3564, %v3785
      %v3856 = vadd.f32 %v3565, %v3787
      %v3857 = vadd.f32 %v3566, %v3790
      %v3858 = vadd.f32 %v3567, %v3792
      %v3859 = vadd.f32 %v3568, %v3795
      %v3860 = vadd.f32 %v3569, %v3797
      %v3861 = vadd.f32 %v3570, %v3800
      %v3862 = vadd.f32 %v3571, %v3802
      %v3863 = vadd.f32 %v3572, %v3805
      %v3864 = vadd.f32 %v3573, %v3807
      %v3865 = vadd.f32 %v3574, %v3810
      %v3866 = vadd.f32 %v3575, %v3812
      %v3867 = vadd.f32 %v3576, %v3815
      %v3868 = vadd.f32 %v3577, %v3817
      %v3869 = vadd.f32 %v3578, %v3820
      %v3870 = vadd.f32 %v3579, %v3822
      %v3871 = vadd.f32 %v3580, %v3825
      %v3872 = vadd.f32 %v3581, %v3827
      %v3873 = vadd.f32 %v3582, %v3830
      %v3874 = vadd.f32 %v3583, %v3832
      %v3875 = vadd.f32 %v3584, %v3835
      %v3876 = vadd.f32 %v3585, %v3837
      %v3877 = vadd.f32 %v3586, %v3840
      %v3878 = vadd.f32 %v3587, %v3842
      %v3879 = vadd.f32 %v3588, %v3845
      %v3880 = vadd.f32 %v3589, %v3847
      %v3881 = vld [vmem:[%s3590] sm:$0xf]
      %v3882 = vld [vmem:[%s3590 + $0x4] sm:$0xf]
      %v3883 = vld [vmem:[%s3590 + $0x8] sm:$0x1]
      %v3884 = vld [vmem:[%s3590 + $0xc] sm:$0xf]
      %v3885 = vld [vmem:[%s3590 + $0x10] sm:$0xf]
      %v3886 = vld [vmem:[%s3590 + $0x14] sm:$0x1]
      %v3887 = vld [vmem:[%s3590 + $0x18] sm:$0xf]
      %v3888 = vld [vmem:[%s3590 + $0x1c] sm:$0xf]
      %v3889 = vld [vmem:[%s3590 + $0x20] sm:$0x1]
      %v3890 = vld [vmem:[%s3590 + $0x24] sm:$0xf]
      %v3891 = vld [vmem:[%s3590 + $0x28] sm:$0xf]
      %v3892 = vld [vmem:[%s3590 + $0x2c] sm:$0x1]
      %v3893 = vld [vmem:[%s3590 + $0x30] sm:$0xf]
      %v3894 = vld [vmem:[%s3590 + $0x34] sm:$0xf]
      %v3895 = vld [vmem:[%s3590 + $0x38] sm:$0x1]
      %v3896 = vld [vmem:[%s3590 + $0x3c] sm:$0xf]
      %v3897 = vld [vmem:[%s3590 + $0x40] sm:$0xf]
      %v3898 = vld [vmem:[%s3590 + $0x44] sm:$0x1]
      %v3899 = vld [vmem:[%s3590 + $0x48] sm:$0xf]
      %v3900 = vld [vmem:[%s3590 + $0x4c] sm:$0xf]
      %v3901 = vld [vmem:[%s3590 + $0x50] sm:$0x1]
      %v3902 = vld [vmem:[%s3590 + $0x54] sm:$0xf]
      %v3903 = vld [vmem:[%s3590 + $0x58] sm:$0xf]
      %v3904 = vld [vmem:[%s3590 + $0x5c] sm:$0x1]
      %v3905 = vld [vmem:[%s3590 + $0x60] sm:$0xf]
      %v3906 = vld [vmem:[%s3590 + $0x64] sm:$0xf]
      %v3907 = vld [vmem:[%s3590 + $0x68] sm:$0x1]
      %v3908 = vld [vmem:[%s3590 + $0x6c] sm:$0xf]
      %v3909 = vld [vmem:[%s3590 + $0x70] sm:$0xf]
      %v3910 = vld [vmem:[%s3590 + $0x74] sm:$0x1]
      %v3911 = vld [vmem:[%s3590 + $0x78] sm:$0xf]
      %v3912 = vld [vmem:[%s3590 + $0x7c] sm:$0xf]
      %v3913 = vld [vmem:[%s3590 + $0x80] sm:$0x1]
      %v3914 = vld [vmem:[%s3590 + $0x84] sm:$0xf]
      %v3915 = vld [vmem:[%s3590 + $0x88] sm:$0xf]
      %v3916 = vld [vmem:[%s3590 + $0x8c] sm:$0x1]
      %v3917 = vld [vmem:[%s3590 + $0x90] sm:$0xf]
      %v3918 = vld [vmem:[%s3590 + $0x94] sm:$0xf]
      %v3919 = vld [vmem:[%s3590 + $0x98] sm:$0x1]
      %v3920 = vld [vmem:[%s3590 + $0x9c] sm:$0xf]
      %v3921 = vld [vmem:[%s3590 + $0xa0] sm:$0xf]
      %v3922 = vld [vmem:[%s3590 + $0xa4] sm:$0x1]
      %v3923 = vld [vmem:[%s3590 + $0xa8] sm:$0xf]
      %v3924 = vld [vmem:[%s3590 + $0xac] sm:$0xf]
      %v3925 = vld [vmem:[%s3590 + $0xb0] sm:$0x1]
      %v3926 = vld [vmem:[%s3590 + $0xb4] sm:$0xf]
      %v3927 = vld [vmem:[%s3590 + $0xb8] sm:$0xf]
      %v3928 = vld [vmem:[%s3590 + $0xbc] sm:$0x1]
      %v3930 = vshrl.u32 %v3881, 16
      %v3932 = vrot.slane %v3930, 4
      %v3933 = vshll.u32 %v3881, 16
      %v3935 = vrot.slane %v3933, 5
      %v3936 = vor.u32 %v3932, %v3935
      %v3937 = vrot.slane %v3936, 4
      %v3939 = vshll.u32 %v3882, 16
      %v3941 = vrot.slane %v3939, 5
      %v3942 = vsel %vm1048, %v3937, %v3941
      %v3943 = vshrl.u32 %v3882, 16
      %v3945 = vrot.slane %v3943, 4
      %v3946 = vor.u32 %v3945, %v3941
      %v3947 = vrot.slane %v3946, 4
      %v3949 = vshll.u32 %v3883, 16
      %v3951 = vrot.slane %v3949, 5
      %v3952 = vsel %vm1048, %v3947, %v3951
      %v3954 = vshrl.u32 %v3884, 16
      %v3956 = vrot.slane %v3954, 4
      %v3957 = vshll.u32 %v3884, 16
      %v3959 = vrot.slane %v3957, 5
      %v3960 = vor.u32 %v3956, %v3959
      %v3961 = vrot.slane %v3960, 4
      %v3963 = vshll.u32 %v3885, 16
      %v3965 = vrot.slane %v3963, 5
      %v3966 = vsel %vm1048, %v3961, %v3965
      %v3967 = vshrl.u32 %v3885, 16
      %v3969 = vrot.slane %v3967, 4
      %v3970 = vor.u32 %v3969, %v3965
      %v3971 = vrot.slane %v3970, 4
      %v3973 = vshll.u32 %v3886, 16
      %v3975 = vrot.slane %v3973, 5
      %v3976 = vsel %vm1048, %v3971, %v3975
      %v3978 = vshrl.u32 %v3887, 16
      %v3980 = vrot.slane %v3978, 4
      %v3981 = vshll.u32 %v3887, 16
      %v3983 = vrot.slane %v3981, 5
      %v3984 = vor.u32 %v3980, %v3983
      %v3985 = vrot.slane %v3984, 4
      %v3987 = vshll.u32 %v3888, 16
      %v3989 = vrot.slane %v3987, 5
      %v3990 = vsel %vm1048, %v3985, %v3989
      %v3991 = vshrl.u32 %v3888, 16
      %v3993 = vrot.slane %v3991, 4
      %v3994 = vor.u32 %v3993, %v3989
      %v3995 = vrot.slane %v3994, 4
      %v3997 = vshll.u32 %v3889, 16
      %v3999 = vrot.slane %v3997, 5
      %v4000 = vsel %vm1048, %v3995, %v3999
      %v4002 = vshrl.u32 %v3890, 16
      %v4004 = vrot.slane %v4002, 4
      %v4005 = vshll.u32 %v3890, 16
      %v4007 = vrot.slane %v4005, 5
      %v4008 = vor.u32 %v4004, %v4007
      %v4009 = vrot.slane %v4008, 4
      %v4011 = vshll.u32 %v3891, 16
      %v4013 = vrot.slane %v4011, 5
      %v4014 = vsel %vm1048, %v4009, %v4013
      %v4015 = vshrl.u32 %v3891, 16
      %v4017 = vrot.slane %v4015, 4
      %v4018 = vor.u32 %v4017, %v4013
      %v4019 = vrot.slane %v4018, 4
      %v4021 = vshll.u32 %v3892, 16
      %v4023 = vrot.slane %v4021, 5
      %v4024 = vsel %vm1048, %v4019, %v4023
      %v4026 = vshrl.u32 %v3893, 16
      %v4028 = vrot.slane %v4026, 4
      %v4029 = vshll.u32 %v3893, 16
      %v4031 = vrot.slane %v4029, 5
      %v4032 = vor.u32 %v4028, %v4031
      %v4033 = vrot.slane %v4032, 4
      %v4035 = vshll.u32 %v3894, 16
      %v4037 = vrot.slane %v4035, 5
      %v4038 = vsel %vm1048, %v4033, %v4037
      %v4039 = vshrl.u32 %v3894, 16
      %v4041 = vrot.slane %v4039, 4
      %v4042 = vor.u32 %v4041, %v4037
      %v4043 = vrot.slane %v4042, 4
      %v4045 = vshll.u32 %v3895, 16
      %v4047 = vrot.slane %v4045, 5
      %v4048 = vsel %vm1048, %v4043, %v4047
      %v4050 = vshrl.u32 %v3896, 16
      %v4052 = vrot.slane %v4050, 4
      %v4053 = vshll.u32 %v3896, 16
      %v4055 = vrot.slane %v4053, 5
      %v4056 = vor.u32 %v4052, %v4055
      %v4057 = vrot.slane %v4056, 4
      %v4059 = vshll.u32 %v3897, 16
      %v4061 = vrot.slane %v4059, 5
      %v4062 = vsel %vm1048, %v4057, %v4061
      %v4063 = vshrl.u32 %v3897, 16
      %v4065 = vrot.slane %v4063, 4
      %v4066 = vor.u32 %v4065, %v4061
      %v4067 = vrot.slane %v4066, 4
      %v4069 = vshll.u32 %v3898, 16
      %v4071 = vrot.slane %v4069, 5
      %v4072 = vsel %vm1048, %v4067, %v4071
      %v4074 = vshrl.u32 %v3899, 16
      %v4076 = vrot.slane %v4074, 4
      %v4077 = vshll.u32 %v3899, 16
      %v4079 = vrot.slane %v4077, 5
      %v4080 = vor.u32 %v4076, %v4079
      %v4081 = vrot.slane %v4080, 4
      %v4083 = vshll.u32 %v3900, 16
      %v4085 = vrot.slane %v4083, 5
      %v4086 = vsel %vm1048, %v4081, %v4085
      %v4087 = vshrl.u32 %v3900, 16
      %v4089 = vrot.slane %v4087, 4
      %v4090 = vor.u32 %v4089, %v4085
      %v4091 = vrot.slane %v4090, 4
      %v4093 = vshll.u32 %v3901, 16
      %v4095 = vrot.slane %v4093, 5
      %v4096 = vsel %vm1048, %v4091, %v4095
      %v4098 = vshrl.u32 %v3902, 16
      %v4100 = vrot.slane %v4098, 4
      %v4101 = vshll.u32 %v3902, 16
      %v4103 = vrot.slane %v4101, 5
      %v4104 = vor.u32 %v4100, %v4103
      %v4105 = vrot.slane %v4104, 4
      %v4107 = vshll.u32 %v3903, 16
      %v4109 = vrot.slane %v4107, 5
      %v4110 = vsel %vm1048, %v4105, %v4109
      %v4111 = vshrl.u32 %v3903, 16
      %v4113 = vrot.slane %v4111, 4
      %v4114 = vor.u32 %v4113, %v4109
      %v4115 = vrot.slane %v4114, 4
      %v4117 = vshll.u32 %v3904, 16
      %v4119 = vrot.slane %v4117, 5
      %v4120 = vsel %vm1048, %v4115, %v4119
      %v4122 = vshrl.u32 %v3905, 16
      %v4124 = vrot.slane %v4122, 4
      %v4125 = vshll.u32 %v3905, 16
      %v4127 = vrot.slane %v4125, 5
      %v4128 = vor.u32 %v4124, %v4127
      %v4129 = vrot.slane %v4128, 4
      %v4131 = vshll.u32 %v3906, 16
      %v4133 = vrot.slane %v4131, 5
      %v4134 = vsel %vm1048, %v4129, %v4133
      %v4135 = vshrl.u32 %v3906, 16
      %v4137 = vrot.slane %v4135, 4
      %v4138 = vor.u32 %v4137, %v4133
      %v4139 = vrot.slane %v4138, 4
      %v4141 = vshll.u32 %v3907, 16
      %v4143 = vrot.slane %v4141, 5
      %v4144 = vsel %vm1048, %v4139, %v4143
      %v4146 = vshrl.u32 %v3908, 16
      %v4148 = vrot.slane %v4146, 4
      %v4149 = vshll.u32 %v3908, 16
      %v4151 = vrot.slane %v4149, 5
      %v4152 = vor.u32 %v4148, %v4151
      %v4153 = vrot.slane %v4152, 4
      %v4155 = vshll.u32 %v3909, 16
      %v4157 = vrot.slane %v4155, 5
      %v4158 = vsel %vm1048, %v4153, %v4157
      %v4159 = vshrl.u32 %v3909, 16
      %v4161 = vrot.slane %v4159, 4
      %v4162 = vor.u32 %v4161, %v4157
      %v4163 = vrot.slane %v4162, 4
      %v4165 = vshll.u32 %v3910, 16
      %v4167 = vrot.slane %v4165, 5
      %v4168 = vsel %vm1048, %v4163, %v4167
      %v4170 = vshrl.u32 %v3911, 16
      %v4172 = vrot.slane %v4170, 4
      %v4173 = vshll.u32 %v3911, 16
      %v4175 = vrot.slane %v4173, 5
      %v4176 = vor.u32 %v4172, %v4175
      %v4177 = vrot.slane %v4176, 4
      %v4179 = vshll.u32 %v3912, 16
      %v4181 = vrot.slane %v4179, 5
      %v4182 = vsel %vm1048, %v4177, %v4181
      %v4183 = vshrl.u32 %v3912, 16
      %v4185 = vrot.slane %v4183, 4
      %v4186 = vor.u32 %v4185, %v4181
      %v4187 = vrot.slane %v4186, 4
      %v4189 = vshll.u32 %v3913, 16
      %v4191 = vrot.slane %v4189, 5
      %v4192 = vsel %vm1048, %v4187, %v4191
      %v4194 = vshrl.u32 %v3914, 16
      %v4196 = vrot.slane %v4194, 4
      %v4197 = vshll.u32 %v3914, 16
      %v4199 = vrot.slane %v4197, 5
      %v4200 = vor.u32 %v4196, %v4199
      %v4201 = vrot.slane %v4200, 4
      %v4203 = vshll.u32 %v3915, 16
      %v4205 = vrot.slane %v4203, 5
      %v4206 = vsel %vm1048, %v4201, %v4205
      %v4207 = vshrl.u32 %v3915, 16
      %v4209 = vrot.slane %v4207, 4
      %v4210 = vor.u32 %v4209, %v4205
      %v4211 = vrot.slane %v4210, 4
      %v4213 = vshll.u32 %v3916, 16
      %v4215 = vrot.slane %v4213, 5
      %v4216 = vsel %vm1048, %v4211, %v4215
      %v4218 = vshrl.u32 %v3917, 16
      %v4220 = vrot.slane %v4218, 4
      %v4221 = vshll.u32 %v3917, 16
      %v4223 = vrot.slane %v4221, 5
      %v4224 = vor.u32 %v4220, %v4223
      %v4225 = vrot.slane %v4224, 4
      %v4227 = vshll.u32 %v3918, 16
      %v4229 = vrot.slane %v4227, 5
      %v4230 = vsel %vm1048, %v4225, %v4229
      %v4231 = vshrl.u32 %v3918, 16
      %v4233 = vrot.slane %v4231, 4
      %v4234 = vor.u32 %v4233, %v4229
      %v4235 = vrot.slane %v4234, 4
      %v4237 = vshll.u32 %v3919, 16
      %v4239 = vrot.slane %v4237, 5
      %v4240 = vsel %vm1048, %v4235, %v4239
      %v4242 = vshrl.u32 %v3920, 16
      %v4244 = vrot.slane %v4242, 4
      %v4245 = vshll.u32 %v3920, 16
      %v4247 = vrot.slane %v4245, 5
      %v4248 = vor.u32 %v4244, %v4247
      %v4249 = vrot.slane %v4248, 4
      %v4251 = vshll.u32 %v3921, 16
      %v4253 = vrot.slane %v4251, 5
      %v4254 = vsel %vm1048, %v4249, %v4253
      %v4255 = vshrl.u32 %v3921, 16
      %v4257 = vrot.slane %v4255, 4
      %v4258 = vor.u32 %v4257, %v4253
      %v4259 = vrot.slane %v4258, 4
      %v4261 = vshll.u32 %v3922, 16
      %v4263 = vrot.slane %v4261, 5
      %v4264 = vsel %vm1048, %v4259, %v4263
      %v4266 = vshrl.u32 %v3923, 16
      %v4268 = vrot.slane %v4266, 4
      %v4269 = vshll.u32 %v3923, 16
      %v4271 = vrot.slane %v4269, 5
      %v4272 = vor.u32 %v4268, %v4271
      %v4273 = vrot.slane %v4272, 4
      %v4275 = vshll.u32 %v3924, 16
      %v4277 = vrot.slane %v4275, 5
      %v4278 = vsel %vm1048, %v4273, %v4277
      %v4279 = vshrl.u32 %v3924, 16
      %v4281 = vrot.slane %v4279, 4
      %v4282 = vor.u32 %v4281, %v4277
      %v4283 = vrot.slane %v4282, 4
      %v4285 = vshll.u32 %v3925, 16
      %v4287 = vrot.slane %v4285, 5
      %v4288 = vsel %vm1048, %v4283, %v4287
      %v4290 = vshrl.u32 %v3926, 16
      %v4292 = vrot.slane %v4290, 4
      %v4293 = vshll.u32 %v3926, 16
      %v4295 = vrot.slane %v4293, 5
      %v4296 = vor.u32 %v4292, %v4295
      %v4297 = vrot.slane %v4296, 4
      %v4299 = vshll.u32 %v3927, 16
      %v4301 = vrot.slane %v4299, 5
      %v4302 = vsel %vm1048, %v4297, %v4301
      %v4303 = vshrl.u32 %v3927, 16
      %v4305 = vrot.slane %v4303, 4
      %v4306 = vor.u32 %v4305, %v4301
      %v4307 = vrot.slane %v4306, 4
      %v4309 = vshll.u32 %v3928, 16
      %v4311 = vrot.slane %v4309, 5
      %v4312 = vsel %vm1048, %v4307, %v4311
      %s4313 = scalar_lea.vmem %s3, 56
      %v4314 = vld [vmem:[%s4313] sm:$0xf]
      %v4315 = vld [vmem:[%s4313 + $0x4] sm:$0xf]
      %v4316 = vunpack.c.l.b16 %v3942
      %v4317 = vunpack.c.l.b16 %v3952
      %v4318 = vunpack.c.l.b16 %v3966
      %v4319 = vunpack.c.l.b16 %v3976
      %v4320 = vunpack.c.l.b16 %v3990
      %v4321 = vunpack.c.l.b16 %v4000
      %v4322 = vunpack.c.l.b16 %v4014
      %v4323 = vunpack.c.l.b16 %v4024
      %v4324 = vunpack.c.l.b16 %v4038
      %v4325 = vunpack.c.l.b16 %v4048
      %v4326 = vunpack.c.l.b16 %v4062
      %v4327 = vunpack.c.l.b16 %v4072
      %v4328 = vunpack.c.l.b16 %v4086
      %v4329 = vunpack.c.l.b16 %v4096
      %v4330 = vunpack.c.l.b16 %v4110
      %v4331 = vunpack.c.l.b16 %v4120
      %v4332 = vunpack.c.l.b16 %v4134
      %v4333 = vunpack.c.l.b16 %v4144
      %v4334 = vunpack.c.l.b16 %v4158
      %v4335 = vunpack.c.l.b16 %v4168
      %v4336 = vunpack.c.l.b16 %v4182
      %v4337 = vunpack.c.l.b16 %v4192
      %v4338 = vunpack.c.l.b16 %v4206
      %v4339 = vunpack.c.l.b16 %v4216
      %v4340 = vunpack.c.l.b16 %v4230
      %v4341 = vunpack.c.l.b16 %v4240
      %v4342 = vunpack.c.l.b16 %v4254
      %v4343 = vunpack.c.l.b16 %v4264
      %v4344 = vunpack.c.l.b16 %v4278
      %v4345 = vunpack.c.l.b16 %v4288
      %v4346 = vunpack.c.l.b16 %v4302
      %v4347 = vunpack.c.l.b16 %v4312
      %v4348 = vpack.c.b16 %v4317, %v4316
      %v4349 = vpack.c.b16 %v4319, %v4318
      %v4350 = vpack.c.b16 %v4321, %v4320
      %v4351 = vpack.c.b16 %v4323, %v4322
      %v4352 = vpack.c.b16 %v4325, %v4324
      %v4353 = vpack.c.b16 %v4327, %v4326
      %v4354 = vpack.c.b16 %v4329, %v4328
      %v4355 = vpack.c.b16 %v4331, %v4330
      %v4356 = vpack.c.b16 %v4333, %v4332
      %v4357 = vpack.c.b16 %v4335, %v4334
      %v4358 = vpack.c.b16 %v4337, %v4336
      %v4359 = vpack.c.b16 %v4339, %v4338
      %v4360 = vpack.c.b16 %v4341, %v4340
      %v4361 = vpack.c.b16 %v4343, %v4342
      %v4362 = vpack.c.b16 %v4345, %v4344
      %v4363 = vpack.c.b16 %v4347, %v4346
      %v4366 = vunpack.c.l.b16 %v4314
      %v4367 = vunpack.c.l.b16 %v4315
      %v4368 = vpack.c.b16 %v4367, %v4366
      %v4371 = vsel %vm1490, %v4348, 0
      %v4374 = vsel %vm1490, %v4349, 0
      %v4377 = vsel %vm1490, %v4350, 0
      %v4380 = vsel %vm1490, %v4351, 0
      %v4383 = vsel %vm1490, %v4352, 0
      %v4386 = vsel %vm1490, %v4353, 0
      %v4389 = vsel %vm1490, %v4354, 0
      %v4392 = vsel %vm1490, %v4355, 0
      %v4395 = vsel %vm1490, %v4356, 0
      %v4398 = vsel %vm1490, %v4357, 0
      %v4401 = vsel %vm1490, %v4358, 0
      %v4404 = vsel %vm1490, %v4359, 0
      %v4407 = vsel %vm1490, %v4360, 0
      %v4410 = vsel %vm1490, %v4361, 0
      %v4413 = vsel %vm1490, %v4362, 0
      %v4416 = vsel %vm1490, %v4363, 0
      %4418 = vmatpush.bf16.msra.mxu0 0
      %4419 = vmatpush.bf16.msra.mxu0 0
      %4420 = vmatpush.bf16.msra.mxu0 0
      %4421 = vmatpush.bf16.msra.mxu0 0
      %4422 = vmatpush.bf16.msra.mxu0 0
      %4423 = vmatpush.bf16.msra.mxu0 0
      %4424 = vmatpush.bf16.msra.mxu0 0
      %4425 = vmatpush.bf16.msra.mxu0 %v4368
      %4426 = vmatmul.bf16.gmra.mxu0 %v4371
      %v4427 = vpop.f32.mrf.mxu0
      %v4428 = vadd.f32 0.0, %v4427
      %v4429 = vpop.f32.mrf.mxu0
      %v4430 = vadd.f32 0.0, %v4429
      %4431 = vmatmul.bf16.gmra.mxu0 %v4374
      %v4432 = vpop.f32.mrf.mxu0
      %v4433 = vadd.f32 0.0, %v4432
      %v4434 = vpop.f32.mrf.mxu0
      %v4435 = vadd.f32 0.0, %v4434
      %4436 = vmatmul.bf16.gmra.mxu0 %v4377
      %v4437 = vpop.f32.mrf.mxu0
      %v4438 = vadd.f32 0.0, %v4437
      %v4439 = vpop.f32.mrf.mxu0
      %v4440 = vadd.f32 0.0, %v4439
      %4441 = vmatmul.bf16.gmra.mxu0 %v4380
      %v4442 = vpop.f32.mrf.mxu0
      %v4443 = vadd.f32 0.0, %v4442
      %v4444 = vpop.f32.mrf.mxu0
      %v4445 = vadd.f32 0.0, %v4444
      %4446 = vmatmul.bf16.gmra.mxu0 %v4383
      %v4447 = vpop.f32.mrf.mxu0
      %v4448 = vadd.f32 0.0, %v4447
      %v4449 = vpop.f32.mrf.mxu0
      %v4450 = vadd.f32 0.0, %v4449
      %4451 = vmatmul.bf16.gmra.mxu0 %v4386
      %v4452 = vpop.f32.mrf.mxu0
      %v4453 = vadd.f32 0.0, %v4452
      %v4454 = vpop.f32.mrf.mxu0
      %v4455 = vadd.f32 0.0, %v4454
      %4456 = vmatmul.bf16.gmra.mxu0 %v4389
      %v4457 = vpop.f32.mrf.mxu0
      %v4458 = vadd.f32 0.0, %v4457
      %v4459 = vpop.f32.mrf.mxu0
      %v4460 = vadd.f32 0.0, %v4459
      %4461 = vmatmul.bf16.gmra.mxu0 %v4392
      %v4462 = vpop.f32.mrf.mxu0
      %v4463 = vadd.f32 0.0, %v4462
      %v4464 = vpop.f32.mrf.mxu0
      %v4465 = vadd.f32 0.0, %v4464
      %4466 = vmatmul.bf16.gmra.mxu0 %v4395
      %v4467 = vpop.f32.mrf.mxu0
      %v4468 = vadd.f32 0.0, %v4467
      %v4469 = vpop.f32.mrf.mxu0
      %v4470 = vadd.f32 0.0, %v4469
      %4471 = vmatmul.bf16.gmra.mxu0 %v4398
      %v4472 = vpop.f32.mrf.mxu0
      %v4473 = vadd.f32 0.0, %v4472
      %v4474 = vpop.f32.mrf.mxu0
      %v4475 = vadd.f32 0.0, %v4474
      %4476 = vmatmul.bf16.gmra.mxu0 %v4401
      %v4477 = vpop.f32.mrf.mxu0
      %v4478 = vadd.f32 0.0, %v4477
      %v4479 = vpop.f32.mrf.mxu0
      %v4480 = vadd.f32 0.0, %v4479
      %4481 = vmatmul.bf16.gmra.mxu0 %v4404
      %v4482 = vpop.f32.mrf.mxu0
      %v4483 = vadd.f32 0.0, %v4482
      %v4484 = vpop.f32.mrf.mxu0
      %v4485 = vadd.f32 0.0, %v4484
      %4486 = vmatmul.bf16.gmra.mxu0 %v4407
      %v4487 = vpop.f32.mrf.mxu0
      %v4488 = vadd.f32 0.0, %v4487
      %v4489 = vpop.f32.mrf.mxu0
      %v4490 = vadd.f32 0.0, %v4489
      %4491 = vmatmul.bf16.gmra.mxu0 %v4410
      %v4492 = vpop.f32.mrf.mxu0
      %v4493 = vadd.f32 0.0, %v4492
      %v4494 = vpop.f32.mrf.mxu0
      %v4495 = vadd.f32 0.0, %v4494
      %4496 = vmatmul.bf16.gmra.mxu0 %v4413
      %v4497 = vpop.f32.mrf.mxu0
      %v4498 = vadd.f32 0.0, %v4497
      %v4499 = vpop.f32.mrf.mxu0
      %v4500 = vadd.f32 0.0, %v4499
      %4501 = vmatmul.bf16.gmra.mxu0 %v4416
      %v4502 = vpop.f32.mrf.mxu0
      %v4503 = vadd.f32 0.0, %v4502
      %v4504 = vpop.f32.mrf.mxu0
      %v4505 = vadd.f32 0.0, %v4504
      %4506 = vdwg.mxu0
      %v4507 = vadd.f32 %v3849, %v4428
      %v4508 = vadd.f32 %v3850, %v4430
      %v4509 = vadd.f32 %v3851, %v4433
      %v4510 = vadd.f32 %v3852, %v4435
      %v4511 = vadd.f32 %v3853, %v4438
      %v4512 = vadd.f32 %v3854, %v4440
      %v4513 = vadd.f32 %v3855, %v4443
      %v4514 = vadd.f32 %v3856, %v4445
      %v4515 = vadd.f32 %v3857, %v4448
      %v4516 = vadd.f32 %v3858, %v4450
      %v4517 = vadd.f32 %v3859, %v4453
      %v4518 = vadd.f32 %v3860, %v4455
      %v4519 = vadd.f32 %v3861, %v4458
      %v4520 = vadd.f32 %v3862, %v4460
      %v4521 = vadd.f32 %v3863, %v4463
      %v4522 = vadd.f32 %v3864, %v4465
      %v4523 = vadd.f32 %v3865, %v4468
      %v4524 = vadd.f32 %v3866, %v4470
      %v4525 = vadd.f32 %v3867, %v4473
      %v4526 = vadd.f32 %v3868, %v4475
      %v4527 = vadd.f32 %v3869, %v4478
      %v4528 = vadd.f32 %v3870, %v4480
      %v4529 = vadd.f32 %v3871, %v4483
      %v4530 = vadd.f32 %v3872, %v4485
      %v4531 = vadd.f32 %v3873, %v4488
      %v4532 = vadd.f32 %v3874, %v4490
      %v4533 = vadd.f32 %v3875, %v4493
      %v4534 = vadd.f32 %v3876, %v4495
      %v4535 = vadd.f32 %v3877, %v4498
      %v4536 = vadd.f32 %v3878, %v4500
      %v4537 = vadd.f32 %v3879, %v4503
      %v4538 = vadd.f32 %v3880, %v4505
      %v4539 = vld [vmem:[%s3590] sm:$0xe]
      %v4540 = vld [vmem:[%s3590 + $0xc] sm:$0xe]
      %v4541 = vld [vmem:[%s3590 + $0x18] sm:$0xe]
      %v4542 = vld [vmem:[%s3590 + $0x24] sm:$0xe]
      %v4543 = vld [vmem:[%s3590 + $0x30] sm:$0xe]
      %v4544 = vld [vmem:[%s3590 + $0x3c] sm:$0xe]
      %v4545 = vld [vmem:[%s3590 + $0x48] sm:$0xe]
      %v4546 = vld [vmem:[%s3590 + $0x54] sm:$0xe]
      %v4547 = vld [vmem:[%s3590 + $0x60] sm:$0xe]
      %v4548 = vld [vmem:[%s3590 + $0x6c] sm:$0xe]
      %v4549 = vld [vmem:[%s3590 + $0x78] sm:$0xe]
      %v4550 = vld [vmem:[%s3590 + $0x84] sm:$0xe]
      %v4551 = vld [vmem:[%s3590 + $0x90] sm:$0xe]
      %v4552 = vld [vmem:[%s3590 + $0x9c] sm:$0xe]
      %v4553 = vld [vmem:[%s3590 + $0xa8] sm:$0xe]
      %v4554 = vld [vmem:[%s3590 + $0xb4] sm:$0xe]
      %v4603 = vrot.slane %v4539, 5
      %v4604 = vrot.slane %v4603, 4
      %v4605 = vrot.slane %v3882, 5
      %v4606 = vsel %vm1901, %v4604, %v4605
      %v4607 = vrot.slane %v4605, 4
      %v4608 = vrot.slane %v3883, 5
      %v4609 = vsel %vm1901, %v4607, %v4608
      %v4610 = vrot.slane %v4540, 5
      %v4611 = vrot.slane %v4610, 4
      %v4612 = vrot.slane %v3885, 5
      %v4613 = vsel %vm1901, %v4611, %v4612
      %v4614 = vrot.slane %v4612, 4
      %v4615 = vrot.slane %v3886, 5
      %v4616 = vsel %vm1901, %v4614, %v4615
      %v4617 = vrot.slane %v4541, 5
      %v4618 = vrot.slane %v4617, 4
      %v4619 = vrot.slane %v3888, 5
      %v4620 = vsel %vm1901, %v4618, %v4619
      %v4621 = vrot.slane %v4619, 4
      %v4622 = vrot.slane %v3889, 5
      %v4623 = vsel %vm1901, %v4621, %v4622
      %v4624 = vrot.slane %v4542, 5
      %v4625 = vrot.slane %v4624, 4
      %v4626 = vrot.slane %v3891, 5
      %v4627 = vsel %vm1901, %v4625, %v4626
      %v4628 = vrot.slane %v4626, 4
      %v4629 = vrot.slane %v3892, 5
      %v4630 = vsel %vm1901, %v4628, %v4629
      %v4631 = vrot.slane %v4543, 5
      %v4632 = vrot.slane %v4631, 4
      %v4633 = vrot.slane %v3894, 5
      %v4634 = vsel %vm1901, %v4632, %v4633
      %v4635 = vrot.slane %v4633, 4
      %v4636 = vrot.slane %v3895, 5
      %v4637 = vsel %vm1901, %v4635, %v4636
      %v4638 = vrot.slane %v4544, 5
      %v4639 = vrot.slane %v4638, 4
      %v4640 = vrot.slane %v3897, 5
      %v4641 = vsel %vm1901, %v4639, %v4640
      %v4642 = vrot.slane %v4640, 4
      %v4643 = vrot.slane %v3898, 5
      %v4644 = vsel %vm1901, %v4642, %v4643
      %v4645 = vrot.slane %v4545, 5
      %v4646 = vrot.slane %v4645, 4
      %v4647 = vrot.slane %v3900, 5
      %v4648 = vsel %vm1901, %v4646, %v4647
      %v4649 = vrot.slane %v4647, 4
      %v4650 = vrot.slane %v3901, 5
      %v4651 = vsel %vm1901, %v4649, %v4650
      %v4652 = vrot.slane %v4546, 5
      %v4653 = vrot.slane %v4652, 4
      %v4654 = vrot.slane %v3903, 5
      %v4655 = vsel %vm1901, %v4653, %v4654
      %v4656 = vrot.slane %v4654, 4
      %v4657 = vrot.slane %v3904, 5
      %v4658 = vsel %vm1901, %v4656, %v4657
      %v4659 = vrot.slane %v4547, 5
      %v4660 = vrot.slane %v4659, 4
      %v4661 = vrot.slane %v3906, 5
      %v4662 = vsel %vm1901, %v4660, %v4661
      %v4663 = vrot.slane %v4661, 4
      %v4664 = vrot.slane %v3907, 5
      %v4665 = vsel %vm1901, %v4663, %v4664
      %v4666 = vrot.slane %v4548, 5
      %v4667 = vrot.slane %v4666, 4
      %v4668 = vrot.slane %v3909, 5
      %v4669 = vsel %vm1901, %v4667, %v4668
      %v4670 = vrot.slane %v4668, 4
      %v4671 = vrot.slane %v3910, 5
      %v4672 = vsel %vm1901, %v4670, %v4671
      %v4673 = vrot.slane %v4549, 5
      %v4674 = vrot.slane %v4673, 4
      %v4675 = vrot.slane %v3912, 5
      %v4676 = vsel %vm1901, %v4674, %v4675
      %v4677 = vrot.slane %v4675, 4
      %v4678 = vrot.slane %v3913, 5
      %v4679 = vsel %vm1901, %v4677, %v4678
      %v4680 = vrot.slane %v4550, 5
      %v4681 = vrot.slane %v4680, 4
      %v4682 = vrot.slane %v3915, 5
      %v4683 = vsel %vm1901, %v4681, %v4682
      %v4684 = vrot.slane %v4682, 4
      %v4685 = vrot.slane %v3916, 5
      %v4686 = vsel %vm1901, %v4684, %v4685
      %v4687 = vrot.slane %v4551, 5
      %v4688 = vrot.slane %v4687, 4
      %v4689 = vrot.slane %v3918, 5
      %v4690 = vsel %vm1901, %v4688, %v4689
      %v4691 = vrot.slane %v4689, 4
      %v4692 = vrot.slane %v3919, 5
      %v4693 = vsel %vm1901, %v4691, %v4692
      %v4694 = vrot.slane %v4552, 5
      %v4695 = vrot.slane %v4694, 4
      %v4696 = vrot.slane %v3921, 5
      %v4697 = vsel %vm1901, %v4695, %v4696
      %v4698 = vrot.slane %v4696, 4
      %v4699 = vrot.slane %v3922, 5
      %v4700 = vsel %vm1901, %v4698, %v4699
      %v4701 = vrot.slane %v4553, 5
      %v4702 = vrot.slane %v4701, 4
      %v4703 = vrot.slane %v3924, 5
      %v4704 = vsel %vm1901, %v4702, %v4703
      %v4705 = vrot.slane %v4703, 4
      %v4706 = vrot.slane %v3925, 5
      %v4707 = vsel %vm1901, %v4705, %v4706
      %v4708 = vrot.slane %v4554, 5
      %v4709 = vrot.slane %v4708, 4
      %v4710 = vrot.slane %v3927, 5
      %v4711 = vsel %vm1901, %v4709, %v4710
      %v4712 = vrot.slane %v4710, 4
      %v4713 = vrot.slane %v3928, 5
      %v4714 = vsel %vm1901, %v4712, %v4713
      %s4715 = scalar_lea.vmem %s3, 64
      %v4716 = vld [vmem:[%s4715] sm:$0xf]
      %v4717 = vld [vmem:[%s4715 + $0x4] sm:$0xf]
      %v4718 = vunpack.c.l.b16 %v4606
      %v4719 = vunpack.c.l.b16 %v4609
      %v4720 = vunpack.c.l.b16 %v4613
      %v4721 = vunpack.c.l.b16 %v4616
      %v4722 = vunpack.c.l.b16 %v4620
      %v4723 = vunpack.c.l.b16 %v4623
      %v4724 = vunpack.c.l.b16 %v4627
      %v4725 = vunpack.c.l.b16 %v4630
      %v4726 = vunpack.c.l.b16 %v4634
      %v4727 = vunpack.c.l.b16 %v4637
      %v4728 = vunpack.c.l.b16 %v4641
      %v4729 = vunpack.c.l.b16 %v4644
      %v4730 = vunpack.c.l.b16 %v4648
      %v4731 = vunpack.c.l.b16 %v4651
      %v4732 = vunpack.c.l.b16 %v4655
      %v4733 = vunpack.c.l.b16 %v4658
      %v4734 = vunpack.c.l.b16 %v4662
      %v4735 = vunpack.c.l.b16 %v4665
      %v4736 = vunpack.c.l.b16 %v4669
      %v4737 = vunpack.c.l.b16 %v4672
      %v4738 = vunpack.c.l.b16 %v4676
      %v4739 = vunpack.c.l.b16 %v4679
      %v4740 = vunpack.c.l.b16 %v4683
      %v4741 = vunpack.c.l.b16 %v4686
      %v4742 = vunpack.c.l.b16 %v4690
      %v4743 = vunpack.c.l.b16 %v4693
      %v4744 = vunpack.c.l.b16 %v4697
      %v4745 = vunpack.c.l.b16 %v4700
      %v4746 = vunpack.c.l.b16 %v4704
      %v4747 = vunpack.c.l.b16 %v4707
      %v4748 = vunpack.c.l.b16 %v4711
      %v4749 = vunpack.c.l.b16 %v4714
      %v4750 = vpack.c.b16 %v4719, %v4718
      %v4751 = vpack.c.b16 %v4721, %v4720
      %v4752 = vpack.c.b16 %v4723, %v4722
      %v4753 = vpack.c.b16 %v4725, %v4724
      %v4754 = vpack.c.b16 %v4727, %v4726
      %v4755 = vpack.c.b16 %v4729, %v4728
      %v4756 = vpack.c.b16 %v4731, %v4730
      %v4757 = vpack.c.b16 %v4733, %v4732
      %v4758 = vpack.c.b16 %v4735, %v4734
      %v4759 = vpack.c.b16 %v4737, %v4736
      %v4760 = vpack.c.b16 %v4739, %v4738
      %v4761 = vpack.c.b16 %v4741, %v4740
      %v4762 = vpack.c.b16 %v4743, %v4742
      %v4763 = vpack.c.b16 %v4745, %v4744
      %v4764 = vpack.c.b16 %v4747, %v4746
      %v4765 = vpack.c.b16 %v4749, %v4748
      %v4768 = vunpack.c.l.b16 %v4716
      %v4769 = vunpack.c.l.b16 %v4717
      %v4770 = vpack.c.b16 %v4769, %v4768
      %v4773 = vsel %vm1490, %v4750, 0
      %v4776 = vsel %vm1490, %v4751, 0
      %v4779 = vsel %vm1490, %v4752, 0
      %v4782 = vsel %vm1490, %v4753, 0
      %v4785 = vsel %vm1490, %v4754, 0
      %v4788 = vsel %vm1490, %v4755, 0
      %v4791 = vsel %vm1490, %v4756, 0
      %v4794 = vsel %vm1490, %v4757, 0
      %v4797 = vsel %vm1490, %v4758, 0
      %v4800 = vsel %vm1490, %v4759, 0
      %v4803 = vsel %vm1490, %v4760, 0
      %v4806 = vsel %vm1490, %v4761, 0
      %v4809 = vsel %vm1490, %v4762, 0
      %v4812 = vsel %vm1490, %v4763, 0
      %v4815 = vsel %vm1490, %v4764, 0
      %v4818 = vsel %vm1490, %v4765, 0
      %4820 = vmatpush.bf16.msra.mxu0 0
      %4821 = vmatpush.bf16.msra.mxu0 0
      %4822 = vmatpush.bf16.msra.mxu0 0
      %4823 = vmatpush.bf16.msra.mxu0 0
      %4824 = vmatpush.bf16.msra.mxu0 0
      %4825 = vmatpush.bf16.msra.mxu0 0
      %4826 = vmatpush.bf16.msra.mxu0 0
      %4827 = vmatpush.bf16.msra.mxu0 %v4770
      %4828 = vmatmul.bf16.gmra.mxu0 %v4773
      %v4829 = vpop.f32.mrf.mxu0
      %v4830 = vadd.f32 0.0, %v4829
      %v4831 = vpop.f32.mrf.mxu0
      %v4832 = vadd.f32 0.0, %v4831
      %4833 = vmatmul.bf16.gmra.mxu0 %v4776
      %v4834 = vpop.f32.mrf.mxu0
      %v4835 = vadd.f32 0.0, %v4834
      %v4836 = vpop.f32.mrf.mxu0
      %v4837 = vadd.f32 0.0, %v4836
      %4838 = vmatmul.bf16.gmra.mxu0 %v4779
      %v4839 = vpop.f32.mrf.mxu0
      %v4840 = vadd.f32 0.0, %v4839
      %v4841 = vpop.f32.mrf.mxu0
      %v4842 = vadd.f32 0.0, %v4841
      %4843 = vmatmul.bf16.gmra.mxu0 %v4782
      %v4844 = vpop.f32.mrf.mxu0
      %v4845 = vadd.f32 0.0, %v4844
      %v4846 = vpop.f32.mrf.mxu0
      %v4847 = vadd.f32 0.0, %v4846
      %4848 = vmatmul.bf16.gmra.mxu0 %v4785
      %v4849 = vpop.f32.mrf.mxu0
      %v4850 = vadd.f32 0.0, %v4849
      %v4851 = vpop.f32.mrf.mxu0
      %v4852 = vadd.f32 0.0, %v4851
      %4853 = vmatmul.bf16.gmra.mxu0 %v4788
      %v4854 = vpop.f32.mrf.mxu0
      %v4855 = vadd.f32 0.0, %v4854
      %v4856 = vpop.f32.mrf.mxu0
      %v4857 = vadd.f32 0.0, %v4856
      %4858 = vmatmul.bf16.gmra.mxu0 %v4791
      %v4859 = vpop.f32.mrf.mxu0
      %v4860 = vadd.f32 0.0, %v4859
      %v4861 = vpop.f32.mrf.mxu0
      %v4862 = vadd.f32 0.0, %v4861
      %4863 = vmatmul.bf16.gmra.mxu0 %v4794
      %v4864 = vpop.f32.mrf.mxu0
      %v4865 = vadd.f32 0.0, %v4864
      %v4866 = vpop.f32.mrf.mxu0
      %v4867 = vadd.f32 0.0, %v4866
      %4868 = vmatmul.bf16.gmra.mxu0 %v4797
      %v4869 = vpop.f32.mrf.mxu0
      %v4870 = vadd.f32 0.0, %v4869
      %v4871 = vpop.f32.mrf.mxu0
      %v4872 = vadd.f32 0.0, %v4871
      %4873 = vmatmul.bf16.gmra.mxu0 %v4800
      %v4874 = vpop.f32.mrf.mxu0
      %v4875 = vadd.f32 0.0, %v4874
      %v4876 = vpop.f32.mrf.mxu0
      %v4877 = vadd.f32 0.0, %v4876
      %4878 = vmatmul.bf16.gmra.mxu0 %v4803
      %v4879 = vpop.f32.mrf.mxu0
      %v4880 = vadd.f32 0.0, %v4879
      %v4881 = vpop.f32.mrf.mxu0
      %v4882 = vadd.f32 0.0, %v4881
      %4883 = vmatmul.bf16.gmra.mxu0 %v4806
      %v4884 = vpop.f32.mrf.mxu0
      %v4885 = vadd.f32 0.0, %v4884
      %v4886 = vpop.f32.mrf.mxu0
      %v4887 = vadd.f32 0.0, %v4886
      %4888 = vmatmul.bf16.gmra.mxu0 %v4809
      %v4889 = vpop.f32.mrf.mxu0
      %v4890 = vadd.f32 0.0, %v4889
      %v4891 = vpop.f32.mrf.mxu0
      %v4892 = vadd.f32 0.0, %v4891
      %4893 = vmatmul.bf16.gmra.mxu0 %v4812
      %v4894 = vpop.f32.mrf.mxu0
      %v4895 = vadd.f32 0.0, %v4894
      %v4896 = vpop.f32.mrf.mxu0
      %v4897 = vadd.f32 0.0, %v4896
      %4898 = vmatmul.bf16.gmra.mxu0 %v4815
      %v4899 = vpop.f32.mrf.mxu0
      %v4900 = vadd.f32 0.0, %v4899
      %v4901 = vpop.f32.mrf.mxu0
      %v4902 = vadd.f32 0.0, %v4901
      %4903 = vmatmul.bf16.gmra.mxu0 %v4818
      %v4904 = vpop.f32.mrf.mxu0
      %v4905 = vadd.f32 0.0, %v4904
      %v4906 = vpop.f32.mrf.mxu0
      %v4907 = vadd.f32 0.0, %v4906
      %4908 = vdwg.mxu0
      %v4909 = vadd.f32 %v4507, %v4830
      %v4910 = vadd.f32 %v4508, %v4832
      %v4911 = vadd.f32 %v4509, %v4835
      %v4912 = vadd.f32 %v4510, %v4837
      %v4913 = vadd.f32 %v4511, %v4840
      %v4914 = vadd.f32 %v4512, %v4842
      %v4915 = vadd.f32 %v4513, %v4845
      %v4916 = vadd.f32 %v4514, %v4847
      %v4917 = vadd.f32 %v4515, %v4850
      %v4918 = vadd.f32 %v4516, %v4852
      %v4919 = vadd.f32 %v4517, %v4855
      %v4920 = vadd.f32 %v4518, %v4857
      %v4921 = vadd.f32 %v4519, %v4860
      %v4922 = vadd.f32 %v4520, %v4862
      %v4923 = vadd.f32 %v4521, %v4865
      %v4924 = vadd.f32 %v4522, %v4867
      %v4925 = vadd.f32 %v4523, %v4870
      %v4926 = vadd.f32 %v4524, %v4872
      %v4927 = vadd.f32 %v4525, %v4875
      %v4928 = vadd.f32 %v4526, %v4877
      %v4929 = vadd.f32 %v4527, %v4880
      %v4930 = vadd.f32 %v4528, %v4882
      %v4931 = vadd.f32 %v4529, %v4885
      %v4932 = vadd.f32 %v4530, %v4887
      %v4933 = vadd.f32 %v4531, %v4890
      %v4934 = vadd.f32 %v4532, %v4892
      %v4935 = vadd.f32 %v4533, %v4895
      %v4936 = vadd.f32 %v4534, %v4897
      %v4937 = vadd.f32 %v4535, %v4900
      %v4938 = vadd.f32 %v4536, %v4902
      %v4939 = vadd.f32 %v4537, %v4905
      %v4940 = vadd.f32 %v4538, %v4907
      %v4941 = vpack.c.bf16 %v4909, %v4909
      %v4942 = vpack.c.bf16 %v4910, %v4910
      %v4943 = vpack.c.bf16 %v4911, %v4911
      %v4944 = vpack.c.bf16 %v4912, %v4912
      %v4945 = vpack.c.bf16 %v4913, %v4913
      %v4946 = vpack.c.bf16 %v4914, %v4914
      %v4947 = vpack.c.bf16 %v4915, %v4915
      %v4948 = vpack.c.bf16 %v4916, %v4916
      %v4949 = vpack.c.bf16 %v4917, %v4917
      %v4950 = vpack.c.bf16 %v4918, %v4918
      %v4951 = vpack.c.bf16 %v4919, %v4919
      %v4952 = vpack.c.bf16 %v4920, %v4920
      %v4953 = vpack.c.bf16 %v4921, %v4921
      %v4954 = vpack.c.bf16 %v4922, %v4922
      %v4955 = vpack.c.bf16 %v4923, %v4923
      %v4956 = vpack.c.bf16 %v4924, %v4924
      %v4957 = vpack.c.bf16 %v4925, %v4925
      %v4958 = vpack.c.bf16 %v4926, %v4926
      %v4959 = vpack.c.bf16 %v4927, %v4927
      %v4960 = vpack.c.bf16 %v4928, %v4928
      %v4961 = vpack.c.bf16 %v4929, %v4929
      %v4962 = vpack.c.bf16 %v4930, %v4930
      %v4963 = vpack.c.bf16 %v4931, %v4931
      %v4964 = vpack.c.bf16 %v4932, %v4932
      %v4965 = vpack.c.bf16 %v4933, %v4933
      %v4966 = vpack.c.bf16 %v4934, %v4934
      %v4967 = vpack.c.bf16 %v4935, %v4935
      %v4968 = vpack.c.bf16 %v4936, %v4936
      %v4969 = vpack.c.bf16 %v4937, %v4937
      %v4970 = vpack.c.bf16 %v4938, %v4938
      %v4971 = vpack.c.bf16 %v4939, %v4939
      %v4972 = vpack.c.bf16 %v4940, %v4940
      %4973 = vst.msk [vmem:[%s231] sm:$0xf] %vm405, %v4941
      %4974 = vst.msk [vmem:[%s231 + $0x4] sm:$0xf] %vm405, %v4942
      %4975 = vst.msk [vmem:[%s231 + $0x8] sm:$0xf] %vm405, %v4943
      %4976 = vst.msk [vmem:[%s231 + $0xc] sm:$0xf] %vm405, %v4944
      %4977 = vst.msk [vmem:[%s231 + $0x10] sm:$0xf] %vm405, %v4945
      %4978 = vst.msk [vmem:[%s231 + $0x14] sm:$0xf] %vm405, %v4946
      %4979 = vst.msk [vmem:[%s231 + $0x18] sm:$0xf] %vm405, %v4947
      %4980 = vst.msk [vmem:[%s231 + $0x1c] sm:$0xf] %vm405, %v4948
      %4981 = vst.msk [vmem:[%s231 + $0x20] sm:$0xf] %vm405, %v4949
      %4982 = vst.msk [vmem:[%s231 + $0x24] sm:$0xf] %vm405, %v4950
      %4983 = vst.msk [vmem:[%s231 + $0x28] sm:$0xf] %vm405, %v4951
      %4984 = vst.msk [vmem:[%s231 + $0x2c] sm:$0xf] %vm405, %v4952
      %4985 = vst.msk [vmem:[%s231 + $0x30] sm:$0xf] %vm405, %v4953
      %4986 = vst.msk [vmem:[%s231 + $0x34] sm:$0xf] %vm405, %v4954
      %4987 = vst.msk [vmem:[%s231 + $0x38] sm:$0xf] %vm405, %v4955
      %4988 = vst.msk [vmem:[%s231 + $0x3c] sm:$0xf] %vm405, %v4956
      %4989 = vst.msk [vmem:[%s231 + $0x40] sm:$0xf] %vm405, %v4957
      %4990 = vst.msk [vmem:[%s231 + $0x44] sm:$0xf] %vm405, %v4958
      %4991 = vst.msk [vmem:[%s231 + $0x48] sm:$0xf] %vm405, %v4959
      %4992 = vst.msk [vmem:[%s231 + $0x4c] sm:$0xf] %vm405, %v4960
      %4993 = vst.msk [vmem:[%s231 + $0x50] sm:$0xf] %vm405, %v4961
      %4994 = vst.msk [vmem:[%s231 + $0x54] sm:$0xf] %vm405, %v4962
      %4995 = vst.msk [vmem:[%s231 + $0x58] sm:$0xf] %vm405, %v4963
      %4996 = vst.msk [vmem:[%s231 + $0x5c] sm:$0xf] %vm405, %v4964
      %4997 = vst.msk [vmem:[%s231 + $0x60] sm:$0xf] %vm405, %v4965
      %4998 = vst.msk [vmem:[%s231 + $0x64] sm:$0xf] %vm405, %v4966
      %4999 = vst.msk [vmem:[%s231 + $0x68] sm:$0xf] %vm405, %v4967
      %5000 = vst.msk [vmem:[%s231 + $0x6c] sm:$0xf] %vm405, %v4968
      %5001 = vst.msk [vmem:[%s231 + $0x70] sm:$0xf] %vm405, %v4969
      %5002 = vst.msk [vmem:[%s231 + $0x74] sm:$0xf] %vm405, %v4970
      %5003 = vst.msk [vmem:[%s231 + $0x78] sm:$0xf] %vm405, %v4971
      %5004 = vst.msk [vmem:[%s231 + $0x7c] sm:$0xf] %vm405, %v4972
      %v5005 = vsel %vm1490, %v4909, 0.0
      %v5006 = vsel %vm1490, %v4910, 0.0
      %v5007 = vadd.f32 %v5005, %v5006
      %v5008 = vsel %vm1490, %v4911, 0.0
      %v5009 = vadd.f32 %v5007, %v5008
      %v5010 = vsel %vm1490, %v4912, 0.0
      %v5011 = vadd.f32 %v5009, %v5010
      %v5012 = vsel %vm1490, %v4913, 0.0
      %v5013 = vadd.f32 %v5011, %v5012
      %v5014 = vsel %vm1490, %v4914, 0.0
      %v5015 = vadd.f32 %v5013, %v5014
      %v5016 = vsel %vm1490, %v4915, 0.0
      %v5017 = vadd.f32 %v5015, %v5016
      %v5018 = vsel %vm1490, %v4916, 0.0
      %v5019 = vadd.f32 %v5017, %v5018
      %v5020 = vsel %vm1490, %v4917, 0.0
      %v5021 = vadd.f32 %v5019, %v5020
      %v5022 = vsel %vm1490, %v4918, 0.0
      %v5023 = vadd.f32 %v5021, %v5022
      %v5024 = vsel %vm1490, %v4919, 0.0
      %v5025 = vadd.f32 %v5023, %v5024
      %v5026 = vsel %vm1490, %v4920, 0.0
      %v5027 = vadd.f32 %v5025, %v5026
      %v5028 = vsel %vm1490, %v4921, 0.0
      %v5029 = vadd.f32 %v5027, %v5028
      %v5030 = vsel %vm1490, %v4922, 0.0
      %v5031 = vadd.f32 %v5029, %v5030
      %v5032 = vsel %vm1490, %v4923, 0.0
      %v5033 = vadd.f32 %v5031, %v5032
      %v5034 = vsel %vm1490, %v4924, 0.0
      %v5035 = vadd.f32 %v5033, %v5034
      %v5036 = vsel %vm1490, %v4925, 0.0
      %v5037 = vadd.f32 %v5035, %v5036
      %v5038 = vsel %vm1490, %v4926, 0.0
      %v5039 = vadd.f32 %v5037, %v5038
      %v5040 = vsel %vm1490, %v4927, 0.0
      %v5041 = vadd.f32 %v5039, %v5040
      %v5042 = vsel %vm1490, %v4928, 0.0
      %v5043 = vadd.f32 %v5041, %v5042
      %v5044 = vsel %vm1490, %v4929, 0.0
      %v5045 = vadd.f32 %v5043, %v5044
      %v5046 = vsel %vm1490, %v4930, 0.0
      %v5047 = vadd.f32 %v5045, %v5046
      %v5048 = vsel %vm1490, %v4931, 0.0
      %v5049 = vadd.f32 %v5047, %v5048
      %v5050 = vsel %vm1490, %v4932, 0.0
      %v5051 = vadd.f32 %v5049, %v5050
      %v5052 = vsel %vm1490, %v4933, 0.0
      %v5053 = vadd.f32 %v5051, %v5052
      %v5054 = vsel %vm1490, %v4934, 0.0
      %v5055 = vadd.f32 %v5053, %v5054
      %v5056 = vsel %vm1490, %v4935, 0.0
      %v5057 = vadd.f32 %v5055, %v5056
      %v5058 = vsel %vm1490, %v4936, 0.0
      %v5059 = vadd.f32 %v5057, %v5058
      %v5060 = vsel %vm1490, %v4937, 0.0
      %v5061 = vadd.f32 %v5059, %v5060
      %v5062 = vsel %vm1490, %v4938, 0.0
      %v5063 = vadd.f32 %v5061, %v5062
      %v5064 = vsel %vm1490, %v4939, 0.0
      %v5065 = vadd.f32 %v5063, %v5064
      %v5066 = vsel %vm1490, %v4940, 0.0
      %v5067 = vadd.f32 %v5065, %v5066
      %v5068 = vrot.slane %v5067, 4
      %v5069 = vadd.f32 %v5067, %v5068
      %v5070 = vrot.slane %v5069, 2
      %v5071 = vadd.f32 %v5069, %v5070
      %v5072 = vrot.slane %v5071, 1
      %v5073 = vadd.f32 %v5071, %v5072
      %v5074 = vmul.f32 %v4909, %v4909
      %v5075 = vmul.f32 %v4910, %v4910
      %v5076 = vmul.f32 %v4911, %v4911
      %v5077 = vmul.f32 %v4912, %v4912
      %v5078 = vmul.f32 %v4913, %v4913
      %v5079 = vmul.f32 %v4914, %v4914
      %v5080 = vmul.f32 %v4915, %v4915
      %v5081 = vmul.f32 %v4916, %v4916
      %v5082 = vmul.f32 %v4917, %v4917
      %v5083 = vmul.f32 %v4918, %v4918
      %v5084 = vmul.f32 %v4919, %v4919
      %v5085 = vmul.f32 %v4920, %v4920
      %v5086 = vmul.f32 %v4921, %v4921
      %v5087 = vmul.f32 %v4922, %v4922
      %v5088 = vmul.f32 %v4923, %v4923
      %v5089 = vmul.f32 %v4924, %v4924
      %v5090 = vmul.f32 %v4925, %v4925
      %v5091 = vmul.f32 %v4926, %v4926
      %v5092 = vmul.f32 %v4927, %v4927
      %v5093 = vmul.f32 %v4928, %v4928
      %v5094 = vmul.f32 %v4929, %v4929
      %v5095 = vmul.f32 %v4930, %v4930
      %v5096 = vmul.f32 %v4931, %v4931
      %v5097 = vmul.f32 %v4932, %v4932
      %v5098 = vmul.f32 %v4933, %v4933
      %v5099 = vmul.f32 %v4934, %v4934
      %v5100 = vmul.f32 %v4935, %v4935
      %v5101 = vmul.f32 %v4936, %v4936
      %v5102 = vmul.f32 %v4937, %v4937
      %v5103 = vmul.f32 %v4938, %v4938
      %v5104 = vmul.f32 %v4939, %v4939
      %v5105 = vmul.f32 %v4940, %v4940
      %v5106 = vsel %vm1490, %v5074, 0.0
      %v5107 = vsel %vm1490, %v5075, 0.0
      %v5108 = vadd.f32 %v5106, %v5107
      %v5109 = vsel %vm1490, %v5076, 0.0
      %v5110 = vadd.f32 %v5108, %v5109
      %v5111 = vsel %vm1490, %v5077, 0.0
      %v5112 = vadd.f32 %v5110, %v5111
      %v5113 = vsel %vm1490, %v5078, 0.0
      %v5114 = vadd.f32 %v5112, %v5113
      %v5115 = vsel %vm1490, %v5079, 0.0
      %v5116 = vadd.f32 %v5114, %v5115
      %v5117 = vsel %vm1490, %v5080, 0.0
      %v5118 = vadd.f32 %v5116, %v5117
      %v5119 = vsel %vm1490, %v5081, 0.0
      %v5120 = vadd.f32 %v5118, %v5119
      %v5121 = vsel %vm1490, %v5082, 0.0
      %v5122 = vadd.f32 %v5120, %v5121
      %v5123 = vsel %vm1490, %v5083, 0.0
      %v5124 = vadd.f32 %v5122, %v5123
      %v5125 = vsel %vm1490, %v5084, 0.0
      %v5126 = vadd.f32 %v5124, %v5125
      %v5127 = vsel %vm1490, %v5085, 0.0
      %v5128 = vadd.f32 %v5126, %v5127
      %v5129 = vsel %vm1490, %v5086, 0.0
      %v5130 = vadd.f32 %v5128, %v5129
      %v5131 = vsel %vm1490, %v5087, 0.0
      %v5132 = vadd.f32 %v5130, %v5131
      %v5133 = vsel %vm1490, %v5088, 0.0
      %v5134 = vadd.f32 %v5132, %v5133
      %v5135 = vsel %vm1490, %v5089, 0.0
      %v5136 = vadd.f32 %v5134, %v5135
      %v5137 = vsel %vm1490, %v5090, 0.0
      %v5138 = vadd.f32 %v5136, %v5137
      %v5139 = vsel %vm1490, %v5091, 0.0
      %v5140 = vadd.f32 %v5138, %v5139
      %v5141 = vsel %vm1490, %v5092, 0.0
      %v5142 = vadd.f32 %v5140, %v5141
      %v5143 = vsel %vm1490, %v5093, 0.0
      %v5144 = vadd.f32 %v5142, %v5143
      %v5145 = vsel %vm1490, %v5094, 0.0
      %v5146 = vadd.f32 %v5144, %v5145
      %v5147 = vsel %vm1490, %v5095, 0.0
      %v5148 = vadd.f32 %v5146, %v5147
      %v5149 = vsel %vm1490, %v5096, 0.0
      %v5150 = vadd.f32 %v5148, %v5149
      %v5151 = vsel %vm1490, %v5097, 0.0
      %v5152 = vadd.f32 %v5150, %v5151
      %v5153 = vsel %vm1490, %v5098, 0.0
      %v5154 = vadd.f32 %v5152, %v5153
      %v5155 = vsel %vm1490, %v5099, 0.0
      %v5156 = vadd.f32 %v5154, %v5155
      %v5157 = vsel %vm1490, %v5100, 0.0
      %v5158 = vadd.f32 %v5156, %v5157
      %v5159 = vsel %vm1490, %v5101, 0.0
      %v5160 = vadd.f32 %v5158, %v5159
      %v5161 = vsel %vm1490, %v5102, 0.0
      %v5162 = vadd.f32 %v5160, %v5161
      %v5163 = vsel %vm1490, %v5103, 0.0
      %v5164 = vadd.f32 %v5162, %v5163
      %v5165 = vsel %vm1490, %v5104, 0.0
      %v5166 = vadd.f32 %v5164, %v5165
      %v5167 = vsel %vm1490, %v5105, 0.0
      %v5168 = vadd.f32 %v5166, %v5167
      %v5169 = vrot.slane %v5168, 4
      %v5170 = vadd.f32 %v5168, %v5169
      %v5171 = vrot.slane %v5170, 2
      %v5172 = vadd.f32 %v5170, %v5171
      %v5173 = vrot.slane %v5172, 1
      %v5174 = vadd.f32 %v5172, %v5173
      %vm5175 = vcmask 1040384
      %v5176 = vsel %vm5175, %v5073, %v5174
      %vm5177 = vcmask 123904
      %5178 = vst.msk [vmem:[%s235] sm:$0x3] %vm5177, %v5176
      %p5179 = scmp.lt.s32.totalorder %s17, 1
      %s5180 = scalar_select %p5179, %s17, 1
      %s5181 = smul.addr %s5180, 32
      %s5182 = smul.addr %s5181, 4
      %s5183 = scalar_lea.vmem %s4, %s5182
      %p5184 = scmp.lt.s32.totalorder %s17, 1
      %s5185 = scalar_select %p5184, %s17, 1
      %s5186 = smul.addr %s5185, 2
      %s5187 = scalar_lea.vmem %s5, %s5186
      // Predicated region
      $region37: #{basic_block_forward.5} parent=35 // pred_check
        %p5188 = pneg %p124
      $region38: #{basic_block_forward.5} parent=35 // pred_check_branch
        %5190 = sbr.rel (%p5188) target = $region40
      $region39: #{basic_block_forward.5} parent=35 // pred_region
        _
      $region40: #{basic_block_forward.5} parent=35 // pred_fallthru
        _
      // Predicated region
      $region41: #{basic_block_forward.5} parent=35 // pred_check
        %p5191 = pneg %p150
      $region42: #{basic_block_forward.5} parent=35 // pred_check_branch
        %5193 = sbr.rel (%p5191) target = $region44
      $region43: #{basic_block_forward.5} parent=35 // pred_region
        _
      $region44: #{basic_block_forward.5} parent=35 // pred_fallthru
        _
    $region36: #{basic_block_forward.5} parent=5 // pred_fallthru
      _
    %p5194 = scmp.le.s32.totalorder 2, %s12
    // Predicated region
    $region45: #{basic_block_forward.5} parent=5 // pred_check
      %p5195 = pneg %p5194
    $region46: #{basic_block_forward.5} parent=5 // pred_check_branch
      %5197 = sbr.rel (%p5195) target = $region48
    $region47: #{basic_block_forward.5} parent=5 // pred_region
      %s5198 = ssub.s32 %s12, 2
      // Predicated region
      $region49: #{basic_block_forward.5} parent=47 // pred_check
        %p5199 = pneg %p130
      $region50: #{basic_block_forward.5} parent=47 // pred_check_branch
        %5201 = sbr.rel (%p5199) target = $region52
      $region51: #{basic_block_forward.5} parent=47 // pred_region
        %p5202 = scmp.lt.s32.totalorder %s18, 1
        %s5203 = scalar_select %p5202, %s18, 1
        %s5204 = smul.addr %s5203, 32
        %s5205 = smul.addr %s5204, 4
        %s5206 = scalar_lea.vmem %s4, %s5205
      $region52: #{basic_block_forward.5} parent=47 // pred_fallthru
        _
      // Predicated region
      $region53: #{basic_block_forward.5} parent=47 // pred_check
        %p5207 = pneg %p156
      $region54: #{basic_block_forward.5} parent=47 // pred_check_branch
        %5209 = sbr.rel (%p5207) target = $region56
      $region55: #{basic_block_forward.5} parent=47 // pred_region
        %p5210 = scmp.lt.s32.totalorder %s18, 1
        %s5211 = scalar_select %p5210, %s18, 1
        %s5212 = smul.addr %s5211, 2
        %s5213 = scalar_lea.vmem %s5, %s5212
      $region56: #{basic_block_forward.5} parent=47 // pred_fallthru
        _
    $region48: #{basic_block_forward.5} parent=5 // pred_fallthru
      _
  $region6: #{basic_block_forward.5} parent=0 // loop_footer
    %s16 = sadd.s32 1, %s12
  $region7: #{basic_block_forward.5} parent=0 // loop_footer_branch
    %11 = sbr.rel target = $region3
  $region8: #{basic_block_forward.5} parent=0 // loop_exit
    _

</llo_original>
